<compile_context>
chip_gen: v6e
topology: v6e:2x2x1
jax: 0.10.0
libtpu: 0.0.40
codegen_flags: <defaults>
</compile_context>

<pallas_src>
import jax
import jax.numpy as jnp
from jax import lax
from jax.experimental import pallas as pl
from jax.experimental.pallas import tpu as pltpu

# Problem sizes (stride=1 path of BottleneckBlock => in_planes == planes).
N, H, W = 2, 16, 16
IN_PLANES = 32
PLANES = 32
CMID = PLANES // 4        # conv1/conv2 channels = 8
GROUPS = PLANES // 8      # GroupNorm groups    = 4
EPS = 1e-5

NH = N * H                              # 32 rows  (sublane axis)
WCI = W * IN_PLANES                     # 512 lanes (input / residual layout)
WCM = W * CMID                          # 128 lanes (mid layout)
WCO = W * PLANES                        # 512 lanes (output layout)
CNT_MID = H * W * (CMID // GROUPS)      # elems per (sample, group), mid = 512
CNT_OUT = H * W * (PLANES // GROUPS)    # elems per (sample, group), out = 2048

# Packed-slab row offsets (all 8-aligned for clean sublane-aligned slices).
W2_OFF = WCI                            # 512   : 9 x (128,128) conv2 tap blocks
BMID_OFF = WCI + 9 * WCM                # 1664  : (GROUPS,128) group one-hot (padded to 8 rows)
VMID_OFF = BMID_OFF + 8                 # 1672  : b1,g1w,g1b,b2,g2w,g2b  (6 rows)
WA_ROWS = VMID_OFF + 6                  # 1678
BOUT_OFF = WCM                          # 128   : (GROUPS,512) group one-hot (padded to 8 rows)
VOUT_OFF = BOUT_OFF + 8                 # 136   : b3,g3w,g3b (3 rows)
WB_ROWS = VOUT_OFF + 3                  # 139

DN_T = (((1,), (1,)), ((), ()))         # contract dim-1 of both operands (rhs "transposed")


def _group_norm(t, b_mat, gamma, beta, count):
    """GroupNorm in the lane-dense (N*H, W*C) layout.

    b_mat: (G, W*C) 0/1 one-hot group membership (b_mat[g, j] = 1 iff column j's
           channel belongs to group g).  Group sums use the rank-G factorization
           dot(dot(s, b_mat^T), b_mat) instead of the old (W*C, W*C) mask matmul.
    gamma, beta: (1, W*C) affine params (per-channel values tiled over w).
    count: elements per (sample, group) = H*W*(C//G).
    """
    cl = t.shape[1]
    t3 = t.reshape(N, H, cl)
    s1 = jnp.sum(t3, axis=1)                                                # (N, W*C)
    s2 = jnp.sum(t3 * t3, axis=1)                                           # (N, W*C)
    gsum = lax.dot_general(s1, b_mat, DN_T, preferred_element_type=jnp.float32)  # (N, G)
    gsq = lax.dot_general(s2, b_mat, DN_T, preferred_element_type=jnp.float32)   # (N, G)
    gsum_b = jnp.dot(gsum, b_mat, preferred_element_type=jnp.float32)       # (N, W*C)
    gsq_b = jnp.dot(gsq, b_mat, preferred_element_type=jnp.float32)         # (N, W*C)
    inv_cnt = 1.0 / count
    mean = gsum_b * inv_cnt
    var = jnp.maximum(gsq_b * inv_cnt - mean * mean, 0.0)                   # clamp (single-pass var)
    inv = lax.rsqrt(var + EPS)                                              # (N, W*C)
    scale = inv * gamma
    shift = beta - mean * scale
    out = t3 * scale[:, None, :] + shift[:, None, :]
    return out.reshape(NH, cl)


def bottleneck_kernel(x_ref, wa_ref, wb_ref, o_ref):
    x = x_ref[...].reshape(NH, WCI)                        # (32, 512)

    # --- coalesced parameter slabs, static (8-aligned) row slices ---
    w1_big = wa_ref[0:WCI, :]                              # (512, 128)
    b_mid = wa_ref[BMID_OFF:BMID_OFF + GROUPS, :]          # (4, 128)
    vmid = wa_ref[VMID_OFF:VMID_OFF + 6, :]                # (6, 128)
    b1, g1w, g1b = vmid[0:1], vmid[1:2], vmid[2:3]
    b2, g2w, g2b = vmid[3:4], vmid[4:5], vmid[5:6]

    w3_big = wb_ref[0:WCM, :]                              # (128, 512)
    b_out = wb_ref[BOUT_OFF:BOUT_OFF + GROUPS, :]          # (4, 512)
    vout = wb_ref[VOUT_OFF:VOUT_OFF + 3, :]                # (3, 512)
    b3, g3w, g3b = vout[0:1], vout[1:2], vout[2:3]

    # conv1 (1x1) -> GroupNorm -> ReLU  (single block-diagonal matmul)
    y = jnp.dot(x, w1_big, preferred_element_type=jnp.float32) + b1
    y = _group_norm(y, b_mid, g1w, g1b, CNT_MID)
    y = jnp.maximum(y, 0.0)                                # (32, 128)

    # conv2 (3x3, padding=1, stride=1):
    #  * dy (sublane) rolls + row masks hoisted: 3 row-variants computed once.
    #    NOTE: pltpu.roll on axis 0 wraps across the sample boundary of the
    #    (N*H) packing; the h==0 / h==H-1 masks fall exactly on those wrap rows,
    #    which is what keeps this correct — preserve that invariant if the
    #    layout or N changes.
    #  * dx (lane) boundary masks are folded into the weights at prep time.
    #  * per-tap dot-accumulate (no (32,1152) im2col temporary).
    row_h = lax.broadcasted_iota(jnp.int32, (NH, WCM), 0) % H
    y_m1 = jnp.where(row_h == 0, 0.0, pltpu.roll(y, shift=1, axis=0))           # dy = -1
    y_p1 = jnp.where(row_h == H - 1, 0.0, pltpu.roll(y, shift=NH - 1, axis=0))  # dy = +1
    rows = (y_m1, y, y_p1)                                 # indexed by ky = dy + 1

    acc = None
    for ky in range(3):
        base = rows[ky]
        for kx in range(3):
            dx = kx - 1
            tap = base if dx == 0 else pltpu.roll(base, shift=(-dx * CMID) % WCM, axis=1)
            t = ky * 3 + kx
            wblk = wa_ref[W2_OFF + t * WCM:W2_OFF + (t + 1) * WCM, :]            # (128, 128)
            contrib = jnp.dot(tap, wblk, preferred_element_type=jnp.float32)
            acc = contrib if acc is None else acc + contrib
    y = acc + b2
    y = _group_norm(y, b_mid, g2w, g2b, CNT_MID)
    y = jnp.maximum(y, 0.0)                                # (32, 128)

    # conv3 (1x1) -> GroupNorm -> ReLU
    y = jnp.dot(y, w3_big, preferred_element_type=jnp.float32) + b3
    y = _group_norm(y, b_out, g3w, g3b, CNT_OUT)
    y = jnp.maximum(y, 0.0)                                # (32, 512)

    # residual add + ReLU (stride == 1 -> downsample is None)
    # TODO(synk): stride != 1 path (strided 1x1 downsample conv + norm4) not implemented.
    out = jnp.maximum(x + y, 0.0)
    o_ref[...] = out.reshape(N, H, WCO)                    # lane-dense write (2, 16, 512)


def bottleneck_block(x, params):
    (w1, b1, w2, b2, w3, b3, g1w, g1b, g2w, g2b, g3w, g3b) = params
    f32 = jnp.float32

    # Block-diagonal (kron) weights keep all matmuls in the lane-dense layout.
    eye_w = jnp.eye(W, dtype=f32)
    w1_big = jnp.kron(eye_w, w1.astype(f32))                               # (512, 128)
    w3_big = jnp.kron(eye_w, w3.astype(f32))                               # (128, 512)

    # conv2 taps: fold the horizontal (dx) zero-padding into the weight by
    # zeroing the W-boundary diagonal block (column masks are per-lane only).
    w2_taps = []
    for ky in range(3):
        for kx in range(3):
            dx = kx - 1
            col_mask = jnp.ones((W,), f32)
            if dx == 1:
                col_mask = col_mask.at[W - 1].set(0.0)
            elif dx == -1:
                col_mask = col_mask.at[0].set(0.0)
            w2_taps.append(jnp.kron(jnp.diag(col_mask), w2[ky, kx].astype(f32)))
    w2_big = jnp.concatenate(w2_taps, axis=0)                              # (1152, 128)

    # Rank-G one-hot group-membership matrices (replace the old dense masks).
    gid = jnp.arange(GROUPS)
    g_mid = (jnp.arange(WCM) % CMID) // (CMID // GROUPS)
    b_mid = (g_mid[None, :] == gid[:, None]).astype(f32)                   # (4, 128)
    b_mid = jnp.concatenate([b_mid, jnp.zeros((8 - GROUPS, WCM), f32)], axis=0)
    g_out = (jnp.arange(WCO) % PLANES) // (PLANES // GROUPS)
    b_out = (g_out[None, :] == gid[:, None]).astype(f32)                   # (4, 512)
    b_out = jnp.concatenate([b_out, jnp.zeros((8 - GROUPS, WCO), f32)], axis=0)

    def tile_cols(v):  # per-channel vector -> per-column (j = w*C + c) row
        return jnp.tile(v.reshape(-1), W)[None, :].astype(f32)

    vmid = jnp.concatenate([tile_cols(b1), tile_cols(g1w), tile_cols(g1b),
                            tile_cols(b2), tile_cols(g2w), tile_cols(g2b)],
                           axis=0)                                         # (6, 128)
    vout = jnp.concatenate([tile_cols(b3), tile_cols(g3w), tile_cols(g3b)],
                           axis=0)                                         # (3, 512)

    # Two coalesced lane-dense parameter slabs -> 3 input DMAs total (x, wa, wb).
    # TODO(synk): optionally ship the kron slabs in bf16 (halves weight bytes);
    # gated off here to keep the 1e-4 accuracy tolerance.
    wa = jnp.concatenate([w1_big, w2_big, b_mid, vmid], axis=0)            # (1678, 128)
    wb = jnp.concatenate([w3_big, b_out, vout], axis=0)                    # (139, 512)
    assert wa.shape == (WA_ROWS, WCM) and wb.shape == (WB_ROWS, WCO)

    x_lane = x.reshape(N, H, WCI)                                          # lane-dense view

    out = pl.pallas_call(
        bottleneck_kernel,
        out_shape=jax.ShapeDtypeStruct((N, H, WCO), jnp.float32),
        grid_spec=pltpu.PrefetchScalarGridSpec(
            num_scalar_prefetch=0,
            grid=(1,),  # whole batch in one grid step; single TC on purpose at this size
            in_specs=[
                pl.BlockSpec((N, H, WCI), lambda i: (0, 0, 0)),
                pl.BlockSpec(wa.shape, lambda i: (0, 0)),
                pl.BlockSpec(wb.shape, lambda i: (0, 0)),
            ],
            out_specs=pl.BlockSpec((N, H, WCO), lambda i: (0, 0, 0)),
        ),
        compiler_params=pltpu.CompilerParams(
            dimension_semantics=("arbitrary",)),
    )(x_lane, wa, wb)
    return out.reshape(N, H, W, PLANES)


def reference(x, params):
    """Plain-JAX reference (NHWC) mirroring the PyTorch forward."""
    (w1, b1, w2, b2, w3, b3, g1w, g1b, g2w, g2b, g3w, g3b) = params
    dn = ('NHWC', 'HWIO', 'NHWC')

    def conv1x1(t, w, b):
        return lax.conv_general_dilated(
            t, w.reshape(1, 1, *w.shape), (1, 1), 'VALID',
            dimension_numbers=dn) + b.reshape(1, 1, 1, -1)

    def gn(t, gamma, beta, groups):
        n, h, w_, c = t.shape
        tg = t.reshape(n, h, w_, groups, c // groups)
        mu = tg.mean(axis=(1, 2, 4), keepdims=True)
        var = ((tg - mu) ** 2).mean(axis=(1, 2, 4), keepdims=True)
        tn = ((tg - mu) / jnp.sqrt(var + EPS)).reshape(n, h, w_, c)
        return tn * gamma.reshape(1, 1, 1, -1) + beta.reshape(1, 1, 1, -1)

    y = jax.nn.relu(gn(conv1x1(x, w1, b1), g1w, g1b, GROUPS))
    y = lax.conv_general_dilated(y, w2, (1, 1), 'SAME',
                                 dimension_numbers=dn) + b2.reshape(1, 1, 1, -1)
    y = jax.nn.relu(gn(y, g2w, g2b, GROUPS))
    y = jax.nn.relu(gn(conv1x1(y, w3, b3), g3w, g3b, GROUPS))
    return jax.nn.relu(x + y)


if __name__ == "__main__":
    key = jax.random.PRNGKey(0)
    ks = jax.random.split(key, 14)

    w1 = jax.random.normal(ks[0], (IN_PLANES, CMID), jnp.float32) * 0.1
    b1 = jax.random.normal(ks[1], (1, CMID), jnp.float32) * 0.1
    w2 = jax.random.normal(ks[2], (3, 3, CMID, CMID), jnp.float32) * 0.1
    b2 = jax.random.normal(ks[3], (1, CMID), jnp.float32) * 0.1
    w3 = jax.random.normal(ks[4], (CMID, PLANES), jnp.float32) * 0.1
    b3 = jax.random.normal(ks[5], (1, PLANES), jnp.float32) * 0.1
    g1w = 1.0 + 0.1 * jax.random.normal(ks[6], (1, CMID), jnp.float32)
    g1b = 0.1 * jax.random.normal(ks[7], (1, CMID), jnp.float32)
    g2w = 1.0 + 0.1 * jax.random.normal(ks[8], (1, CMID), jnp.float32)
    g2b = 0.1 * jax.random.normal(ks[9], (1, CMID), jnp.float32)
    g3w = 1.0 + 0.1 * jax.random.normal(ks[10], (1, PLANES), jnp.float32)
    g3b = 0.1 * jax.random.normal(ks[11], (1, PLANES), jnp.float32)
    params = (w1, b1, w2, b2, w3, b3, g1w, g1b, g2w, g2b, g3w, g3b)

    x = jax.random.normal(ks[12], (N, H, W, IN_PLANES), jnp.float32)

    out = bottleneck_block(x, params)
    out = jax.block_until_ready(out)

    ref = jax.block_until_ready(reference(x, params))
    assert out.shape == (N, H, W, PLANES)
    assert jnp.allclose(out, ref, atol=1e-4, rtol=1e-4), (
        float(jnp.max(jnp.abs(out - ref))))

    print("KERNEL_OK")
</pallas_src>

<mosaic_0001>
module attributes {stable_mosaic.version = 11 : i64} {
  func.func @bottleneck_kernel(%arg0: i32, %arg1: memref<2x16x512xf32, #tpu.memory_space<vmem>>, %arg2: memref<1678x128xf32, #tpu.memory_space<vmem>>, %arg3: memref<139x512xf32, #tpu.memory_space<vmem>>, %arg4: memref<2x16x512xf32, #tpu.memory_space<vmem>>) attributes {dimension_semantics = [#tpu.dimension_semantics<arbitrary>], iteration_bounds = array<i64: 1>, scalar_prefetch = 0 : i64, scratch_operands = 0 : i64, tpu.core_type = #tpu.core_type<tc>, window_params = [{pipeline_mode = #tpu.pipeline_mode<synchronous>, transform_indices = @transform_0, window_bounds = array<i64: 2, 16, 512>}, {pipeline_mode = #tpu.pipeline_mode<synchronous>, transform_indices = @transform_1, window_bounds = array<i64: 1678, 128>}, {pipeline_mode = #tpu.pipeline_mode<synchronous>, transform_indices = @transform_2, window_bounds = array<i64: 139, 512>}, {pipeline_mode = #tpu.pipeline_mode<synchronous>, transform_indices = @transform_3, window_bounds = array<i64: 2, 16, 512>}]} {
    %c0 = arith.constant 0 : index
    %c0_0 = arith.constant 0 : index
    %c0_1 = arith.constant 0 : index
    %0 = vector.load %arg1[%c0, %c0_0, %c0_1] : memref<2x16x512xf32, #tpu.memory_space<vmem>>, vector<2x16x512xf32>
    %1 = vector.shape_cast %0 : vector<2x16x512xf32> to vector<32x512xf32>
    %c0_2 = arith.constant 0 : index
    %c0_3 = arith.constant 0 : index
    %2 = vector.load %arg2[%c0_2, %c0_3] : memref<1678x128xf32, #tpu.memory_space<vmem>>, vector<512x128xf32>
    %c1664 = arith.constant 1664 : index
    %c0_4 = arith.constant 0 : index
    %3 = vector.load %arg2[%c1664, %c0_4] : memref<1678x128xf32, #tpu.memory_space<vmem>>, vector<4x128xf32>
    %c1672 = arith.constant 1672 : index
    %c0_5 = arith.constant 0 : index
    %4 = vector.load %arg2[%c1672, %c0_5] : memref<1678x128xf32, #tpu.memory_space<vmem>>, vector<6x128xf32>
    %5 = vector.extract_strided_slice %4 {offsets = [0, 0], sizes = [1, 128], strides = [1, 1]} : vector<6x128xf32> to vector<1x128xf32>
    %6 = vector.extract_strided_slice %4 {offsets = [1, 0], sizes = [1, 128], strides = [1, 1]} : vector<6x128xf32> to vector<1x128xf32>
    %7 = vector.extract_strided_slice %4 {offsets = [2, 0], sizes = [1, 128], strides = [1, 1]} : vector<6x128xf32> to vector<1x128xf32>
    %8 = vector.extract_strided_slice %4 {offsets = [3, 0], sizes = [1, 128], strides = [1, 1]} : vector<6x128xf32> to vector<1x128xf32>
    %9 = vector.extract_strided_slice %4 {offsets = [4, 0], sizes = [1, 128], strides = [1, 1]} : vector<6x128xf32> to vector<1x128xf32>
    %10 = vector.extract_strided_slice %4 {offsets = [5, 0], sizes = [1, 128], strides = [1, 1]} : vector<6x128xf32> to vector<1x128xf32>
    %c0_6 = arith.constant 0 : index
    %c0_7 = arith.constant 0 : index
    %11 = vector.load %arg3[%c0_6, %c0_7] : memref<139x512xf32, #tpu.memory_space<vmem>>, vector<128x512xf32>
    %c128 = arith.constant 128 : index
    %c0_8 = arith.constant 0 : index
    %12 = vector.load %arg3[%c128, %c0_8] : memref<139x512xf32, #tpu.memory_space<vmem>>, vector<4x512xf32>
    %c136 = arith.constant 136 : index
    %c0_9 = arith.constant 0 : index
    %13 = vector.load %arg3[%c136, %c0_9] : memref<139x512xf32, #tpu.memory_space<vmem>>, vector<3x512xf32>
    %14 = vector.extract_strided_slice %13 {offsets = [0, 0], sizes = [1, 512], strides = [1, 1]} : vector<3x512xf32> to vector<1x512xf32>
    %15 = vector.extract_strided_slice %13 {offsets = [1, 0], sizes = [1, 512], strides = [1, 1]} : vector<3x512xf32> to vector<1x512xf32>
    %16 = vector.extract_strided_slice %13 {offsets = [2, 0], sizes = [1, 512], strides = [1, 1]} : vector<3x512xf32> to vector<1x512xf32>
    %cst = arith.constant dense<0.000000e+00> : vector<32x128xf32>
    %17 = tpu.matmul %1, %2, %cst {dimension_numbers = #tpu.dot_dimension_numbers<[1], [0], [0], [1], [0, 0, 1, 1], [], []>} : vector<32x512xf32>, vector<512x128xf32>, vector<32x128xf32> -> vector<32x128xf32>
    %18 = vector.broadcast %5 : vector<1x128xf32> to vector<32x128xf32>
    %19 = arith.addf %17, %18 : vector<32x128xf32>
    %20 = vector.shape_cast %19 : vector<32x128xf32> to vector<2x16x128xf32>
    %cst_10 = arith.constant dense<0.000000e+00> : vector<2x128xf32>
    %21 = vector.multi_reduction <add>, %20, %cst_10 [1] : vector<2x16x128xf32> to vector<2x128xf32>
    %22 = arith.mulf %20, %20 : vector<2x16x128xf32>
    %cst_11 = arith.constant dense<0.000000e+00> : vector<2x128xf32>
    %23 = vector.multi_reduction <add>, %22, %cst_11 [1] : vector<2x16x128xf32> to vector<2x128xf32>
    %cst_12 = arith.constant dense<0.000000e+00> : vector<2x4xf32>
    %24 = tpu.matmul %21, %3, %cst_12 {dimension_numbers = #tpu.dot_dimension_numbers<[1], [1], [0], [0], [0, 0, 1, 0], [], []>} : vector<2x128xf32>, vector<4x128xf32>, vector<2x4xf32> -> vector<2x4xf32>
    %cst_13 = arith.constant dense<0.000000e+00> : vector<2x4xf32>
    %25 = tpu.matmul %23, %3, %cst_13 {dimension_numbers = #tpu.dot_dimension_numbers<[1], [1], [0], [0], [0, 0, 1, 0], [], []>} : vector<2x128xf32>, vector<4x128xf32>, vector<2x4xf32> -> vector<2x4xf32>
    %cst_14 = arith.constant dense<0.000000e+00> : vector<2x128xf32>
    %26 = tpu.matmul %24, %3, %cst_14 {dimension_numbers = #tpu.dot_dimension_numbers<[1], [0], [0], [1], [0, 0, 1, 1], [], []>} : vector<2x4xf32>, vector<4x128xf32>, vector<2x128xf32> -> vector<2x128xf32>
    %cst_15 = arith.constant dense<0.000000e+00> : vector<2x128xf32>
    %27 = tpu.matmul %25, %3, %cst_15 {dimension_numbers = #tpu.dot_dimension_numbers<[1], [0], [0], [1], [0, 0, 1, 1], [], []>} : vector<2x4xf32>, vector<4x128xf32>, vector<2x128xf32> -> vector<2x128xf32>
    %cst_16 = arith.constant 0.001953125 : f32
    %28 = vector.broadcast %cst_16 : f32 to vector<2x128xf32>
    %29 = arith.mulf %26, %28 : vector<2x128xf32>
    %cst_17 = arith.constant 0.001953125 : f32
    %30 = vector.broadcast %cst_17 : f32 to vector<2x128xf32>
    %31 = arith.mulf %27, %30 : vector<2x128xf32>
    %32 = arith.mulf %29, %29 : vector<2x128xf32>
    %33 = arith.subf %31, %32 : vector<2x128xf32>
    %cst_18 = arith.constant 0.000000e+00 : f32
    %34 = vector.broadcast %cst_18 : f32 to vector<2x128xf32>
    %35 = arith.maximumf %33, %34 : vector<2x128xf32>
    %cst_19 = arith.constant 9.99999974E-6 : f32
    %36 = vector.broadcast %cst_19 : f32 to vector<2x128xf32>
    %37 = arith.addf %35, %36 : vector<2x128xf32>
    %38 = math.rsqrt %37 : vector<2x128xf32>
    %39 = vector.broadcast %6 : vector<1x128xf32> to vector<2x128xf32>
    %40 = arith.mulf %38, %39 : vector<2x128xf32>
    %41 = arith.mulf %29, %40 : vector<2x128xf32>
    %42 = vector.broadcast %7 : vector<1x128xf32> to vector<2x128xf32>
    %43 = arith.subf %42, %41 : vector<2x128xf32>
    %44 = vector.shape_cast %40 : vector<2x128xf32> to vector<2x1x128xf32>
    %45 = vector.broadcast %44 : vector<2x1x128xf32> to vector<2x16x128xf32>
    %46 = arith.mulf %20, %45 : vector<2x16x128xf32>
    %47 = vector.shape_cast %43 : vector<2x128xf32> to vector<2x1x128xf32>
    %48 = vector.broadcast %47 : vector<2x1x128xf32> to vector<2x16x128xf32>
    %49 = arith.addf %46, %48 : vector<2x16x128xf32>
    %50 = vector.shape_cast %49 : vector<2x16x128xf32> to vector<32x128xf32>
    %cst_20 = arith.constant 0.000000e+00 : f32
    %51 = vector.broadcast %cst_20 : f32 to vector<32x128xf32>
    %52 = arith.maximumf %50, %51 : vector<32x128xf32>
    %53 = tpu.iota {dimensions = array<i32: 0>} : vector<32x128xi32>
    %c16_i32 = arith.constant 16 : i32
    %c0_i32 = arith.constant 0 : i32
    %54 = arith.cmpi eq, %c16_i32, %c0_i32 : i32
    %c1_i32 = arith.constant 1 : i32
    %55 = arith.select %54, %c1_i32, %c16_i32 : i32
    %56 = vector.broadcast %55 : i32 to vector<32x128xi32>
    %57 = arith.remsi %53, %56 : vector<32x128xi32>
    %c0_i32_21 = arith.constant 0 : i32
    %58 = vector.broadcast %c0_i32_21 : i32 to vector<32x128xi32>
    %59 = arith.cmpi ne, %57, %58 : vector<32x128xi32>
    %c0_i32_22 = arith.constant 0 : i32
    %60 = vector.broadcast %c0_i32_22 : i32 to vector<32x128xi32>
    %61 = arith.cmpi slt, %57, %60 : vector<32x128xi32>
    %c0_i32_23 = arith.constant 0 : i32
    %62 = arith.cmpi slt, %55, %c0_i32_23 : i32
    %63 = vector.broadcast %62 : i1 to vector<32x128xi1>
    %64 = vector.broadcast %63 : vector<32x128xi1> to vector<32x128xi1>
    %65 = arith.xori %61, %64 : vector<32x128xi1>
    %66 = arith.andi %65, %59 : vector<32x128xi1>
    %67 = vector.broadcast %55 : i32 to vector<32x128xi32>
    %68 = arith.addi %57, %67 : vector<32x128xi32>
    %69 = arith.select %66, %68, %57 : vector<32x128xi1>, vector<32x128xi32>
    %c0_i32_24 = arith.constant 0 : i32
    %70 = vector.broadcast %c0_i32_24 : i32 to vector<32x128xi32>
    %71 = arith.cmpi eq, %69, %70 : vector<32x128xi32>
    %c1_i32_25 = arith.constant 1 : i32
    %72 = tpu.dynamic_rotate %52 by %c1_i32_25 dim 0 : vector<32x128xf32>, i32 -> vector<32x128xf32>
    %cst_26 = arith.constant 0.000000e+00 : f32
    %73 = vector.broadcast %cst_26 : f32 to vector<32x128xf32>
    %74 = arith.select %71, %73, %72 : vector<32x128xi1>, vector<32x128xf32>
    %c15_i32 = arith.constant 15 : i32
    %75 = vector.broadcast %c15_i32 : i32 to vector<32x128xi32>
    %76 = arith.cmpi eq, %69, %75 : vector<32x128xi32>
    %c31_i32 = arith.constant 31 : i32
    %77 = tpu.dynamic_rotate %52 by %c31_i32 dim 0 : vector<32x128xf32>, i32 -> vector<32x128xf32>
    %cst_27 = arith.constant 0.000000e+00 : f32
    %78 = vector.broadcast %cst_27 : f32 to vector<32x128xf32>
    %79 = arith.select %76, %78, %77 : vector<32x128xi1>, vector<32x128xf32>
    %c8_i32 = arith.constant 8 : i32
    %80 = tpu.dynamic_rotate %74 by %c8_i32 dim 1 : vector<32x128xf32>, i32 -> vector<32x128xf32>
    %c512 = arith.constant 512 : index
    %c0_28 = arith.constant 0 : index
    %81 = vector.load %arg2[%c512, %c0_28] : memref<1678x128xf32, #tpu.memory_space<vmem>>, vector<128x128xf32>
    %cst_29 = arith.constant dense<0.000000e+00> : vector<32x128xf32>
    %82 = tpu.matmul %80, %81, %cst_29 {dimension_numbers = #tpu.dot_dimension_numbers<[1], [0], [0], [1], [0, 0, 1, 1], [], []>} : vector<32x128xf32>, vector<128x128xf32>, vector<32x128xf32> -> vector<32x128xf32>
    %c640 = arith.constant 640 : index
    %c0_30 = arith.constant 0 : index
    %83 = vector.load %arg2[%c640, %c0_30] : memref<1678x128xf32, #tpu.memory_space<vmem>>, vector<128x128xf32>
    %cst_31 = arith.constant dense<0.000000e+00> : vector<32x128xf32>
    %84 = tpu.matmul %74, %83, %cst_31 {dimension_numbers = #tpu.dot_dimension_numbers<[1], [0], [0], [1], [0, 0, 1, 1], [], []>} : vector<32x128xf32>, vector<128x128xf32>, vector<32x128xf32> -> vector<32x128xf32>
    %85 = arith.addf %82, %84 : vector<32x128xf32>
    %c120_i32 = arith.constant 120 : i32
    %86 = tpu.dynamic_rotate %74 by %c120_i32 dim 1 : vector<32x128xf32>, i32 -> vector<32x128xf32>
    %c768 = arith.constant 768 : index
    %c0_32 = arith.constant 0 : index
    %87 = vector.load %arg2[%c768, %c0_32] : memref<1678x128xf32, #tpu.memory_space<vmem>>, vector<128x128xf32>
    %cst_33 = arith.constant dense<0.000000e+00> : vector<32x128xf32>
    %88 = tpu.matmul %86, %87, %cst_33 {dimension_numbers = #tpu.dot_dimension_numbers<[1], [0], [0], [1], [0, 0, 1, 1], [], []>} : vector<32x128xf32>, vector<128x128xf32>, vector<32x128xf32> -> vector<32x128xf32>
    %89 = arith.addf %85, %88 : vector<32x128xf32>
    %c8_i32_34 = arith.constant 8 : i32
    %90 = tpu.dynamic_rotate %52 by %c8_i32_34 dim 1 : vector<32x128xf32>, i32 -> vector<32x128xf32>
    %c896 = arith.constant 896 : index
    %c0_35 = arith.constant 0 : index
    %91 = vector.load %arg2[%c896, %c0_35] : memref<1678x128xf32, #tpu.memory_space<vmem>>, vector<128x128xf32>
    %cst_36 = arith.constant dense<0.000000e+00> : vector<32x128xf32>
    %92 = tpu.matmul %90, %91, %cst_36 {dimension_numbers = #tpu.dot_dimension_numbers<[1], [0], [0], [1], [0, 0, 1, 1], [], []>} : vector<32x128xf32>, vector<128x128xf32>, vector<32x128xf32> -> vector<32x128xf32>
    %93 = arith.addf %89, %92 : vector<32x128xf32>
    %c1024 = arith.constant 1024 : index
    %c0_37 = arith.constant 0 : index
    %94 = vector.load %arg2[%c1024, %c0_37] : memref<1678x128xf32, #tpu.memory_space<vmem>>, vector<128x128xf32>
    %cst_38 = arith.constant dense<0.000000e+00> : vector<32x128xf32>
    %95 = tpu.matmul %52, %94, %cst_38 {dimension_numbers = #tpu.dot_dimension_numbers<[1], [0], [0], [1], [0, 0, 1, 1], [], []>} : vector<32x128xf32>, vector<128x128xf32>, vector<32x128xf32> -> vector<32x128xf32>
    %96 = arith.addf %93, %95 : vector<32x128xf32>
    %c120_i32_39 = arith.constant 120 : i32
    %97 = tpu.dynamic_rotate %52 by %c120_i32_39 dim 1 : vector<32x128xf32>, i32 -> vector<32x128xf32>
    %c1152 = arith.constant 1152 : index
    %c0_40 = arith.constant 0 : index
    %98 = vector.load %arg2[%c1152, %c0_40] : memref<1678x128xf32, #tpu.memory_space<vmem>>, vector<128x128xf32>
    %cst_41 = arith.constant dense<0.000000e+00> : vector<32x128xf32>
    %99 = tpu.matmul %97, %98, %cst_41 {dimension_numbers = #tpu.dot_dimension_numbers<[1], [0], [0], [1], [0, 0, 1, 1], [], []>} : vector<32x128xf32>, vector<128x128xf32>, vector<32x128xf32> -> vector<32x128xf32>
    %100 = arith.addf %96, %99 : vector<32x128xf32>
    %c8_i32_42 = arith.constant 8 : i32
    %101 = tpu.dynamic_rotate %79 by %c8_i32_42 dim 1 : vector<32x128xf32>, i32 -> vector<32x128xf32>
    %c1280 = arith.constant 1280 : index
    %c0_43 = arith.constant 0 : index
    %102 = vector.load %arg2[%c1280, %c0_43] : memref<1678x128xf32, #tpu.memory_space<vmem>>, vector<128x128xf32>
    %cst_44 = arith.constant dense<0.000000e+00> : vector<32x128xf32>
    %103 = tpu.matmul %101, %102, %cst_44 {dimension_numbers = #tpu.dot_dimension_numbers<[1], [0], [0], [1], [0, 0, 1, 1], [], []>} : vector<32x128xf32>, vector<128x128xf32>, vector<32x128xf32> -> vector<32x128xf32>
    %104 = arith.addf %100, %103 : vector<32x128xf32>
    %c1408 = arith.constant 1408 : index
    %c0_45 = arith.constant 0 : index
    %105 = vector.load %arg2[%c1408, %c0_45] : memref<1678x128xf32, #tpu.memory_space<vmem>>, vector<128x128xf32>
    %cst_46 = arith.constant dense<0.000000e+00> : vector<32x128xf32>
    %106 = tpu.matmul %79, %105, %cst_46 {dimension_numbers = #tpu.dot_dimension_numbers<[1], [0], [0], [1], [0, 0, 1, 1], [], []>} : vector<32x128xf32>, vector<128x128xf32>, vector<32x128xf32> -> vector<32x128xf32>
    %107 = arith.addf %104, %106 : vector<32x128xf32>
    %c120_i32_47 = arith.constant 120 : i32
    %108 = tpu.dynamic_rotate %79 by %c120_i32_47 dim 1 : vector<32x128xf32>, i32 -> vector<32x128xf32>
    %c1536 = arith.constant 1536 : index
    %c0_48 = arith.constant 0 : index
    %109 = vector.load %arg2[%c1536, %c0_48] : memref<1678x128xf32, #tpu.memory_space<vmem>>, vector<128x128xf32>
    %cst_49 = arith.constant dense<0.000000e+00> : vector<32x128xf32>
    %110 = tpu.matmul %108, %109, %cst_49 {dimension_numbers = #tpu.dot_dimension_numbers<[1], [0], [0], [1], [0, 0, 1, 1], [], []>} : vector<32x128xf32>, vector<128x128xf32>, vector<32x128xf32> -> vector<32x128xf32>
    %111 = arith.addf %107, %110 : vector<32x128xf32>
    %112 = vector.broadcast %8 : vector<1x128xf32> to vector<32x128xf32>
    %113 = arith.addf %111, %112 : vector<32x128xf32>
    %114 = vector.shape_cast %113 : vector<32x128xf32> to vector<2x16x128xf32>
    %cst_50 = arith.constant dense<0.000000e+00> : vector<2x128xf32>
    %115 = vector.multi_reduction <add>, %114, %cst_50 [1] : vector<2x16x128xf32> to vector<2x128xf32>
    %116 = arith.mulf %114, %114 : vector<2x16x128xf32>
    %cst_51 = arith.constant dense<0.000000e+00> : vector<2x128xf32>
    %117 = vector.multi_reduction <add>, %116, %cst_51 [1] : vector<2x16x128xf32> to vector<2x128xf32>
    %cst_52 = arith.constant dense<0.000000e+00> : vector<2x4xf32>
    %118 = tpu.matmul %115, %3, %cst_52 {dimension_numbers = #tpu.dot_dimension_numbers<[1], [1], [0], [0], [0, 0, 1, 0], [], []>} : vector<2x128xf32>, vector<4x128xf32>, vector<2x4xf32> -> vector<2x4xf32>
    %cst_53 = arith.constant dense<0.000000e+00> : vector<2x4xf32>
    %119 = tpu.matmul %117, %3, %cst_53 {dimension_numbers = #tpu.dot_dimension_numbers<[1], [1], [0], [0], [0, 0, 1, 0], [], []>} : vector<2x128xf32>, vector<4x128xf32>, vector<2x4xf32> -> vector<2x4xf32>
    %cst_54 = arith.constant dense<0.000000e+00> : vector<2x128xf32>
    %120 = tpu.matmul %118, %3, %cst_54 {dimension_numbers = #tpu.dot_dimension_numbers<[1], [0], [0], [1], [0, 0, 1, 1], [], []>} : vector<2x4xf32>, vector<4x128xf32>, vector<2x128xf32> -> vector<2x128xf32>
    %cst_55 = arith.constant dense<0.000000e+00> : vector<2x128xf32>
    %121 = tpu.matmul %119, %3, %cst_55 {dimension_numbers = #tpu.dot_dimension_numbers<[1], [0], [0], [1], [0, 0, 1, 1], [], []>} : vector<2x4xf32>, vector<4x128xf32>, vector<2x128xf32> -> vector<2x128xf32>
    %cst_56 = arith.constant 0.001953125 : f32
    %122 = vector.broadcast %cst_56 : f32 to vector<2x128xf32>
    %123 = arith.mulf %120, %122 : vector<2x128xf32>
    %cst_57 = arith.constant 0.001953125 : f32
    %124 = vector.broadcast %cst_57 : f32 to vector<2x128xf32>
    %125 = arith.mulf %121, %124 : vector<2x128xf32>
    %126 = arith.mulf %123, %123 : vector<2x128xf32>
    %127 = arith.subf %125, %126 : vector<2x128xf32>
    %cst_58 = arith.constant 0.000000e+00 : f32
    %128 = vector.broadcast %cst_58 : f32 to vector<2x128xf32>
    %129 = arith.maximumf %127, %128 : vector<2x128xf32>
    %cst_59 = arith.constant 9.99999974E-6 : f32
    %130 = vector.broadcast %cst_59 : f32 to vector<2x128xf32>
    %131 = arith.addf %129, %130 : vector<2x128xf32>
    %132 = math.rsqrt %131 : vector<2x128xf32>
    %133 = vector.broadcast %9 : vector<1x128xf32> to vector<2x128xf32>
    %134 = arith.mulf %132, %133 : vector<2x128xf32>
    %135 = arith.mulf %123, %134 : vector<2x128xf32>
    %136 = vector.broadcast %10 : vector<1x128xf32> to vector<2x128xf32>
    %137 = arith.subf %136, %135 : vector<2x128xf32>
    %138 = vector.shape_cast %134 : vector<2x128xf32> to vector<2x1x128xf32>
    %139 = vector.broadcast %138 : vector<2x1x128xf32> to vector<2x16x128xf32>
    %140 = arith.mulf %114, %139 : vector<2x16x128xf32>
    %141 = vector.shape_cast %137 : vector<2x128xf32> to vector<2x1x128xf32>
    %142 = vector.broadcast %141 : vector<2x1x128xf32> to vector<2x16x128xf32>
    %143 = arith.addf %140, %142 : vector<2x16x128xf32>
    %144 = vector.shape_cast %143 : vector<2x16x128xf32> to vector<32x128xf32>
    %cst_60 = arith.constant 0.000000e+00 : f32
    %145 = vector.broadcast %cst_60 : f32 to vector<32x128xf32>
    %146 = arith.maximumf %144, %145 : vector<32x128xf32>
    %cst_61 = arith.constant dense<0.000000e+00> : vector<32x512xf32>
    %147 = tpu.matmul %146, %11, %cst_61 {dimension_numbers = #tpu.dot_dimension_numbers<[1], [0], [0], [1], [0, 0, 1, 1], [], []>} : vector<32x128xf32>, vector<128x512xf32>, vector<32x512xf32> -> vector<32x512xf32>
    %148 = vector.broadcast %14 : vector<1x512xf32> to vector<32x512xf32>
    %149 = arith.addf %147, %148 : vector<32x512xf32>
    %150 = vector.shape_cast %149 : vector<32x512xf32> to vector<2x16x512xf32>
    %cst_62 = arith.constant dense<0.000000e+00> : vector<2x512xf32>
    %151 = vector.multi_reduction <add>, %150, %cst_62 [1] : vector<2x16x512xf32> to vector<2x512xf32>
    %152 = arith.mulf %150, %150 : vector<2x16x512xf32>
    %cst_63 = arith.constant dense<0.000000e+00> : vector<2x512xf32>
    %153 = vector.multi_reduction <add>, %152, %cst_63 [1] : vector<2x16x512xf32> to vector<2x512xf32>
    %cst_64 = arith.constant dense<0.000000e+00> : vector<2x4xf32>
    %154 = tpu.matmul %151, %12, %cst_64 {dimension_numbers = #tpu.dot_dimension_numbers<[1], [1], [0], [0], [0, 0, 1, 0], [], []>} : vector<2x512xf32>, vector<4x512xf32>, vector<2x4xf32> -> vector<2x4xf32>
    %cst_65 = arith.constant dense<0.000000e+00> : vector<2x4xf32>
    %155 = tpu.matmul %153, %12, %cst_65 {dimension_numbers = #tpu.dot_dimension_numbers<[1], [1], [0], [0], [0, 0, 1, 0], [], []>} : vector<2x512xf32>, vector<4x512xf32>, vector<2x4xf32> -> vector<2x4xf32>
    %cst_66 = arith.constant dense<0.000000e+00> : vector<2x512xf32>
    %156 = tpu.matmul %154, %12, %cst_66 {dimension_numbers = #tpu.dot_dimension_numbers<[1], [0], [0], [1], [0, 0, 1, 1], [], []>} : vector<2x4xf32>, vector<4x512xf32>, vector<2x512xf32> -> vector<2x512xf32>
    %cst_67 = arith.constant dense<0.000000e+00> : vector<2x512xf32>
    %157 = tpu.matmul %155, %12, %cst_67 {dimension_numbers = #tpu.dot_dimension_numbers<[1], [0], [0], [1], [0, 0, 1, 1], [], []>} : vector<2x4xf32>, vector<4x512xf32>, vector<2x512xf32> -> vector<2x512xf32>
    %cst_68 = arith.constant 4.8828125E-4 : f32
    %158 = vector.broadcast %cst_68 : f32 to vector<2x512xf32>
    %159 = arith.mulf %156, %158 : vector<2x512xf32>
    %cst_69 = arith.constant 4.8828125E-4 : f32
    %160 = vector.broadcast %cst_69 : f32 to vector<2x512xf32>
    %161 = arith.mulf %157, %160 : vector<2x512xf32>
    %162 = arith.mulf %159, %159 : vector<2x512xf32>
    %163 = arith.subf %161, %162 : vector<2x512xf32>
    %cst_70 = arith.constant 0.000000e+00 : f32
    %164 = vector.broadcast %cst_70 : f32 to vector<2x512xf32>
    %165 = arith.maximumf %163, %164 : vector<2x512xf32>
    %cst_71 = arith.constant 9.99999974E-6 : f32
    %166 = vector.broadcast %cst_71 : f32 to vector<2x512xf32>
    %167 = arith.addf %165, %166 : vector<2x512xf32>
    %168 = math.rsqrt %167 : vector<2x512xf32>
    %169 = vector.broadcast %15 : vector<1x512xf32> to vector<2x512xf32>
    %170 = arith.mulf %168, %169 : vector<2x512xf32>
    %171 = arith.mulf %159, %170 : vector<2x512xf32>
    %172 = vector.broadcast %16 : vector<1x512xf32> to vector<2x512xf32>
    %173 = arith.subf %172, %171 : vector<2x512xf32>
    %174 = vector.shape_cast %170 : vector<2x512xf32> to vector<2x1x512xf32>
    %175 = vector.broadcast %174 : vector<2x1x512xf32> to vector<2x16x512xf32>
    %176 = arith.mulf %150, %175 : vector<2x16x512xf32>
    %177 = vector.shape_cast %173 : vector<2x512xf32> to vector<2x1x512xf32>
    %178 = vector.broadcast %177 : vector<2x1x512xf32> to vector<2x16x512xf32>
    %179 = arith.addf %176, %178 : vector<2x16x512xf32>
    %180 = vector.shape_cast %179 : vector<2x16x512xf32> to vector<32x512xf32>
    %cst_72 = arith.constant 0.000000e+00 : f32
    %181 = vector.broadcast %cst_72 : f32 to vector<32x512xf32>
    %182 = arith.maximumf %180, %181 : vector<32x512xf32>
    %183 = arith.addf %1, %182 : vector<32x512xf32>
    %cst_73 = arith.constant 0.000000e+00 : f32
    %184 = vector.broadcast %cst_73 : f32 to vector<32x512xf32>
    %185 = arith.maximumf %183, %184 : vector<32x512xf32>
    %186 = vector.shape_cast %185 : vector<32x512xf32> to vector<2x16x512xf32>
    %c0_74 = arith.constant 0 : index
    %c0_75 = arith.constant 0 : index
    %c0_76 = arith.constant 0 : index
    %187 = vector.load %arg4[%c0_74, %c0_75, %c0_76] : memref<2x16x512xf32, #tpu.memory_space<vmem>>, vector<2x16x512xf32>
    tpu.vector_store %arg4[%c0_74, %c0_75, %c0_76], %186 {strides = array<i32>} : memref<2x16x512xf32, #tpu.memory_space<vmem>>, vector<2x16x512xf32>,
    return
  }
  func.func @transform_0(%arg0: i32) -> (i32, i32, i32) {
    %c0_i32 = arith.constant 0 : i32
    %c0_i32_0 = arith.constant 0 : i32
    %c0_i32_1 = arith.constant 0 : i32
    %c0_i32_2 = arith.constant 0 : i32
    return %c0_i32, %c0_i32_0, %c0_i32_1 : i32, i32, i32
  }
  func.func @transform_1(%arg0: i32) -> (i32, i32) {
    %c0_i32 = arith.constant 0 : i32
    %c0_i32_0 = arith.constant 0 : i32
    %c0_i32_1 = arith.constant 0 : i32
    return %c0_i32, %c0_i32_0 : i32, i32
  }
  func.func @transform_2(%arg0: i32) -> (i32, i32) {
    %c0_i32 = arith.constant 0 : i32
    %c0_i32_0 = arith.constant 0 : i32
    %c0_i32_1 = arith.constant 0 : i32
    return %c0_i32, %c0_i32_0 : i32, i32
  }
  func.func @transform_3(%arg0: i32) -> (i32, i32, i32) {
    %c0_i32 = arith.constant 0 : i32
    %c0_i32_0 = arith.constant 0 : i32
    %c0_i32_1 = arith.constant 0 : i32
    %c0_i32_2 = arith.constant 0 : i32
    return %c0_i32, %c0_i32_0, %c0_i32_1 : i32, i32, i32
  }
}

</mosaic_0001>

<llo_original>
// kernel: tpu_custom_call.1
$region0: #{tpu_custom_call.1}
  #allocation0 [shape = 'u32[]', space=smem, size = 0x4, offset = 0x4, fixed_abs, tag = 'smem constant byte address 0x4 - core index']
  #allocation1 [shape = 'u32[144,128]{1,0:T(1,128)}', space=vmem, size = 0x12000, scoped, tag = 'internal scratch']
  %s0 = inlined_call_operand.hbm [shape: f32[2,16,512], index: 0, kind: input, shape index: {}]
  %s1 = inlined_call_operand.hbm [shape: f32[1678,128], index: 1, kind: input, shape index: {}]
  %s2 = inlined_call_operand.hbm [shape: f32[139,512], index: 2, kind: input, shape index: {}]
  %s3 = inlined_call_operand.hbm [shape: f32[2,16,512], index: 3, kind: output, shape index: {}]
  %s4 = sld [smem:[#allocation0]]
  $region34: #{tpu_custom_call.1} parent=0
    _
  %s6 = ssub.s32 1, %s4
  %s7 = scalar_select 0, %s6, %s4
  $region1: #{tpu_custom_call.1} parent=0
    #allocation2 [shape = 'u8[65536]{0}', space=vmem, size = 0x10000, scoped, tag = 'input window, operand 0, single buffered']
    #allocation3 [shape = 's32[1]{0}', space=sflag, size = 0x4, scoped, tag = 'scoped memory for tpu_custom_call.1']
    #allocation4 [shape = 's32[1]{0}', space=sflag, size = 0x4, scoped, tag = 'scoped memory for tpu_custom_call.1']
    #allocation5 [shape = 'u8[860160]{0}', space=vmem, size = 0xd2000, scoped, tag = 'input window, operand 1, single buffered']
    #allocation6 [shape = 's32[1]{0}', space=sflag, size = 0x4, scoped, tag = 'scoped memory for tpu_custom_call.1']
    #allocation7 [shape = 'u8[294912]{0}', space=vmem, size = 0x48000, scoped, tag = 'input window, operand 2, single buffered']
    #allocation8 [shape = 'u8[65536]{0}', space=vmem, size = 0x10000, scoped, tag = 'output window, operand 0, single buffered']
    %8 = vsyncpa [#allocation3], 0
    %9 = vsyncpa [#allocation6], 0
    %10 = vsyncpa [#allocation4], 0
    // Predicated region
    $region2: #{tpu_custom_call.1} parent=1 // pred_check
      _
    $region3: #{tpu_custom_call.1} parent=1 // pred_check_branch
      %12 = sbr.rel (0) target = $region5
    $region4: #{tpu_custom_call.1} parent=1 // pred_region
      %s14 = ssub.s32 2048, 2048
      %15 = vsyncadd [#allocation3], %s14
      %s16 = sshll.u32 [#allocation2], 4
      %s17 = int_to_ptr.vmem [resolvable:$true] %s16
      %22 = dma.hbm_to_vmem [thread:$0]  %s0, 2048, %s17, [#allocation3], 512, 512, 32
    $region5: #{tpu_custom_call.1} parent=1 // pred_fallthru
      _
    // Predicated region
    $region6: #{tpu_custom_call.1} parent=1 // pred_check
      _
    $region7: #{tpu_custom_call.1} parent=1 // pred_check_branch
      %24 = sbr.rel (0) target = $region9
    $region8: #{tpu_custom_call.1} parent=1 // pred_region
      %s26 = ssub.s32 26880, 26880
      %27 = vsyncadd [#allocation6], %s26
      %s28 = sshll.u32 [#allocation5], 4
      %s29 = int_to_ptr.vmem [resolvable:$true] %s28
      %34 = dma.hbm_to_vmem [thread:$0]  %s1, 26880, %s29, [#allocation6], 128, 128, 8
    $region9: #{tpu_custom_call.1} parent=1 // pred_fallthru
      _
    // Predicated region
    $region10: #{tpu_custom_call.1} parent=1 // pred_check
      _
    $region11: #{tpu_custom_call.1} parent=1 // pred_check_branch
      %36 = sbr.rel (0) target = $region13
    $region12: #{tpu_custom_call.1} parent=1 // pred_region
      %s38 = ssub.s32 9216, 9216
      %39 = vsyncadd [#allocation6], %s38
      %s40 = sshll.u32 [#allocation7], 4
      %s41 = int_to_ptr.vmem [resolvable:$true] %s40
      %46 = dma.hbm_to_vmem [thread:$0]  %s2, 9216, %s41, [#allocation6], 512, 512, 32
    $region13: #{tpu_custom_call.1} parent=1 // pred_fallthru
      _
    // Predicated region
    $region14: #{tpu_custom_call.1} parent=1 // pred_check
      _
    $region15: #{tpu_custom_call.1} parent=1 // pred_check_branch
      %48 = sbr.rel (0) target = $region17
    $region16: #{tpu_custom_call.1} parent=1 // pred_region
      %49 = dma.done [#allocation3], 2048
    $region17: #{tpu_custom_call.1} parent=1 // pred_fallthru
      _
    // Predicated region
    $region18: #{tpu_custom_call.1} parent=1 // pred_check
      _
    $region19: #{tpu_custom_call.1} parent=1 // pred_check_branch
      %51 = sbr.rel (0) target = $region21
    $region20: #{tpu_custom_call.1} parent=1 // pred_region
      %52 = dma.done [#allocation6], 26880
    $region21: #{tpu_custom_call.1} parent=1 // pred_fallthru
      _
    // Predicated region
    $region22: #{tpu_custom_call.1} parent=1 // pred_check
      _
    $region23: #{tpu_custom_call.1} parent=1 // pred_check_branch
      %54 = sbr.rel (0) target = $region25
    $region24: #{tpu_custom_call.1} parent=1 // pred_region
      %55 = dma.done [#allocation6], 9216
    $region25: #{tpu_custom_call.1} parent=1 // pred_fallthru
      _
    %v56 = vld [vmem:[#allocation2] sm:$0xff]
    %v57 = vld [vmem:[#allocation2 + $0x8] sm:$0xff]
    %v58 = vld [vmem:[#allocation2 + $0x10] sm:$0xff]
    %v59 = vld [vmem:[#allocation2 + $0x18] sm:$0xff]
    %v60 = vld [vmem:[#allocation2 + $0x20] sm:$0xff]
    %v61 = vld [vmem:[#allocation2 + $0x28] sm:$0xff]
    %v62 = vld [vmem:[#allocation2 + $0x30] sm:$0xff]
    %v63 = vld [vmem:[#allocation2 + $0x38] sm:$0xff]
    %v64 = vld [vmem:[#allocation2 + $0x40] sm:$0xff]
    %v65 = vld [vmem:[#allocation2 + $0x48] sm:$0xff]
    %v66 = vld [vmem:[#allocation2 + $0x50] sm:$0xff]
    %v67 = vld [vmem:[#allocation2 + $0x58] sm:$0xff]
    %v68 = vld [vmem:[#allocation2 + $0x60] sm:$0xff]
    %v69 = vld [vmem:[#allocation2 + $0x68] sm:$0xff]
    %v70 = vld [vmem:[#allocation2 + $0x70] sm:$0xff]
    %v71 = vld [vmem:[#allocation2 + $0x78] sm:$0xff]
    %v72 = vld [vmem:[#allocation5] sm:$0xff]
    %v73 = vld [vmem:[#allocation5 + $0x8] sm:$0xff]
    %v74 = vld [vmem:[#allocation5 + $0x10] sm:$0xff]
    %v75 = vld [vmem:[#allocation5 + $0x18] sm:$0xff]
    %v76 = vld [vmem:[#allocation5 + $0x20] sm:$0xff]
    %v77 = vld [vmem:[#allocation5 + $0x28] sm:$0xff]
    %v78 = vld [vmem:[#allocation5 + $0x30] sm:$0xff]
    %v79 = vld [vmem:[#allocation5 + $0x38] sm:$0xff]
    %v80 = vld [vmem:[#allocation5 + $0x40] sm:$0xff]
    %v81 = vld [vmem:[#allocation5 + $0x48] sm:$0xff]
    %v82 = vld [vmem:[#allocation5 + $0x50] sm:$0xff]
    %v83 = vld [vmem:[#allocation5 + $0x58] sm:$0xff]
    %v84 = vld [vmem:[#allocation5 + $0x60] sm:$0xff]
    %v85 = vld [vmem:[#allocation5 + $0x68] sm:$0xff]
    %v86 = vld [vmem:[#allocation5 + $0x70] sm:$0xff]
    %v87 = vld [vmem:[#allocation5 + $0x78] sm:$0xff]
    %v88 = vld [vmem:[#allocation5 + $0x80] sm:$0xff]
    %v89 = vld [vmem:[#allocation5 + $0x88] sm:$0xff]
    %v90 = vld [vmem:[#allocation5 + $0x90] sm:$0xff]
    %v91 = vld [vmem:[#allocation5 + $0x98] sm:$0xff]
    %v92 = vld [vmem:[#allocation5 + $0xa0] sm:$0xff]
    %v93 = vld [vmem:[#allocation5 + $0xa8] sm:$0xff]
    %v94 = vld [vmem:[#allocation5 + $0xb0] sm:$0xff]
    %v95 = vld [vmem:[#allocation5 + $0xb8] sm:$0xff]
    %v96 = vld [vmem:[#allocation5 + $0xc0] sm:$0xff]
    %v97 = vld [vmem:[#allocation5 + $0xc8] sm:$0xff]
    %v98 = vld [vmem:[#allocation5 + $0xd0] sm:$0xff]
    %v99 = vld [vmem:[#allocation5 + $0xd8] sm:$0xff]
    %v100 = vld [vmem:[#allocation5 + $0xe0] sm:$0xff]
    %v101 = vld [vmem:[#allocation5 + $0xe8] sm:$0xff]
    %v102 = vld [vmem:[#allocation5 + $0xf0] sm:$0xff]
    %v103 = vld [vmem:[#allocation5 + $0xf8] sm:$0xff]
    %v104 = vld [vmem:[#allocation5 + $0x100] sm:$0xff]
    %v105 = vld [vmem:[#allocation5 + $0x108] sm:$0xff]
    %v106 = vld [vmem:[#allocation5 + $0x110] sm:$0xff]
    %v107 = vld [vmem:[#allocation5 + $0x118] sm:$0xff]
    %v108 = vld [vmem:[#allocation5 + $0x120] sm:$0xff]
    %v109 = vld [vmem:[#allocation5 + $0x128] sm:$0xff]
    %v110 = vld [vmem:[#allocation5 + $0x130] sm:$0xff]
    %v111 = vld [vmem:[#allocation5 + $0x138] sm:$0xff]
    %v112 = vld [vmem:[#allocation5 + $0x140] sm:$0xff]
    %v113 = vld [vmem:[#allocation5 + $0x148] sm:$0xff]
    %v114 = vld [vmem:[#allocation5 + $0x150] sm:$0xff]
    %v115 = vld [vmem:[#allocation5 + $0x158] sm:$0xff]
    %v116 = vld [vmem:[#allocation5 + $0x160] sm:$0xff]
    %v117 = vld [vmem:[#allocation5 + $0x168] sm:$0xff]
    %v118 = vld [vmem:[#allocation5 + $0x170] sm:$0xff]
    %v119 = vld [vmem:[#allocation5 + $0x178] sm:$0xff]
    %v120 = vld [vmem:[#allocation5 + $0x180] sm:$0xff]
    %v121 = vld [vmem:[#allocation5 + $0x188] sm:$0xff]
    %v122 = vld [vmem:[#allocation5 + $0x190] sm:$0xff]
    %v123 = vld [vmem:[#allocation5 + $0x198] sm:$0xff]
    %v124 = vld [vmem:[#allocation5 + $0x1a0] sm:$0xff]
    %v125 = vld [vmem:[#allocation5 + $0x1a8] sm:$0xff]
    %v126 = vld [vmem:[#allocation5 + $0x1b0] sm:$0xff]
    %v127 = vld [vmem:[#allocation5 + $0x1b8] sm:$0xff]
    %v128 = vld [vmem:[#allocation5 + $0x1c0] sm:$0xff]
    %v129 = vld [vmem:[#allocation5 + $0x1c8] sm:$0xff]
    %v130 = vld [vmem:[#allocation5 + $0x1d0] sm:$0xff]
    %v131 = vld [vmem:[#allocation5 + $0x1d8] sm:$0xff]
    %v132 = vld [vmem:[#allocation5 + $0x1e0] sm:$0xff]
    %v133 = vld [vmem:[#allocation5 + $0x1e8] sm:$0xff]
    %v134 = vld [vmem:[#allocation5 + $0x1f0] sm:$0xff]
    %v135 = vld [vmem:[#allocation5 + $0x1f8] sm:$0xff]
    %v136 = vld [vmem:[#allocation5 + $0x680] sm:$0xf]
    %v137 = vld [vmem:[#allocation5 + $0x688] sm:$0x3f]
    %v138 = vld [vmem:[#allocation7] sm:$0xff]
    %v139 = vld [vmem:[#allocation7 + $0x8] sm:$0xff]
    %v140 = vld [vmem:[#allocation7 + $0x10] sm:$0xff]
    %v141 = vld [vmem:[#allocation7 + $0x18] sm:$0xff]
    %v142 = vld [vmem:[#allocation7 + $0x20] sm:$0xff]
    %v143 = vld [vmem:[#allocation7 + $0x28] sm:$0xff]
    %v144 = vld [vmem:[#allocation7 + $0x30] sm:$0xff]
    %v145 = vld [vmem:[#allocation7 + $0x38] sm:$0xff]
    %v146 = vld [vmem:[#allocation7 + $0x40] sm:$0xff]
    %v147 = vld [vmem:[#allocation7 + $0x48] sm:$0xff]
    %v148 = vld [vmem:[#allocation7 + $0x50] sm:$0xff]
    %v149 = vld [vmem:[#allocation7 + $0x58] sm:$0xff]
    %v150 = vld [vmem:[#allocation7 + $0x60] sm:$0xff]
    %v151 = vld [vmem:[#allocation7 + $0x68] sm:$0xff]
    %v152 = vld [vmem:[#allocation7 + $0x70] sm:$0xff]
    %v153 = vld [vmem:[#allocation7 + $0x78] sm:$0xff]
    %v154 = vld [vmem:[#allocation7 + $0x80] sm:$0xff]
    %v155 = vld [vmem:[#allocation7 + $0x88] sm:$0xff]
    %v156 = vld [vmem:[#allocation7 + $0x90] sm:$0xff]
    %v157 = vld [vmem:[#allocation7 + $0x98] sm:$0xff]
    %v158 = vld [vmem:[#allocation7 + $0xa0] sm:$0xff]
    %v159 = vld [vmem:[#allocation7 + $0xa8] sm:$0xff]
    %v160 = vld [vmem:[#allocation7 + $0xb0] sm:$0xff]
    %v161 = vld [vmem:[#allocation7 + $0xb8] sm:$0xff]
    %v162 = vld [vmem:[#allocation7 + $0xc0] sm:$0xff]
    %v163 = vld [vmem:[#allocation7 + $0xc8] sm:$0xff]
    %v164 = vld [vmem:[#allocation7 + $0xd0] sm:$0xff]
    %v165 = vld [vmem:[#allocation7 + $0xd8] sm:$0xff]
    %v166 = vld [vmem:[#allocation7 + $0xe0] sm:$0xff]
    %v167 = vld [vmem:[#allocation7 + $0xe8] sm:$0xff]
    %v168 = vld [vmem:[#allocation7 + $0xf0] sm:$0xff]
    %v169 = vld [vmem:[#allocation7 + $0xf8] sm:$0xff]
    %v170 = vld [vmem:[#allocation7 + $0x100] sm:$0xff]
    %v171 = vld [vmem:[#allocation7 + $0x108] sm:$0xff]
    %v172 = vld [vmem:[#allocation7 + $0x110] sm:$0xff]
    %v173 = vld [vmem:[#allocation7 + $0x118] sm:$0xff]
    %v174 = vld [vmem:[#allocation7 + $0x120] sm:$0xff]
    %v175 = vld [vmem:[#allocation7 + $0x128] sm:$0xff]
    %v176 = vld [vmem:[#allocation7 + $0x130] sm:$0xff]
    %v177 = vld [vmem:[#allocation7 + $0x138] sm:$0xff]
    %v178 = vld [vmem:[#allocation7 + $0x140] sm:$0xff]
    %v179 = vld [vmem:[#allocation7 + $0x148] sm:$0xff]
    %v180 = vld [vmem:[#allocation7 + $0x150] sm:$0xff]
    %v181 = vld [vmem:[#allocation7 + $0x158] sm:$0xff]
    %v182 = vld [vmem:[#allocation7 + $0x160] sm:$0xff]
    %v183 = vld [vmem:[#allocation7 + $0x168] sm:$0xff]
    %v184 = vld [vmem:[#allocation7 + $0x170] sm:$0xff]
    %v185 = vld [vmem:[#allocation7 + $0x178] sm:$0xff]
    %v186 = vld [vmem:[#allocation7 + $0x180] sm:$0xff]
    %v187 = vld [vmem:[#allocation7 + $0x188] sm:$0xff]
    %v188 = vld [vmem:[#allocation7 + $0x190] sm:$0xff]
    %v189 = vld [vmem:[#allocation7 + $0x198] sm:$0xff]
    %v190 = vld [vmem:[#allocation7 + $0x1a0] sm:$0xff]
    %v191 = vld [vmem:[#allocation7 + $0x1a8] sm:$0xff]
    %v192 = vld [vmem:[#allocation7 + $0x1b0] sm:$0xff]
    %v193 = vld [vmem:[#allocation7 + $0x1b8] sm:$0xff]
    %v194 = vld [vmem:[#allocation7 + $0x1c0] sm:$0xff]
    %v195 = vld [vmem:[#allocation7 + $0x1c8] sm:$0xff]
    %v196 = vld [vmem:[#allocation7 + $0x1d0] sm:$0xff]
    %v197 = vld [vmem:[#allocation7 + $0x1d8] sm:$0xff]
    %v198 = vld [vmem:[#allocation7 + $0x1e0] sm:$0xff]
    %v199 = vld [vmem:[#allocation7 + $0x1e8] sm:$0xff]
    %v200 = vld [vmem:[#allocation7 + $0x1f0] sm:$0xff]
    %v201 = vld [vmem:[#allocation7 + $0x1f8] sm:$0xff]
    %v202 = vld [vmem:[#allocation7 + $0x200] sm:$0xf]
    %v203 = vld [vmem:[#allocation7 + $0x208] sm:$0xf]
    %v204 = vld [vmem:[#allocation7 + $0x210] sm:$0xf]
    %v205 = vld [vmem:[#allocation7 + $0x218] sm:$0xf]
    %v206 = vld [vmem:[#allocation7 + $0x220] sm:$0x7]
    %v207 = vld [vmem:[#allocation7 + $0x228] sm:$0x7]
    %v208 = vld [vmem:[#allocation7 + $0x230] sm:$0x7]
    %v209 = vld [vmem:[#allocation7 + $0x238] sm:$0x7]
    %v210 = vlaneseq
    %v211 = vshrl.u32 %v210, 7
    %v212 = vsub.s32 0, %v211
    %v213 = vrot.slane %v137, %v212
    %214 = vmatprep.subr.mxu0 0.0
    %215 = vmatpush1.msra.mxu0 %v87
    %216 = vmatprep.subr.mxu0 0.0
    %217 = vmatpush1.msra.mxu0 %v86
    %218 = vmatprep.subr.mxu0 0.0
    %219 = vmatpush1.msra.mxu0 %v85
    %220 = vmatprep.subr.mxu0 0.0
    %221 = vmatpush1.msra.mxu0 %v84
    %222 = vmatprep.subr.mxu0 0.0
    %223 = vmatpush1.msra.mxu0 %v83
    %224 = vmatprep.subr.mxu0 0.0
    %225 = vmatpush1.msra.mxu0 %v82
    %226 = vmatprep.subr.mxu0 0.0
    %227 = vmatpush1.msra.mxu0 %v81
    %228 = vmatprep.subr.mxu0 0.0
    %229 = vmatpush1.msra.mxu0 %v80
    %230 = vmatprep.subr.mxu0 0.0
    %231 = vmatpush1.msra.mxu0 %v79
    %232 = vmatprep.subr.mxu0 0.0
    %233 = vmatpush1.msra.mxu0 %v78
    %234 = vmatprep.subr.mxu0 0.0
    %235 = vmatpush1.msra.mxu0 %v77
    %236 = vmatprep.subr.mxu0 0.0
    %237 = vmatpush1.msra.mxu0 %v76
    %238 = vmatprep.subr.mxu0 0.0
    %239 = vmatpush1.msra.mxu0 %v75
    %240 = vmatprep.subr.mxu0 0.0
    %241 = vmatpush1.msra.mxu0 %v74
    %242 = vmatprep.subr.mxu0 0.0
    %243 = vmatpush1.msra.mxu0 %v73
    %244 = vmatprep.subr.mxu0 0.0
    %245 = vmatpush1.msra.mxu0 %v72
    %246 = vmatprep.subr.mxu0 0.0
    %247 = vmatpush2.msra.mxu0 %v103
    %248 = vmatprep.subr.mxu0 0.0
    %249 = vmatpush2.msra.mxu0 %v102
    %250 = vmatprep.subr.mxu0 0.0
    %251 = vmatpush2.msra.mxu0 %v101
    %252 = vmatprep.subr.mxu0 0.0
    %253 = vmatpush2.msra.mxu0 %v100
    %254 = vmatprep.subr.mxu0 0.0
    %255 = vmatpush2.msra.mxu0 %v99
    %256 = vmatprep.subr.mxu0 0.0
    %257 = vmatpush2.msra.mxu0 %v98
    %258 = vmatprep.subr.mxu0 0.0
    %259 = vmatpush2.msra.mxu0 %v97
    %260 = vmatprep.subr.mxu0 0.0
    %261 = vmatpush2.msra.mxu0 %v96
    %262 = vmatprep.subr.mxu0 0.0
    %263 = vmatpush2.msra.mxu0 %v95
    %264 = vmatprep.subr.mxu0 0.0
    %265 = vmatpush2.msra.mxu0 %v94
    %266 = vmatprep.subr.mxu0 0.0
    %267 = vmatpush2.msra.mxu0 %v93
    %268 = vmatprep.subr.mxu0 0.0
    %269 = vmatpush2.msra.mxu0 %v92
    %270 = vmatprep.subr.mxu0 0.0
    %271 = vmatpush2.msra.mxu0 %v91
    %272 = vmatprep.subr.mxu0 0.0
    %273 = vmatpush2.msra.mxu0 %v90
    %274 = vmatprep.subr.mxu0 0.0
    %275 = vmatpush2.msra.mxu0 %v89
    %276 = vmatprep.subr.mxu0 0.0
    %277 = vmatpush2.msra.mxu0 %v88
    %278 = vmatprep.mubr.f32.mxu0 %v57
    %279 = vmatmul.mubr.f32.gmra.mxu0 %v56
    %v280 = vpop.f32.mrf.mxu0
    %v281 = vadd.f32 %v213, %v280
    %v282 = vpop.f32.mrf.mxu0
    %283 = vmatprep.mubr.f32.mxu0 %v61
    %284 = vmatmul.mubr.f32.gmra.mxu0 %v60
    %v285 = vpop.f32.mrf.mxu0
    %v286 = vadd.f32 %v213, %v285
    %v287 = vpop.f32.mrf.mxu0
    %288 = vmatprep.mubr.f32.mxu0 %v65
    %289 = vmatmul.mubr.f32.gmra.mxu0 %v64
    %v290 = vpop.f32.mrf.mxu0
    %v291 = vadd.f32 %v213, %v290
    %v292 = vpop.f32.mrf.mxu0
    %293 = vmatprep.mubr.f32.mxu0 %v69
    %294 = vmatmul.mubr.f32.gmra.mxu0 %v68
    %v295 = vpop.f32.mrf.mxu0
    %v296 = vadd.f32 %v213, %v295
    %v297 = vpop.f32.mrf.mxu0
    %298 = vdwg.mxu0
    %299 = vmatprep.subr.mxu0 0.0
    %300 = vmatpush1.msra.mxu0 %v119
    %301 = vmatprep.subr.mxu0 0.0
    %302 = vmatpush1.msra.mxu0 %v118
    %303 = vmatprep.subr.mxu0 0.0
    %304 = vmatpush1.msra.mxu0 %v117
    %305 = vmatprep.subr.mxu0 0.0
    %306 = vmatpush1.msra.mxu0 %v116
    %307 = vmatprep.subr.mxu0 0.0
    %308 = vmatpush1.msra.mxu0 %v115
    %309 = vmatprep.subr.mxu0 0.0
    %310 = vmatpush1.msra.mxu0 %v114
    %311 = vmatprep.subr.mxu0 0.0
    %312 = vmatpush1.msra.mxu0 %v113
    %313 = vmatprep.subr.mxu0 0.0
    %314 = vmatpush1.msra.mxu0 %v112
    %315 = vmatprep.subr.mxu0 0.0
    %316 = vmatpush1.msra.mxu0 %v111
    %317 = vmatprep.subr.mxu0 0.0
    %318 = vmatpush1.msra.mxu0 %v110
    %319 = vmatprep.subr.mxu0 0.0
    %320 = vmatpush1.msra.mxu0 %v109
    %321 = vmatprep.subr.mxu0 0.0
    %322 = vmatpush1.msra.mxu0 %v108
    %323 = vmatprep.subr.mxu0 0.0
    %324 = vmatpush1.msra.mxu0 %v107
    %325 = vmatprep.subr.mxu0 0.0
    %326 = vmatpush1.msra.mxu0 %v106
    %327 = vmatprep.subr.mxu0 0.0
    %328 = vmatpush1.msra.mxu0 %v105
    %329 = vmatprep.subr.mxu0 0.0
    %330 = vmatpush1.msra.mxu0 %v104
    %331 = vmatprep.subr.mxu0 0.0
    %332 = vmatpush2.msra.mxu0 %v135
    %333 = vmatprep.subr.mxu0 0.0
    %334 = vmatpush2.msra.mxu0 %v134
    %335 = vmatprep.subr.mxu0 0.0
    %336 = vmatpush2.msra.mxu0 %v133
    %337 = vmatprep.subr.mxu0 0.0
    %338 = vmatpush2.msra.mxu0 %v132
    %339 = vmatprep.subr.mxu0 0.0
    %340 = vmatpush2.msra.mxu0 %v131
    %341 = vmatprep.subr.mxu0 0.0
    %342 = vmatpush2.msra.mxu0 %v130
    %343 = vmatprep.subr.mxu0 0.0
    %344 = vmatpush2.msra.mxu0 %v129
    %345 = vmatprep.subr.mxu0 0.0
    %346 = vmatpush2.msra.mxu0 %v128
    %347 = vmatprep.subr.mxu0 0.0
    %348 = vmatpush2.msra.mxu0 %v127
    %349 = vmatprep.subr.mxu0 0.0
    %350 = vmatpush2.msra.mxu0 %v126
    %351 = vmatprep.subr.mxu0 0.0
    %352 = vmatpush2.msra.mxu0 %v125
    %353 = vmatprep.subr.mxu0 0.0
    %354 = vmatpush2.msra.mxu0 %v124
    %355 = vmatprep.subr.mxu0 0.0
    %356 = vmatpush2.msra.mxu0 %v123
    %357 = vmatprep.subr.mxu0 0.0
    %358 = vmatpush2.msra.mxu0 %v122
    %359 = vmatprep.subr.mxu0 0.0
    %360 = vmatpush2.msra.mxu0 %v121
    %361 = vmatprep.subr.mxu0 0.0
    %362 = vmatpush2.msra.mxu0 %v120
    %363 = vmatprep.mubr.f32.mxu0 %v59
    %364 = vmatmul.mubr.f32.gmra.mxu0 %v58
    %v365 = vpop.f32.mrf.mxu0
    %v366 = vadd.f32 %v281, %v365
    %v367 = vpop.f32.mrf.mxu0
    %368 = vmatprep.mubr.f32.mxu0 %v63
    %369 = vmatmul.mubr.f32.gmra.mxu0 %v62
    %v370 = vpop.f32.mrf.mxu0
    %v371 = vadd.f32 %v286, %v370
    %v372 = vpop.f32.mrf.mxu0
    %373 = vmatprep.mubr.f32.mxu0 %v67
    %374 = vmatmul.mubr.f32.gmra.mxu0 %v66
    %v375 = vpop.f32.mrf.mxu0
    %v376 = vadd.f32 %v291, %v375
    %v377 = vpop.f32.mrf.mxu0
    %378 = vmatprep.mubr.f32.mxu0 %v71
    %379 = vmatmul.mubr.f32.gmra.mxu0 %v70
    %v380 = vpop.f32.mrf.mxu0
    %v381 = vadd.f32 %v296, %v380
    %v382 = vpop.f32.mrf.mxu0
    %383 = vdwg.mxu0
    %v384 = vadd.f32 %v366, %v371
    %v385 = vrot.slane %v384, 4
    %v386 = vadd.f32 %v384, %v385
    %v387 = vrot.slane %v386, 2
    %v388 = vadd.f32 %v386, %v387
    %v389 = vrot.slane %v388, 1
    %v390 = vadd.f32 %v388, %v389
    %v391 = vadd.f32 %v376, %v381
    %v392 = vrot.slane %v391, 4
    %v393 = vadd.f32 %v391, %v392
    %v394 = vrot.slane %v393, 2
    %v395 = vadd.f32 %v393, %v394
    %v396 = vrot.slane %v395, 1
    %v397 = vadd.f32 %v395, %v396
    %v398 = vmul.f32 %v366, %v366
    %v399 = vmul.f32 %v371, %v371
    %v400 = vmul.f32 %v376, %v376
    %v401 = vmul.f32 %v381, %v381
    %v402 = vadd.f32 %v398, %v399
    %v403 = vrot.slane %v402, 4
    %v404 = vadd.f32 %v402, %v403
    %v405 = vrot.slane %v404, 2
    %v406 = vadd.f32 %v404, %v405
    %v407 = vrot.slane %v406, 1
    %v408 = vadd.f32 %v406, %v407
    %v409 = vadd.f32 %v400, %v401
    %v410 = vrot.slane %v409, 4
    %v411 = vadd.f32 %v409, %v410
    %v412 = vrot.slane %v411, 2
    %v413 = vadd.f32 %v411, %v412
    %v414 = vrot.slane %v413, 1
    %v415 = vadd.f32 %v413, %v414
    %vm418 = vcmask 1041409
    %v419 = vsel %vm418, %v397, %v390
    %421 = vmatprep.subr.mxu0 0.0
    %422 = vmatpush1.xpose.msra.mxu0 0.0
    %423 = vmatprep.subr.mxu0 0.0
    %424 = vmatpush1.xpose.msra.mxu0 0.0
    %425 = vmatprep.subr.mxu0 0.0
    %426 = vmatpush1.xpose.msra.mxu0 0.0
    %427 = vmatprep.subr.mxu0 0.0
    %428 = vmatpush1.xpose.msra.mxu0 0.0
    %429 = vmatprep.subr.mxu0 0.0
    %430 = vmatpush1.xpose.msra.mxu0 0.0
    %431 = vmatprep.subr.mxu0 0.0
    %432 = vmatpush1.xpose.msra.mxu0 0.0
    %433 = vmatprep.subr.mxu0 0.0
    %434 = vmatpush1.xpose.msra.mxu0 0.0
    %435 = vmatprep.subr.mxu0 0.0
    %436 = vmatpush1.xpose.msra.mxu0 0.0
    %437 = vmatprep.subr.mxu0 0.0
    %438 = vmatpush1.xpose.msra.mxu0 0.0
    %439 = vmatprep.subr.mxu0 0.0
    %440 = vmatpush1.xpose.msra.mxu0 0.0
    %441 = vmatprep.subr.mxu0 0.0
    %442 = vmatpush1.xpose.msra.mxu0 0.0
    %443 = vmatprep.subr.mxu0 0.0
    %444 = vmatpush1.xpose.msra.mxu0 0.0
    %445 = vmatprep.subr.mxu0 0.0
    %446 = vmatpush1.xpose.msra.mxu0 0.0
    %447 = vmatprep.subr.mxu0 0.0
    %448 = vmatpush1.xpose.msra.mxu0 0.0
    %449 = vmatprep.subr.mxu0 0.0
    %450 = vmatpush1.xpose.msra.mxu0 0.0
    %451 = vmatprep.subr.mxu0 0.0
    %452 = vmatpush1.xpose.msra.mxu0 %v136
    %453 = vmatprep.subr.mxu0 0.0
    %454 = vmatpush2.xpose.msra.mxu0 0.0
    %455 = vmatprep.subr.mxu0 0.0
    %456 = vmatpush2.xpose.msra.mxu0 0.0
    %457 = vmatprep.subr.mxu0 0.0
    %458 = vmatpush2.xpose.msra.mxu0 0.0
    %459 = vmatprep.subr.mxu0 0.0
    %460 = vmatpush2.xpose.msra.mxu0 0.0
    %461 = vmatprep.subr.mxu0 0.0
    %462 = vmatpush2.xpose.msra.mxu0 0.0
    %463 = vmatprep.subr.mxu0 0.0
    %464 = vmatpush2.xpose.msra.mxu0 0.0
    %465 = vmatprep.subr.mxu0 0.0
    %466 = vmatpush2.xpose.msra.mxu0 0.0
    %467 = vmatprep.subr.mxu0 0.0
    %468 = vmatpush2.xpose.msra.mxu0 0.0
    %469 = vmatprep.subr.mxu0 0.0
    %470 = vmatpush2.xpose.msra.mxu0 0.0
    %471 = vmatprep.subr.mxu0 0.0
    %472 = vmatpush2.xpose.msra.mxu0 0.0
    %473 = vmatprep.subr.mxu0 0.0
    %474 = vmatpush2.xpose.msra.mxu0 0.0
    %475 = vmatprep.subr.mxu0 0.0
    %476 = vmatpush2.xpose.msra.mxu0 0.0
    %477 = vmatprep.subr.mxu0 0.0
    %478 = vmatpush2.xpose.msra.mxu0 0.0
    %479 = vmatprep.subr.mxu0 0.0
    %480 = vmatpush2.xpose.msra.mxu0 0.0
    %481 = vmatprep.subr.mxu0 0.0
    %482 = vmatpush2.xpose.msra.mxu0 0.0
    %483 = vmatprep.subr.mxu0 0.0
    %484 = vmatpush2.xpose.msra.mxu0 0.0
    %485 = vmatprep.mubr.f32.mxu0 0.0
    %486 = vmatmul.mubr.f32.gmra.mxu0 %v419
    %v487 = vpop.f32.mrf.mxu0
    %v488 = vadd.f32 0.0, %v487
    %v489 = vpop.f32.mrf.mxu0
    %490 = vdwg.mxu0
    %v493 = vsel %vm418, %v415, %v408
    %495 = vmatprep.subr.mxu0 0.0
    %496 = vmatpush1.xpose.msra.mxu0 0.0
    %497 = vmatprep.subr.mxu0 0.0
    %498 = vmatpush1.xpose.msra.mxu0 0.0
    %499 = vmatprep.subr.mxu0 0.0
    %500 = vmatpush1.xpose.msra.mxu0 0.0
    %501 = vmatprep.subr.mxu0 0.0
    %502 = vmatpush1.xpose.msra.mxu0 0.0
    %503 = vmatprep.subr.mxu0 0.0
    %504 = vmatpush1.xpose.msra.mxu0 0.0
    %505 = vmatprep.subr.mxu0 0.0
    %506 = vmatpush1.xpose.msra.mxu0 0.0
    %507 = vmatprep.subr.mxu0 0.0
    %508 = vmatpush1.xpose.msra.mxu0 0.0
    %509 = vmatprep.subr.mxu0 0.0
    %510 = vmatpush1.xpose.msra.mxu0 0.0
    %511 = vmatprep.subr.mxu0 0.0
    %512 = vmatpush1.xpose.msra.mxu0 0.0
    %513 = vmatprep.subr.mxu0 0.0
    %514 = vmatpush1.xpose.msra.mxu0 0.0
    %515 = vmatprep.subr.mxu0 0.0
    %516 = vmatpush1.xpose.msra.mxu0 0.0
    %517 = vmatprep.subr.mxu0 0.0
    %518 = vmatpush1.xpose.msra.mxu0 0.0
    %519 = vmatprep.subr.mxu0 0.0
    %520 = vmatpush1.xpose.msra.mxu0 0.0
    %521 = vmatprep.subr.mxu0 0.0
    %522 = vmatpush1.xpose.msra.mxu0 0.0
    %523 = vmatprep.subr.mxu0 0.0
    %524 = vmatpush1.xpose.msra.mxu0 0.0
    %525 = vmatprep.subr.mxu0 0.0
    %526 = vmatpush1.xpose.msra.mxu0 %v136
    %527 = vmatprep.subr.mxu0 0.0
    %528 = vmatpush2.xpose.msra.mxu0 0.0
    %529 = vmatprep.subr.mxu0 0.0
    %530 = vmatpush2.xpose.msra.mxu0 0.0
    %531 = vmatprep.subr.mxu0 0.0
    %532 = vmatpush2.xpose.msra.mxu0 0.0
    %533 = vmatprep.subr.mxu0 0.0
    %534 = vmatpush2.xpose.msra.mxu0 0.0
    %535 = vmatprep.subr.mxu0 0.0
    %536 = vmatpush2.xpose.msra.mxu0 0.0
    %537 = vmatprep.subr.mxu0 0.0
    %538 = vmatpush2.xpose.msra.mxu0 0.0
    %539 = vmatprep.subr.mxu0 0.0
    %540 = vmatpush2.xpose.msra.mxu0 0.0
    %541 = vmatprep.subr.mxu0 0.0
    %542 = vmatpush2.xpose.msra.mxu0 0.0
    %543 = vmatprep.subr.mxu0 0.0
    %544 = vmatpush2.xpose.msra.mxu0 0.0
    %545 = vmatprep.subr.mxu0 0.0
    %546 = vmatpush2.xpose.msra.mxu0 0.0
    %547 = vmatprep.subr.mxu0 0.0
    %548 = vmatpush2.xpose.msra.mxu0 0.0
    %549 = vmatprep.subr.mxu0 0.0
    %550 = vmatpush2.xpose.msra.mxu0 0.0
    %551 = vmatprep.subr.mxu0 0.0
    %552 = vmatpush2.xpose.msra.mxu0 0.0
    %553 = vmatprep.subr.mxu0 0.0
    %554 = vmatpush2.xpose.msra.mxu0 0.0
    %555 = vmatprep.subr.mxu0 0.0
    %556 = vmatpush2.xpose.msra.mxu0 0.0
    %557 = vmatprep.subr.mxu0 0.0
    %558 = vmatpush2.xpose.msra.mxu0 0.0
    %559 = vmatprep.mubr.f32.mxu0 0.0
    %560 = vmatmul.mubr.f32.gmra.mxu0 %v493
    %v561 = vpop.f32.mrf.mxu0
    %v562 = vadd.f32 0.0, %v561
    %v563 = vpop.f32.mrf.mxu0
    %564 = vdwg.mxu0
    %vm565 = vcmask 31744
    %v567 = vsel %vm565, %v488, 0
    %vm569 = vcmask 1043456
    %v571 = vsel %vm569, %v136, 0
    %573 = vmatprep.subr.mxu0 0.0
    %574 = vmatpush1.msra.mxu0 0.0
    %575 = vmatprep.subr.mxu0 0.0
    %576 = vmatpush1.msra.mxu0 0.0
    %577 = vmatprep.subr.mxu0 0.0
    %578 = vmatpush1.msra.mxu0 0.0
    %579 = vmatprep.subr.mxu0 0.0
    %580 = vmatpush1.msra.mxu0 0.0
    %581 = vmatprep.subr.mxu0 0.0
    %582 = vmatpush1.msra.mxu0 0.0
    %583 = vmatprep.subr.mxu0 0.0
    %584 = vmatpush1.msra.mxu0 0.0
    %585 = vmatprep.subr.mxu0 0.0
    %586 = vmatpush1.msra.mxu0 0.0
    %587 = vmatprep.subr.mxu0 0.0
    %588 = vmatpush1.msra.mxu0 0.0
    %589 = vmatprep.subr.mxu0 0.0
    %590 = vmatpush1.msra.mxu0 0.0
    %591 = vmatprep.subr.mxu0 0.0
    %592 = vmatpush1.msra.mxu0 0.0
    %593 = vmatprep.subr.mxu0 0.0
    %594 = vmatpush1.msra.mxu0 0.0
    %595 = vmatprep.subr.mxu0 0.0
    %596 = vmatpush1.msra.mxu0 0.0
    %597 = vmatprep.subr.mxu0 0.0
    %598 = vmatpush1.msra.mxu0 0.0
    %599 = vmatprep.subr.mxu0 0.0
    %600 = vmatpush1.msra.mxu0 0.0
    %601 = vmatprep.subr.mxu0 0.0
    %602 = vmatpush1.msra.mxu0 0.0
    %603 = vmatprep.subr.mxu0 0.0
    %604 = vmatpush1.msra.mxu0 %v571
    %605 = vmatprep.subr.mxu0 0.0
    %606 = vmatpush2.msra.mxu0 0.0
    %607 = vmatprep.subr.mxu0 0.0
    %608 = vmatpush2.msra.mxu0 0.0
    %609 = vmatprep.subr.mxu0 0.0
    %610 = vmatpush2.msra.mxu0 0.0
    %611 = vmatprep.subr.mxu0 0.0
    %612 = vmatpush2.msra.mxu0 0.0
    %613 = vmatprep.subr.mxu0 0.0
    %614 = vmatpush2.msra.mxu0 0.0
    %615 = vmatprep.subr.mxu0 0.0
    %616 = vmatpush2.msra.mxu0 0.0
    %617 = vmatprep.subr.mxu0 0.0
    %618 = vmatpush2.msra.mxu0 0.0
    %619 = vmatprep.subr.mxu0 0.0
    %620 = vmatpush2.msra.mxu0 0.0
    %621 = vmatprep.subr.mxu0 0.0
    %622 = vmatpush2.msra.mxu0 0.0
    %623 = vmatprep.subr.mxu0 0.0
    %624 = vmatpush2.msra.mxu0 0.0
    %625 = vmatprep.subr.mxu0 0.0
    %626 = vmatpush2.msra.mxu0 0.0
    %627 = vmatprep.subr.mxu0 0.0
    %628 = vmatpush2.msra.mxu0 0.0
    %629 = vmatprep.subr.mxu0 0.0
    %630 = vmatpush2.msra.mxu0 0.0
    %631 = vmatprep.subr.mxu0 0.0
    %632 = vmatpush2.msra.mxu0 0.0
    %633 = vmatprep.subr.mxu0 0.0
    %634 = vmatpush2.msra.mxu0 0.0
    %635 = vmatprep.subr.mxu0 0.0
    %636 = vmatpush2.msra.mxu0 0.0
    %637 = vmatprep.mubr.f32.mxu0 0.0
    %638 = vmatmul.mubr.f32.gmra.mxu0 %v567
    %v639 = vpop.f32.mrf.mxu0
    %v640 = vadd.f32 0.0, %v639
    %v641 = vpop.f32.mrf.mxu0
    %642 = vdwg.mxu0
    %v644 = vsel %vm565, %v562, 0
    %646 = vmatprep.subr.mxu0 0.0
    %647 = vmatpush1.msra.mxu0 0.0
    %648 = vmatprep.subr.mxu0 0.0
    %649 = vmatpush1.msra.mxu0 0.0
    %650 = vmatprep.subr.mxu0 0.0
    %651 = vmatpush1.msra.mxu0 0.0
    %652 = vmatprep.subr.mxu0 0.0
    %653 = vmatpush1.msra.mxu0 0.0
    %654 = vmatprep.subr.mxu0 0.0
    %655 = vmatpush1.msra.mxu0 0.0
    %656 = vmatprep.subr.mxu0 0.0
    %657 = vmatpush1.msra.mxu0 0.0
    %658 = vmatprep.subr.mxu0 0.0
    %659 = vmatpush1.msra.mxu0 0.0
    %660 = vmatprep.subr.mxu0 0.0
    %661 = vmatpush1.msra.mxu0 0.0
    %662 = vmatprep.subr.mxu0 0.0
    %663 = vmatpush1.msra.mxu0 0.0
    %664 = vmatprep.subr.mxu0 0.0
    %665 = vmatpush1.msra.mxu0 0.0
    %666 = vmatprep.subr.mxu0 0.0
    %667 = vmatpush1.msra.mxu0 0.0
    %668 = vmatprep.subr.mxu0 0.0
    %669 = vmatpush1.msra.mxu0 0.0
    %670 = vmatprep.subr.mxu0 0.0
    %671 = vmatpush1.msra.mxu0 0.0
    %672 = vmatprep.subr.mxu0 0.0
    %673 = vmatpush1.msra.mxu0 0.0
    %674 = vmatprep.subr.mxu0 0.0
    %675 = vmatpush1.msra.mxu0 0.0
    %676 = vmatprep.subr.mxu0 0.0
    %677 = vmatpush1.msra.mxu0 %v571
    %678 = vmatprep.subr.mxu0 0.0
    %679 = vmatpush2.msra.mxu0 0.0
    %680 = vmatprep.subr.mxu0 0.0
    %681 = vmatpush2.msra.mxu0 0.0
    %682 = vmatprep.subr.mxu0 0.0
    %683 = vmatpush2.msra.mxu0 0.0
    %684 = vmatprep.subr.mxu0 0.0
    %685 = vmatpush2.msra.mxu0 0.0
    %686 = vmatprep.subr.mxu0 0.0
    %687 = vmatpush2.msra.mxu0 0.0
    %688 = vmatprep.subr.mxu0 0.0
    %689 = vmatpush2.msra.mxu0 0.0
    %690 = vmatprep.subr.mxu0 0.0
    %691 = vmatpush2.msra.mxu0 0.0
    %692 = vmatprep.subr.mxu0 0.0
    %693 = vmatpush2.msra.mxu0 0.0
    %694 = vmatprep.subr.mxu0 0.0
    %695 = vmatpush2.msra.mxu0 0.0
    %696 = vmatprep.subr.mxu0 0.0
    %697 = vmatpush2.msra.mxu0 0.0
    %698 = vmatprep.subr.mxu0 0.0
    %699 = vmatpush2.msra.mxu0 0.0
    %700 = vmatprep.subr.mxu0 0.0
    %701 = vmatpush2.msra.mxu0 0.0
    %702 = vmatprep.subr.mxu0 0.0
    %703 = vmatpush2.msra.mxu0 0.0
    %704 = vmatprep.subr.mxu0 0.0
    %705 = vmatpush2.msra.mxu0 0.0
    %706 = vmatprep.subr.mxu0 0.0
    %707 = vmatpush2.msra.mxu0 0.0
    %708 = vmatprep.subr.mxu0 0.0
    %709 = vmatpush2.msra.mxu0 0.0
    %710 = vmatprep.mubr.f32.mxu0 0.0
    %711 = vmatmul.mubr.f32.gmra.mxu0 %v644
    %v712 = vpop.f32.mrf.mxu0
    %v713 = vadd.f32 0.0, %v712
    %v714 = vpop.f32.mrf.mxu0
    %715 = vdwg.mxu0
    %v716 = vmul.f32 %v640, 0.001953125
    %v717 = vmul.f32 %v713, 0.001953125
    %v718 = vmul.f32 %v716, %v716
    %v719 = vsub.f32 %v717, %v718
    %v720 = vmax.f32 %v719, 0.0
    %v721 = vadd.f32 %v720, 1e-05
    %v722 = vrsqrt.pop %v721
    %v723 = vlaneseq
    %v724 = vshrl.u32 %v723, 7
    %v725 = vsub.s32 1, %v724
    %v726 = vrot.slane %v137, %v725
    %v727 = vmul.f32 %v722, %v726
    %v728 = vmul.f32 %v716, %v727
    %v729 = vlaneseq
    %v730 = vshrl.u32 %v729, 7
    %v731 = vsub.s32 2, %v730
    %v732 = vrot.slane %v137, %v731
    %v733 = vsub.f32 %v732, %v728
    %v736 = vunpack.c.l.s4 1966171168
    %v737 = vunpack.c.0.s8 %v736
    %v738 = vlaneseq
    %v739 = vshrl.u32 %v738, 7
    %v740 = vsub.s32 %v737, %v739
    %v741 = vrot.slane %v727, %v740
    %v742 = vcombine.high %v741, %v741
    %v744 = vunpack.c.l.s4 1966171168
    %v745 = vunpack.c.0.s8 %v744
    %v746 = vlaneseq
    %v747 = vshrl.u32 %v746, 7
    %v748 = vsub.s32 %v745, %v747
    %v749 = vrot.slane %v741, %v748
    %v751 = vunpack.c.l.s4 1966171168
    %v752 = vunpack.c.0.s8 %v751
    %v753 = vlaneseq
    %v754 = vshrl.u32 %v753, 7
    %v755 = vsub.s32 %v752, %v754
    %v756 = vrot.slane %v742, %v755
    %v757 = vlaneseq
    %v758 = vshrl.u32 %v757, 7
    %v759 = vsub.s32 0, %v758
    %v760 = vrot.slane %v749, %v759
    %v761 = vlaneseq
    %v762 = vshrl.u32 %v761, 7
    %v763 = vsub.s32 0, %v762
    %v764 = vrot.slane %v756, %v763
    %v767 = vmul.f32 %v366, %v760
    %v768 = vmul.f32 %v371, %v760
    %v769 = vmul.f32 %v376, %v764
    %v770 = vmul.f32 %v381, %v764
    %v773 = vunpack.c.l.s4 1966171168
    %v774 = vunpack.c.0.s8 %v773
    %v775 = vlaneseq
    %v776 = vshrl.u32 %v775, 7
    %v777 = vsub.s32 %v774, %v776
    %v778 = vrot.slane %v733, %v777
    %v779 = vcombine.high %v778, %v778
    %v781 = vunpack.c.l.s4 1966171168
    %v782 = vunpack.c.0.s8 %v781
    %v783 = vlaneseq
    %v784 = vshrl.u32 %v783, 7
    %v785 = vsub.s32 %v782, %v784
    %v786 = vrot.slane %v778, %v785
    %v788 = vunpack.c.l.s4 1966171168
    %v789 = vunpack.c.0.s8 %v788
    %v790 = vlaneseq
    %v791 = vshrl.u32 %v790, 7
    %v792 = vsub.s32 %v789, %v791
    %v793 = vrot.slane %v779, %v792
    %v794 = vlaneseq
    %v795 = vshrl.u32 %v794, 7
    %v796 = vsub.s32 0, %v795
    %v797 = vrot.slane %v786, %v796
    %v798 = vlaneseq
    %v799 = vshrl.u32 %v798, 7
    %v800 = vsub.s32 0, %v799
    %v801 = vrot.slane %v793, %v800
    %v804 = vadd.f32 %v767, %v797
    %v805 = vadd.f32 %v768, %v797
    %v806 = vadd.f32 %v769, %v801
    %v807 = vadd.f32 %v770, %v801
    %v808 = vmax.f32 %v804, 0.0
    %v809 = vmax.f32 %v805, 0.0
    %v810 = vmax.f32 %v806, 0.0
    %v811 = vmax.f32 %v807, 0.0
    %v812 = vlaneseq
    %v813 = vshrl.u32 %v812, 7
    %v814 = vadd.s32 %v813, 8
    %v815 = vadd.s32 %v813, 16
    %v816 = vadd.s32 %v813, 24
    %vm817 = vcmp.lt.s32.totalorder %v813, 0
    %v818 = vsub.s32 0, %v813
    %v819 = vsel %vm817, %v818, %v813
    %v820 = vshrl.u32 %v819, 4
    %v821 = vand.u32 %v819, 15
    %v822 = vsub.s32 0, %v821
    %v823 = vsel %vm817, %v822, %v821
    %vm824 = vcmp.lt.s32.totalorder %v814, 0
    %v825 = vsub.s32 0, %v814
    %v826 = vsel %vm824, %v825, %v814
    %v827 = vshrl.u32 %v826, 4
    %v828 = vand.u32 %v826, 15
    %v829 = vsub.s32 0, %v828
    %v830 = vsel %vm824, %v829, %v828
    %vm831 = vcmp.lt.s32.totalorder %v815, 0
    %v832 = vsub.s32 0, %v815
    %v833 = vsel %vm831, %v832, %v815
    %v834 = vshrl.u32 %v833, 4
    %v835 = vand.u32 %v833, 15
    %v836 = vsub.s32 0, %v835
    %v837 = vsel %vm831, %v836, %v835
    %vm838 = vcmp.lt.s32.totalorder %v816, 0
    %v839 = vsub.s32 0, %v816
    %v840 = vsel %vm838, %v839, %v816
    %v841 = vshrl.u32 %v840, 4
    %v842 = vand.u32 %v840, 15
    %v843 = vsub.s32 0, %v842
    %v844 = vsel %vm838, %v843, %v842
    %vm845 = vcmp.ne.s32.totalorder %v823, 0
    %vm846 = vcmp.ne.s32.totalorder %v830, 0
    %vm847 = vcmp.ne.s32.totalorder %v837, 0
    %vm848 = vcmp.ne.s32.totalorder %v844, 0
    %vm849 = vcmp.lt.s32.totalorder %v823, 0
    %vm850 = vcmp.lt.s32.totalorder %v830, 0
    %vm851 = vcmp.lt.s32.totalorder %v837, 0
    %vm852 = vcmp.lt.s32.totalorder %v844, 0
    %vm853 = vmand %vm849, %vm845
    %vm854 = vmand %vm850, %vm846
    %vm855 = vmand %vm851, %vm847
    %vm856 = vmand %vm852, %vm848
    %v857 = vadd.s32 %v823, 16
    %v858 = vadd.s32 %v830, 16
    %v859 = vadd.s32 %v837, 16
    %v860 = vadd.s32 %v844, 16
    %v861 = vsel %vm853, %v857, %v823
    %v862 = vsel %vm854, %v858, %v830
    %v863 = vsel %vm855, %v859, %v837
    %v864 = vsel %vm856, %v860, %v844
    %vm865 = vcmp.eq.s32.totalorder %v861, 0
    %vm866 = vcmp.eq.s32.totalorder %v862, 0
    %vm867 = vcmp.eq.s32.totalorder %v863, 0
    %vm868 = vcmp.eq.s32.totalorder %v864, 0
    %v869 = vrot.slane %v808, 7
    %v870 = vrot.slane %v809, 7
    %v871 = vrot.slane %v810, 7
    %v872 = vrot.slane %v811, 7
    %vm873 = vcmp.lt.s32.totalorder %v813, 1
    %v874 = vsel %vm873, %v871, %v872
    %v875 = vsel %vm873, %v870, %v871
    %v876 = vsel %vm873, %v869, %v870
    %v877 = vsel %vm873, %v872, %v869
    %v878 = vsel %vm865, 0.0, %v877
    %v879 = vsel %vm866, 0.0, %v876
    %v880 = vsel %vm867, 0.0, %v875
    %v881 = vsel %vm868, 0.0, %v874
    %vm882 = vcmp.eq.s32.totalorder %v861, 15
    %vm883 = vcmp.eq.s32.totalorder %v862, 15
    %vm884 = vcmp.eq.s32.totalorder %v863, 15
    %vm885 = vcmp.eq.s32.totalorder %v864, 15
    %v886 = vrot.slane %v808, 1
    %v887 = vrot.slane %v809, 1
    %v888 = vrot.slane %v810, 1
    %v889 = vrot.slane %v811, 1
    %vm890 = vcmp.lt.s32.totalorder %v813, 7
    %v891 = vsel %vm890, %v888, %v889
    %v892 = vsel %vm890, %v887, %v888
    %v893 = vsel %vm890, %v886, %v887
    %v894 = vsel %vm890, %v889, %v886
    %v895 = vsel %vm882, 0.0, %v893
    %v896 = vsel %vm883, 0.0, %v892
    %v897 = vsel %vm884, 0.0, %v891
    %v898 = vsel %vm885, 0.0, %v894
    %899 = vrot.lane.b32.xlu0 %v878, 8
    %v900 = vpop.permute.xlu0 %899
    %901 = vrot.lane.b32.xlu0 %v879, 8
    %v902 = vpop.permute.xlu0 %901
    %903 = vrot.lane.b32.xlu0 %v880, 8
    %v904 = vpop.permute.xlu0 %903
    %905 = vrot.lane.b32.xlu0 %v881, 8
    %v906 = vpop.permute.xlu0 %905
    %v907 = vld [vmem:[#allocation5 + $0x200] sm:$0xff]
    %v908 = vld [vmem:[#allocation5 + $0x208] sm:$0xff]
    %v909 = vld [vmem:[#allocation5 + $0x210] sm:$0xff]
    %v910 = vld [vmem:[#allocation5 + $0x218] sm:$0xff]
    %v911 = vld [vmem:[#allocation5 + $0x220] sm:$0xff]
    %v912 = vld [vmem:[#allocation5 + $0x228] sm:$0xff]
    %v913 = vld [vmem:[#allocation5 + $0x230] sm:$0xff]
    %v914 = vld [vmem:[#allocation5 + $0x238] sm:$0xff]
    %v915 = vld [vmem:[#allocation5 + $0x240] sm:$0xff]
    %v916 = vld [vmem:[#allocation5 + $0x248] sm:$0xff]
    %v917 = vld [vmem:[#allocation5 + $0x250] sm:$0xff]
    %v918 = vld [vmem:[#allocation5 + $0x258] sm:$0xff]
    %v919 = vld [vmem:[#allocation5 + $0x260] sm:$0xff]
    %v920 = vld [vmem:[#allocation5 + $0x268] sm:$0xff]
    %v921 = vld [vmem:[#allocation5 + $0x270] sm:$0xff]
    %v922 = vld [vmem:[#allocation5 + $0x278] sm:$0xff]
    %v923 = vld [vmem:[#allocation5 + $0x280] sm:$0xff]
    %v924 = vld [vmem:[#allocation5 + $0x288] sm:$0xff]
    %v925 = vld [vmem:[#allocation5 + $0x290] sm:$0xff]
    %v926 = vld [vmem:[#allocation5 + $0x298] sm:$0xff]
    %v927 = vld [vmem:[#allocation5 + $0x2a0] sm:$0xff]
    %v928 = vld [vmem:[#allocation5 + $0x2a8] sm:$0xff]
    %v929 = vld [vmem:[#allocation5 + $0x2b0] sm:$0xff]
    %v930 = vld [vmem:[#allocation5 + $0x2b8] sm:$0xff]
    %v931 = vld [vmem:[#allocation5 + $0x2c0] sm:$0xff]
    %v932 = vld [vmem:[#allocation5 + $0x2c8] sm:$0xff]
    %v933 = vld [vmem:[#allocation5 + $0x2d0] sm:$0xff]
    %v934 = vld [vmem:[#allocation5 + $0x2d8] sm:$0xff]
    %v935 = vld [vmem:[#allocation5 + $0x2e0] sm:$0xff]
    %v936 = vld [vmem:[#allocation5 + $0x2e8] sm:$0xff]
    %v937 = vld [vmem:[#allocation5 + $0x2f0] sm:$0xff]
    %v938 = vld [vmem:[#allocation5 + $0x2f8] sm:$0xff]
    %939 = vmatprep.subr.mxu0 0.0
    %940 = vmatpush1.msra.mxu0 %v938
    %941 = vmatprep.subr.mxu0 0.0
    %942 = vmatpush1.msra.mxu0 %v937
    %943 = vmatprep.subr.mxu0 0.0
    %944 = vmatpush1.msra.mxu0 %v936
    %945 = vmatprep.subr.mxu0 0.0
    %946 = vmatpush1.msra.mxu0 %v935
    %947 = vmatprep.subr.mxu0 0.0
    %948 = vmatpush1.msra.mxu0 %v934
    %949 = vmatprep.subr.mxu0 0.0
    %950 = vmatpush1.msra.mxu0 %v933
    %951 = vmatprep.subr.mxu0 0.0
    %952 = vmatpush1.msra.mxu0 %v932
    %953 = vmatprep.subr.mxu0 0.0
    %954 = vmatpush1.msra.mxu0 %v931
    %955 = vmatprep.subr.mxu0 0.0
    %956 = vmatpush1.msra.mxu0 %v930
    %957 = vmatprep.subr.mxu0 0.0
    %958 = vmatpush1.msra.mxu0 %v929
    %959 = vmatprep.subr.mxu0 0.0
    %960 = vmatpush1.msra.mxu0 %v928
    %961 = vmatprep.subr.mxu0 0.0
    %962 = vmatpush1.msra.mxu0 %v927
    %963 = vmatprep.subr.mxu0 0.0
    %964 = vmatpush1.msra.mxu0 %v926
    %965 = vmatprep.subr.mxu0 0.0
    %966 = vmatpush1.msra.mxu0 %v925
    %967 = vmatprep.subr.mxu0 0.0
    %968 = vmatpush1.msra.mxu0 %v924
    %969 = vmatprep.subr.mxu0 0.0
    %970 = vmatpush1.msra.mxu0 %v923
    %971 = vmatprep.subr.mxu0 0.0
    %972 = vmatpush2.msra.mxu0 0.0
    %973 = vmatprep.subr.mxu0 0.0
    %974 = vmatpush2.msra.mxu0 0.0
    %975 = vmatprep.subr.mxu0 0.0
    %976 = vmatpush2.msra.mxu0 0.0
    %977 = vmatprep.subr.mxu0 0.0
    %978 = vmatpush2.msra.mxu0 0.0
    %979 = vmatprep.subr.mxu0 0.0
    %980 = vmatpush2.msra.mxu0 0.0
    %981 = vmatprep.subr.mxu0 0.0
    %982 = vmatpush2.msra.mxu0 0.0
    %983 = vmatprep.subr.mxu0 0.0
    %984 = vmatpush2.msra.mxu0 0.0
    %985 = vmatprep.subr.mxu0 0.0
    %986 = vmatpush2.msra.mxu0 0.0
    %987 = vmatprep.subr.mxu0 0.0
    %988 = vmatpush2.msra.mxu0 0.0
    %989 = vmatprep.subr.mxu0 0.0
    %990 = vmatpush2.msra.mxu0 0.0
    %991 = vmatprep.subr.mxu0 0.0
    %992 = vmatpush2.msra.mxu0 0.0
    %993 = vmatprep.subr.mxu0 0.0
    %994 = vmatpush2.msra.mxu0 0.0
    %995 = vmatprep.subr.mxu0 0.0
    %996 = vmatpush2.msra.mxu0 0.0
    %997 = vmatprep.subr.mxu0 0.0
    %998 = vmatpush2.msra.mxu0 0.0
    %999 = vmatprep.subr.mxu0 0.0
    %1000 = vmatpush2.msra.mxu0 0.0
    %1001 = vmatprep.subr.mxu0 0.0
    %1002 = vmatpush2.msra.mxu0 0.0
    %1003 = vmatprep.mubr.f32.mxu0 0.0
    %1004 = vmatmul.mubr.f32.gmra.mxu0 %v878
    %v1005 = vpop.f32.mrf.mxu0
    %v1006 = vadd.f32 0.0, %v1005
    %v1007 = vpop.f32.mrf.mxu0
    %1008 = vmatprep.mubr.f32.mxu0 0.0
    %1009 = vmatmul.mubr.f32.gmra.mxu0 %v879
    %v1010 = vpop.f32.mrf.mxu0
    %v1011 = vadd.f32 0.0, %v1010
    %v1012 = vpop.f32.mrf.mxu0
    %1013 = vmatprep.mubr.f32.mxu0 0.0
    %1014 = vmatmul.mubr.f32.gmra.mxu0 %v880
    %v1015 = vpop.f32.mrf.mxu0
    %v1016 = vadd.f32 0.0, %v1015
    %v1017 = vpop.f32.mrf.mxu0
    %1018 = vmatprep.mubr.f32.mxu0 0.0
    %1019 = vmatmul.mubr.f32.gmra.mxu0 %v881
    %v1020 = vpop.f32.mrf.mxu0
    %v1021 = vadd.f32 0.0, %v1020
    %v1022 = vpop.f32.mrf.mxu0
    %1023 = vdwg.mxu0
    %1024 = vmatprep.subr.mxu0 0.0
    %1025 = vmatpush1.msra.mxu0 %v922
    %1026 = vmatprep.subr.mxu0 0.0
    %1027 = vmatpush1.msra.mxu0 %v921
    %1028 = vmatprep.subr.mxu0 0.0
    %1029 = vmatpush1.msra.mxu0 %v920
    %1030 = vmatprep.subr.mxu0 0.0
    %1031 = vmatpush1.msra.mxu0 %v919
    %1032 = vmatprep.subr.mxu0 0.0
    %1033 = vmatpush1.msra.mxu0 %v918
    %1034 = vmatprep.subr.mxu0 0.0
    %1035 = vmatpush1.msra.mxu0 %v917
    %1036 = vmatprep.subr.mxu0 0.0
    %1037 = vmatpush1.msra.mxu0 %v916
    %1038 = vmatprep.subr.mxu0 0.0
    %1039 = vmatpush1.msra.mxu0 %v915
    %1040 = vmatprep.subr.mxu0 0.0
    %1041 = vmatpush1.msra.mxu0 %v914
    %1042 = vmatprep.subr.mxu0 0.0
    %1043 = vmatpush1.msra.mxu0 %v913
    %1044 = vmatprep.subr.mxu0 0.0
    %1045 = vmatpush1.msra.mxu0 %v912
    %1046 = vmatprep.subr.mxu0 0.0
    %1047 = vmatpush1.msra.mxu0 %v911
    %1048 = vmatprep.subr.mxu0 0.0
    %1049 = vmatpush1.msra.mxu0 %v910
    %1050 = vmatprep.subr.mxu0 0.0
    %1051 = vmatpush1.msra.mxu0 %v909
    %1052 = vmatprep.subr.mxu0 0.0
    %1053 = vmatpush1.msra.mxu0 %v908
    %1054 = vmatprep.subr.mxu0 0.0
    %1055 = vmatpush1.msra.mxu0 %v907
    %1056 = vmatprep.subr.mxu0 0.0
    %1057 = vmatpush2.msra.mxu0 0.0
    %1058 = vmatprep.subr.mxu0 0.0
    %1059 = vmatpush2.msra.mxu0 0.0
    %1060 = vmatprep.subr.mxu0 0.0
    %1061 = vmatpush2.msra.mxu0 0.0
    %1062 = vmatprep.subr.mxu0 0.0
    %1063 = vmatpush2.msra.mxu0 0.0
    %1064 = vmatprep.subr.mxu0 0.0
    %1065 = vmatpush2.msra.mxu0 0.0
    %1066 = vmatprep.subr.mxu0 0.0
    %1067 = vmatpush2.msra.mxu0 0.0
    %1068 = vmatprep.subr.mxu0 0.0
    %1069 = vmatpush2.msra.mxu0 0.0
    %1070 = vmatprep.subr.mxu0 0.0
    %1071 = vmatpush2.msra.mxu0 0.0
    %1072 = vmatprep.subr.mxu0 0.0
    %1073 = vmatpush2.msra.mxu0 0.0
    %1074 = vmatprep.subr.mxu0 0.0
    %1075 = vmatpush2.msra.mxu0 0.0
    %1076 = vmatprep.subr.mxu0 0.0
    %1077 = vmatpush2.msra.mxu0 0.0
    %1078 = vmatprep.subr.mxu0 0.0
    %1079 = vmatpush2.msra.mxu0 0.0
    %1080 = vmatprep.subr.mxu0 0.0
    %1081 = vmatpush2.msra.mxu0 0.0
    %1082 = vmatprep.subr.mxu0 0.0
    %1083 = vmatpush2.msra.mxu0 0.0
    %1084 = vmatprep.subr.mxu0 0.0
    %1085 = vmatpush2.msra.mxu0 0.0
    %1086 = vmatprep.subr.mxu0 0.0
    %1087 = vmatpush2.msra.mxu0 0.0
    %1088 = vmatprep.mubr.f32.mxu0 0.0
    %1089 = vmatmul.mubr.f32.gmra.mxu0 %v900
    %v1090 = vpop.f32.mrf.mxu0
    %v1091 = vadd.f32 %v1006, %v1090
    %v1092 = vpop.f32.mrf.mxu0
    %1093 = vmatprep.mubr.f32.mxu0 0.0
    %1094 = vmatmul.mubr.f32.gmra.mxu0 %v902
    %v1095 = vpop.f32.mrf.mxu0
    %v1096 = vadd.f32 %v1011, %v1095
    %v1097 = vpop.f32.mrf.mxu0
    %1098 = vmatprep.mubr.f32.mxu0 0.0
    %1099 = vmatmul.mubr.f32.gmra.mxu0 %v904
    %v1100 = vpop.f32.mrf.mxu0
    %v1101 = vadd.f32 %v1016, %v1100
    %v1102 = vpop.f32.mrf.mxu0
    %1103 = vmatprep.mubr.f32.mxu0 0.0
    %1104 = vmatmul.mubr.f32.gmra.mxu0 %v906
    %v1105 = vpop.f32.mrf.mxu0
    %v1106 = vadd.f32 %v1021, %v1105
    %v1107 = vpop.f32.mrf.mxu0
    %1108 = vdwg.mxu0
    %1109 = vrot.lane.b32.xlu0 %v878, 120
    %v1110 = vpop.permute.xlu0 %1109
    %1111 = vrot.lane.b32.xlu0 %v879, 120
    %v1112 = vpop.permute.xlu0 %1111
    %1113 = vrot.lane.b32.xlu0 %v880, 120
    %v1114 = vpop.permute.xlu0 %1113
    %1115 = vrot.lane.b32.xlu0 %v881, 120
    %v1116 = vpop.permute.xlu0 %1115
    %v1117 = vld [vmem:[#allocation5 + $0x300] sm:$0xff]
    %v1118 = vld [vmem:[#allocation5 + $0x308] sm:$0xff]
    %v1119 = vld [vmem:[#allocation5 + $0x310] sm:$0xff]
    %v1120 = vld [vmem:[#allocation5 + $0x318] sm:$0xff]
    %v1121 = vld [vmem:[#allocation5 + $0x320] sm:$0xff]
    %v1122 = vld [vmem:[#allocation5 + $0x328] sm:$0xff]
    %v1123 = vld [vmem:[#allocation5 + $0x330] sm:$0xff]
    %v1124 = vld [vmem:[#allocation5 + $0x338] sm:$0xff]
    %v1125 = vld [vmem:[#allocation5 + $0x340] sm:$0xff]
    %v1126 = vld [vmem:[#allocation5 + $0x348] sm:$0xff]
    %v1127 = vld [vmem:[#allocation5 + $0x350] sm:$0xff]
    %v1128 = vld [vmem:[#allocation5 + $0x358] sm:$0xff]
    %v1129 = vld [vmem:[#allocation5 + $0x360] sm:$0xff]
    %v1130 = vld [vmem:[#allocation5 + $0x368] sm:$0xff]
    %v1131 = vld [vmem:[#allocation5 + $0x370] sm:$0xff]
    %v1132 = vld [vmem:[#allocation5 + $0x378] sm:$0xff]
    %1133 = vmatprep.subr.mxu0 0.0
    %1134 = vmatpush1.msra.mxu0 %v1132
    %1135 = vmatprep.subr.mxu0 0.0
    %1136 = vmatpush1.msra.mxu0 %v1131
    %1137 = vmatprep.subr.mxu0 0.0
    %1138 = vmatpush1.msra.mxu0 %v1130
    %1139 = vmatprep.subr.mxu0 0.0
    %1140 = vmatpush1.msra.mxu0 %v1129
    %1141 = vmatprep.subr.mxu0 0.0
    %1142 = vmatpush1.msra.mxu0 %v1128
    %1143 = vmatprep.subr.mxu0 0.0
    %1144 = vmatpush1.msra.mxu0 %v1127
    %1145 = vmatprep.subr.mxu0 0.0
    %1146 = vmatpush1.msra.mxu0 %v1126
    %1147 = vmatprep.subr.mxu0 0.0
    %1148 = vmatpush1.msra.mxu0 %v1125
    %1149 = vmatprep.subr.mxu0 0.0
    %1150 = vmatpush1.msra.mxu0 %v1124
    %1151 = vmatprep.subr.mxu0 0.0
    %1152 = vmatpush1.msra.mxu0 %v1123
    %1153 = vmatprep.subr.mxu0 0.0
    %1154 = vmatpush1.msra.mxu0 %v1122
    %1155 = vmatprep.subr.mxu0 0.0
    %1156 = vmatpush1.msra.mxu0 %v1121
    %1157 = vmatprep.subr.mxu0 0.0
    %1158 = vmatpush1.msra.mxu0 %v1120
    %1159 = vmatprep.subr.mxu0 0.0
    %1160 = vmatpush1.msra.mxu0 %v1119
    %1161 = vmatprep.subr.mxu0 0.0
    %1162 = vmatpush1.msra.mxu0 %v1118
    %1163 = vmatprep.subr.mxu0 0.0
    %1164 = vmatpush1.msra.mxu0 %v1117
    %1165 = vmatprep.subr.mxu0 0.0
    %1166 = vmatpush2.msra.mxu0 0.0
    %1167 = vmatprep.subr.mxu0 0.0
    %1168 = vmatpush2.msra.mxu0 0.0
    %1169 = vmatprep.subr.mxu0 0.0
    %1170 = vmatpush2.msra.mxu0 0.0
    %1171 = vmatprep.subr.mxu0 0.0
    %1172 = vmatpush2.msra.mxu0 0.0
    %1173 = vmatprep.subr.mxu0 0.0
    %1174 = vmatpush2.msra.mxu0 0.0
    %1175 = vmatprep.subr.mxu0 0.0
    %1176 = vmatpush2.msra.mxu0 0.0
    %1177 = vmatprep.subr.mxu0 0.0
    %1178 = vmatpush2.msra.mxu0 0.0
    %1179 = vmatprep.subr.mxu0 0.0
    %1180 = vmatpush2.msra.mxu0 0.0
    %1181 = vmatprep.subr.mxu0 0.0
    %1182 = vmatpush2.msra.mxu0 0.0
    %1183 = vmatprep.subr.mxu0 0.0
    %1184 = vmatpush2.msra.mxu0 0.0
    %1185 = vmatprep.subr.mxu0 0.0
    %1186 = vmatpush2.msra.mxu0 0.0
    %1187 = vmatprep.subr.mxu0 0.0
    %1188 = vmatpush2.msra.mxu0 0.0
    %1189 = vmatprep.subr.mxu0 0.0
    %1190 = vmatpush2.msra.mxu0 0.0
    %1191 = vmatprep.subr.mxu0 0.0
    %1192 = vmatpush2.msra.mxu0 0.0
    %1193 = vmatprep.subr.mxu0 0.0
    %1194 = vmatpush2.msra.mxu0 0.0
    %1195 = vmatprep.subr.mxu0 0.0
    %1196 = vmatpush2.msra.mxu0 0.0
    %1197 = vmatprep.mubr.f32.mxu0 0.0
    %1198 = vmatmul.mubr.f32.gmra.mxu0 %v1110
    %v1199 = vpop.f32.mrf.mxu0
    %v1200 = vadd.f32 0.0, %v1199
    %v1201 = vpop.f32.mrf.mxu0
    %1202 = vmatprep.mubr.f32.mxu0 0.0
    %1203 = vmatmul.mubr.f32.gmra.mxu0 %v1112
    %v1204 = vpop.f32.mrf.mxu0
    %v1205 = vadd.f32 0.0, %v1204
    %v1206 = vpop.f32.mrf.mxu0
    %1207 = vmatprep.mubr.f32.mxu0 0.0
    %1208 = vmatmul.mubr.f32.gmra.mxu0 %v1114
    %v1209 = vpop.f32.mrf.mxu0
    %v1210 = vadd.f32 0.0, %v1209
    %v1211 = vpop.f32.mrf.mxu0
    %1212 = vmatprep.mubr.f32.mxu0 0.0
    %1213 = vmatmul.mubr.f32.gmra.mxu0 %v1116
    %v1214 = vpop.f32.mrf.mxu0
    %v1215 = vadd.f32 0.0, %v1214
    %v1216 = vpop.f32.mrf.mxu0
    %1217 = vdwg.mxu0
    %v1218 = vadd.f32 %v1091, %v1200
    %v1219 = vadd.f32 %v1096, %v1205
    %v1220 = vadd.f32 %v1101, %v1210
    %v1221 = vadd.f32 %v1106, %v1215
    %1222 = vrot.lane.b32.xlu0 %v808, 8
    %v1223 = vpop.permute.xlu0 %1222
    %1224 = vrot.lane.b32.xlu0 %v809, 8
    %v1225 = vpop.permute.xlu0 %1224
    %1226 = vrot.lane.b32.xlu0 %v810, 8
    %v1227 = vpop.permute.xlu0 %1226
    %1228 = vrot.lane.b32.xlu0 %v811, 8
    %v1229 = vpop.permute.xlu0 %1228
    %v1230 = vld [vmem:[#allocation5 + $0x380] sm:$0xff]
    %v1231 = vld [vmem:[#allocation5 + $0x388] sm:$0xff]
    %v1232 = vld [vmem:[#allocation5 + $0x390] sm:$0xff]
    %v1233 = vld [vmem:[#allocation5 + $0x398] sm:$0xff]
    %v1234 = vld [vmem:[#allocation5 + $0x3a0] sm:$0xff]
    %v1235 = vld [vmem:[#allocation5 + $0x3a8] sm:$0xff]
    %v1236 = vld [vmem:[#allocation5 + $0x3b0] sm:$0xff]
    %v1237 = vld [vmem:[#allocation5 + $0x3b8] sm:$0xff]
    %v1238 = vld [vmem:[#allocation5 + $0x3c0] sm:$0xff]
    %v1239 = vld [vmem:[#allocation5 + $0x3c8] sm:$0xff]
    %v1240 = vld [vmem:[#allocation5 + $0x3d0] sm:$0xff]
    %v1241 = vld [vmem:[#allocation5 + $0x3d8] sm:$0xff]
    %v1242 = vld [vmem:[#allocation5 + $0x3e0] sm:$0xff]
    %v1243 = vld [vmem:[#allocation5 + $0x3e8] sm:$0xff]
    %v1244 = vld [vmem:[#allocation5 + $0x3f0] sm:$0xff]
    %v1245 = vld [vmem:[#allocation5 + $0x3f8] sm:$0xff]
    %1246 = vmatprep.subr.mxu0 0.0
    %1247 = vmatpush1.msra.mxu0 %v1245
    %1248 = vmatprep.subr.mxu0 0.0
    %1249 = vmatpush1.msra.mxu0 %v1244
    %1250 = vmatprep.subr.mxu0 0.0
    %1251 = vmatpush1.msra.mxu0 %v1243
    %1252 = vmatprep.subr.mxu0 0.0
    %1253 = vmatpush1.msra.mxu0 %v1242
    %1254 = vmatprep.subr.mxu0 0.0
    %1255 = vmatpush1.msra.mxu0 %v1241
    %1256 = vmatprep.subr.mxu0 0.0
    %1257 = vmatpush1.msra.mxu0 %v1240
    %1258 = vmatprep.subr.mxu0 0.0
    %1259 = vmatpush1.msra.mxu0 %v1239
    %1260 = vmatprep.subr.mxu0 0.0
    %1261 = vmatpush1.msra.mxu0 %v1238
    %1262 = vmatprep.subr.mxu0 0.0
    %1263 = vmatpush1.msra.mxu0 %v1237
    %1264 = vmatprep.subr.mxu0 0.0
    %1265 = vmatpush1.msra.mxu0 %v1236
    %1266 = vmatprep.subr.mxu0 0.0
    %1267 = vmatpush1.msra.mxu0 %v1235
    %1268 = vmatprep.subr.mxu0 0.0
    %1269 = vmatpush1.msra.mxu0 %v1234
    %1270 = vmatprep.subr.mxu0 0.0
    %1271 = vmatpush1.msra.mxu0 %v1233
    %1272 = vmatprep.subr.mxu0 0.0
    %1273 = vmatpush1.msra.mxu0 %v1232
    %1274 = vmatprep.subr.mxu0 0.0
    %1275 = vmatpush1.msra.mxu0 %v1231
    %1276 = vmatprep.subr.mxu0 0.0
    %1277 = vmatpush1.msra.mxu0 %v1230
    %1278 = vmatprep.subr.mxu0 0.0
    %1279 = vmatpush2.msra.mxu0 0.0
    %1280 = vmatprep.subr.mxu0 0.0
    %1281 = vmatpush2.msra.mxu0 0.0
    %1282 = vmatprep.subr.mxu0 0.0
    %1283 = vmatpush2.msra.mxu0 0.0
    %1284 = vmatprep.subr.mxu0 0.0
    %1285 = vmatpush2.msra.mxu0 0.0
    %1286 = vmatprep.subr.mxu0 0.0
    %1287 = vmatpush2.msra.mxu0 0.0
    %1288 = vmatprep.subr.mxu0 0.0
    %1289 = vmatpush2.msra.mxu0 0.0
    %1290 = vmatprep.subr.mxu0 0.0
    %1291 = vmatpush2.msra.mxu0 0.0
    %1292 = vmatprep.subr.mxu0 0.0
    %1293 = vmatpush2.msra.mxu0 0.0
    %1294 = vmatprep.subr.mxu0 0.0
    %1295 = vmatpush2.msra.mxu0 0.0
    %1296 = vmatprep.subr.mxu0 0.0
    %1297 = vmatpush2.msra.mxu0 0.0
    %1298 = vmatprep.subr.mxu0 0.0
    %1299 = vmatpush2.msra.mxu0 0.0
    %1300 = vmatprep.subr.mxu0 0.0
    %1301 = vmatpush2.msra.mxu0 0.0
    %1302 = vmatprep.subr.mxu0 0.0
    %1303 = vmatpush2.msra.mxu0 0.0
    %1304 = vmatprep.subr.mxu0 0.0
    %1305 = vmatpush2.msra.mxu0 0.0
    %1306 = vmatprep.subr.mxu0 0.0
    %1307 = vmatpush2.msra.mxu0 0.0
    %1308 = vmatprep.subr.mxu0 0.0
    %1309 = vmatpush2.msra.mxu0 0.0
    %1310 = vmatprep.mubr.f32.mxu0 0.0
    %1311 = vmatmul.mubr.f32.gmra.mxu0 %v1223
    %v1312 = vpop.f32.mrf.mxu0
    %v1313 = vadd.f32 0.0, %v1312
    %v1314 = vpop.f32.mrf.mxu0
    %1315 = vmatprep.mubr.f32.mxu0 0.0
    %1316 = vmatmul.mubr.f32.gmra.mxu0 %v1225
    %v1317 = vpop.f32.mrf.mxu0
    %v1318 = vadd.f32 0.0, %v1317
    %v1319 = vpop.f32.mrf.mxu0
    %1320 = vmatprep.mubr.f32.mxu0 0.0
    %1321 = vmatmul.mubr.f32.gmra.mxu0 %v1227
    %v1322 = vpop.f32.mrf.mxu0
    %v1323 = vadd.f32 0.0, %v1322
    %v1324 = vpop.f32.mrf.mxu0
    %1325 = vmatprep.mubr.f32.mxu0 0.0
    %1326 = vmatmul.mubr.f32.gmra.mxu0 %v1229
    %v1327 = vpop.f32.mrf.mxu0
    %v1328 = vadd.f32 0.0, %v1327
    %v1329 = vpop.f32.mrf.mxu0
    %1330 = vdwg.mxu0
    %v1331 = vadd.f32 %v1218, %v1313
    %v1332 = vadd.f32 %v1219, %v1318
    %v1333 = vadd.f32 %v1220, %v1323
    %v1334 = vadd.f32 %v1221, %v1328
    %v1335 = vld [vmem:[#allocation5 + $0x400] sm:$0xff]
    %v1336 = vld [vmem:[#allocation5 + $0x408] sm:$0xff]
    %v1337 = vld [vmem:[#allocation5 + $0x410] sm:$0xff]
    %v1338 = vld [vmem:[#allocation5 + $0x418] sm:$0xff]
    %v1339 = vld [vmem:[#allocation5 + $0x420] sm:$0xff]
    %v1340 = vld [vmem:[#allocation5 + $0x428] sm:$0xff]
    %v1341 = vld [vmem:[#allocation5 + $0x430] sm:$0xff]
    %v1342 = vld [vmem:[#allocation5 + $0x438] sm:$0xff]
    %v1343 = vld [vmem:[#allocation5 + $0x440] sm:$0xff]
    %v1344 = vld [vmem:[#allocation5 + $0x448] sm:$0xff]
    %v1345 = vld [vmem:[#allocation5 + $0x450] sm:$0xff]
    %v1346 = vld [vmem:[#allocation5 + $0x458] sm:$0xff]
    %v1347 = vld [vmem:[#allocation5 + $0x460] sm:$0xff]
    %v1348 = vld [vmem:[#allocation5 + $0x468] sm:$0xff]
    %v1349 = vld [vmem:[#allocation5 + $0x470] sm:$0xff]
    %v1350 = vld [vmem:[#allocation5 + $0x478] sm:$0xff]
    %1351 = vmatprep.subr.mxu0 0.0
    %1352 = vmatpush1.msra.mxu0 %v1350
    %1353 = vmatprep.subr.mxu0 0.0
    %1354 = vmatpush1.msra.mxu0 %v1349
    %1355 = vmatprep.subr.mxu0 0.0
    %1356 = vmatpush1.msra.mxu0 %v1348
    %1357 = vmatprep.subr.mxu0 0.0
    %1358 = vmatpush1.msra.mxu0 %v1347
    %1359 = vmatprep.subr.mxu0 0.0
    %1360 = vmatpush1.msra.mxu0 %v1346
    %1361 = vmatprep.subr.mxu0 0.0
    %1362 = vmatpush1.msra.mxu0 %v1345
    %1363 = vmatprep.subr.mxu0 0.0
    %1364 = vmatpush1.msra.mxu0 %v1344
    %1365 = vmatprep.subr.mxu0 0.0
    %1366 = vmatpush1.msra.mxu0 %v1343
    %1367 = vmatprep.subr.mxu0 0.0
    %1368 = vmatpush1.msra.mxu0 %v1342
    %1369 = vmatprep.subr.mxu0 0.0
    %1370 = vmatpush1.msra.mxu0 %v1341
    %1371 = vmatprep.subr.mxu0 0.0
    %1372 = vmatpush1.msra.mxu0 %v1340
    %1373 = vmatprep.subr.mxu0 0.0
    %1374 = vmatpush1.msra.mxu0 %v1339
    %1375 = vmatprep.subr.mxu0 0.0
    %1376 = vmatpush1.msra.mxu0 %v1338
    %1377 = vmatprep.subr.mxu0 0.0
    %1378 = vmatpush1.msra.mxu0 %v1337
    %1379 = vmatprep.subr.mxu0 0.0
    %1380 = vmatpush1.msra.mxu0 %v1336
    %1381 = vmatprep.subr.mxu0 0.0
    %1382 = vmatpush1.msra.mxu0 %v1335
    %1383 = vmatprep.subr.mxu0 0.0
    %1384 = vmatpush2.msra.mxu0 0.0
    %1385 = vmatprep.subr.mxu0 0.0
    %1386 = vmatpush2.msra.mxu0 0.0
    %1387 = vmatprep.subr.mxu0 0.0
    %1388 = vmatpush2.msra.mxu0 0.0
    %1389 = vmatprep.subr.mxu0 0.0
    %1390 = vmatpush2.msra.mxu0 0.0
    %1391 = vmatprep.subr.mxu0 0.0
    %1392 = vmatpush2.msra.mxu0 0.0
    %1393 = vmatprep.subr.mxu0 0.0
    %1394 = vmatpush2.msra.mxu0 0.0
    %1395 = vmatprep.subr.mxu0 0.0
    %1396 = vmatpush2.msra.mxu0 0.0
    %1397 = vmatprep.subr.mxu0 0.0
    %1398 = vmatpush2.msra.mxu0 0.0
    %1399 = vmatprep.subr.mxu0 0.0
    %1400 = vmatpush2.msra.mxu0 0.0
    %1401 = vmatprep.subr.mxu0 0.0
    %1402 = vmatpush2.msra.mxu0 0.0
    %1403 = vmatprep.subr.mxu0 0.0
    %1404 = vmatpush2.msra.mxu0 0.0
    %1405 = vmatprep.subr.mxu0 0.0
    %1406 = vmatpush2.msra.mxu0 0.0
    %1407 = vmatprep.subr.mxu0 0.0
    %1408 = vmatpush2.msra.mxu0 0.0
    %1409 = vmatprep.subr.mxu0 0.0
    %1410 = vmatpush2.msra.mxu0 0.0
    %1411 = vmatprep.subr.mxu0 0.0
    %1412 = vmatpush2.msra.mxu0 0.0
    %1413 = vmatprep.subr.mxu0 0.0
    %1414 = vmatpush2.msra.mxu0 0.0
    %1415 = vmatprep.mubr.f32.mxu0 0.0
    %1416 = vmatmul.mubr.f32.gmra.mxu0 %v808
    %v1417 = vpop.f32.mrf.mxu0
    %v1418 = vadd.f32 0.0, %v1417
    %v1419 = vpop.f32.mrf.mxu0
    %1420 = vmatprep.mubr.f32.mxu0 0.0
    %1421 = vmatmul.mubr.f32.gmra.mxu0 %v809
    %v1422 = vpop.f32.mrf.mxu0
    %v1423 = vadd.f32 0.0, %v1422
    %v1424 = vpop.f32.mrf.mxu0
    %1425 = vmatprep.mubr.f32.mxu0 0.0
    %1426 = vmatmul.mubr.f32.gmra.mxu0 %v810
    %v1427 = vpop.f32.mrf.mxu0
    %v1428 = vadd.f32 0.0, %v1427
    %v1429 = vpop.f32.mrf.mxu0
    %1430 = vmatprep.mubr.f32.mxu0 0.0
    %1431 = vmatmul.mubr.f32.gmra.mxu0 %v811
    %v1432 = vpop.f32.mrf.mxu0
    %v1433 = vadd.f32 0.0, %v1432
    %v1434 = vpop.f32.mrf.mxu0
    %1435 = vdwg.mxu0
    %v1436 = vadd.f32 %v1331, %v1418
    %v1437 = vadd.f32 %v1332, %v1423
    %v1438 = vadd.f32 %v1333, %v1428
    %v1439 = vadd.f32 %v1334, %v1433
    %1440 = vrot.lane.b32.xlu0 %v808, 120
    %v1441 = vpop.permute.xlu0 %1440
    %1442 = vrot.lane.b32.xlu0 %v809, 120
    %v1443 = vpop.permute.xlu0 %1442
    %1444 = vrot.lane.b32.xlu0 %v810, 120
    %v1445 = vpop.permute.xlu0 %1444
    %1446 = vrot.lane.b32.xlu0 %v811, 120
    %v1447 = vpop.permute.xlu0 %1446
    %v1448 = vld [vmem:[#allocation5 + $0x480] sm:$0xff]
    %v1449 = vld [vmem:[#allocation5 + $0x488] sm:$0xff]
    %v1450 = vld [vmem:[#allocation5 + $0x490] sm:$0xff]
    %v1451 = vld [vmem:[#allocation5 + $0x498] sm:$0xff]
    %v1452 = vld [vmem:[#allocation5 + $0x4a0] sm:$0xff]
    %v1453 = vld [vmem:[#allocation5 + $0x4a8] sm:$0xff]
    %v1454 = vld [vmem:[#allocation5 + $0x4b0] sm:$0xff]
    %v1455 = vld [vmem:[#allocation5 + $0x4b8] sm:$0xff]
    %v1456 = vld [vmem:[#allocation5 + $0x4c0] sm:$0xff]
    %v1457 = vld [vmem:[#allocation5 + $0x4c8] sm:$0xff]
    %v1458 = vld [vmem:[#allocation5 + $0x4d0] sm:$0xff]
    %v1459 = vld [vmem:[#allocation5 + $0x4d8] sm:$0xff]
    %v1460 = vld [vmem:[#allocation5 + $0x4e0] sm:$0xff]
    %v1461 = vld [vmem:[#allocation5 + $0x4e8] sm:$0xff]
    %v1462 = vld [vmem:[#allocation5 + $0x4f0] sm:$0xff]
    %v1463 = vld [vmem:[#allocation5 + $0x4f8] sm:$0xff]
    %1464 = vmatprep.subr.mxu0 0.0
    %1465 = vmatpush1.msra.mxu0 %v1463
    %1466 = vmatprep.subr.mxu0 0.0
    %1467 = vmatpush1.msra.mxu0 %v1462
    %1468 = vmatprep.subr.mxu0 0.0
    %1469 = vmatpush1.msra.mxu0 %v1461
    %1470 = vmatprep.subr.mxu0 0.0
    %1471 = vmatpush1.msra.mxu0 %v1460
    %1472 = vmatprep.subr.mxu0 0.0
    %1473 = vmatpush1.msra.mxu0 %v1459
    %1474 = vmatprep.subr.mxu0 0.0
    %1475 = vmatpush1.msra.mxu0 %v1458
    %1476 = vmatprep.subr.mxu0 0.0
    %1477 = vmatpush1.msra.mxu0 %v1457
    %1478 = vmatprep.subr.mxu0 0.0
    %1479 = vmatpush1.msra.mxu0 %v1456
    %1480 = vmatprep.subr.mxu0 0.0
    %1481 = vmatpush1.msra.mxu0 %v1455
    %1482 = vmatprep.subr.mxu0 0.0
    %1483 = vmatpush1.msra.mxu0 %v1454
    %1484 = vmatprep.subr.mxu0 0.0
    %1485 = vmatpush1.msra.mxu0 %v1453
    %1486 = vmatprep.subr.mxu0 0.0
    %1487 = vmatpush1.msra.mxu0 %v1452
    %1488 = vmatprep.subr.mxu0 0.0
    %1489 = vmatpush1.msra.mxu0 %v1451
    %1490 = vmatprep.subr.mxu0 0.0
    %1491 = vmatpush1.msra.mxu0 %v1450
    %1492 = vmatprep.subr.mxu0 0.0
    %1493 = vmatpush1.msra.mxu0 %v1449
    %1494 = vmatprep.subr.mxu0 0.0
    %1495 = vmatpush1.msra.mxu0 %v1448
    %1496 = vmatprep.subr.mxu0 0.0
    %1497 = vmatpush2.msra.mxu0 0.0
    %1498 = vmatprep.subr.mxu0 0.0
    %1499 = vmatpush2.msra.mxu0 0.0
    %1500 = vmatprep.subr.mxu0 0.0
    %1501 = vmatpush2.msra.mxu0 0.0
    %1502 = vmatprep.subr.mxu0 0.0
    %1503 = vmatpush2.msra.mxu0 0.0
    %1504 = vmatprep.subr.mxu0 0.0
    %1505 = vmatpush2.msra.mxu0 0.0
    %1506 = vmatprep.subr.mxu0 0.0
    %1507 = vmatpush2.msra.mxu0 0.0
    %1508 = vmatprep.subr.mxu0 0.0
    %1509 = vmatpush2.msra.mxu0 0.0
    %1510 = vmatprep.subr.mxu0 0.0
    %1511 = vmatpush2.msra.mxu0 0.0
    %1512 = vmatprep.subr.mxu0 0.0
    %1513 = vmatpush2.msra.mxu0 0.0
    %1514 = vmatprep.subr.mxu0 0.0
    %1515 = vmatpush2.msra.mxu0 0.0
    %1516 = vmatprep.subr.mxu0 0.0
    %1517 = vmatpush2.msra.mxu0 0.0
    %1518 = vmatprep.subr.mxu0 0.0
    %1519 = vmatpush2.msra.mxu0 0.0
    %1520 = vmatprep.subr.mxu0 0.0
    %1521 = vmatpush2.msra.mxu0 0.0
    %1522 = vmatprep.subr.mxu0 0.0
    %1523 = vmatpush2.msra.mxu0 0.0
    %1524 = vmatprep.subr.mxu0 0.0
    %1525 = vmatpush2.msra.mxu0 0.0
    %1526 = vmatprep.subr.mxu0 0.0
    %1527 = vmatpush2.msra.mxu0 0.0
    %1528 = vmatprep.mubr.f32.mxu0 0.0
    %1529 = vmatmul.mubr.f32.gmra.mxu0 %v1441
    %v1530 = vpop.f32.mrf.mxu0
    %v1531 = vadd.f32 0.0, %v1530
    %v1532 = vpop.f32.mrf.mxu0
    %1533 = vmatprep.mubr.f32.mxu0 0.0
    %1534 = vmatmul.mubr.f32.gmra.mxu0 %v1443
    %v1535 = vpop.f32.mrf.mxu0
    %v1536 = vadd.f32 0.0, %v1535
    %v1537 = vpop.f32.mrf.mxu0
    %1538 = vmatprep.mubr.f32.mxu0 0.0
    %1539 = vmatmul.mubr.f32.gmra.mxu0 %v1445
    %v1540 = vpop.f32.mrf.mxu0
    %v1541 = vadd.f32 0.0, %v1540
    %v1542 = vpop.f32.mrf.mxu0
    %1543 = vmatprep.mubr.f32.mxu0 0.0
    %1544 = vmatmul.mubr.f32.gmra.mxu0 %v1447
    %v1545 = vpop.f32.mrf.mxu0
    %v1546 = vadd.f32 0.0, %v1545
    %v1547 = vpop.f32.mrf.mxu0
    %1548 = vdwg.mxu0
    %v1549 = vadd.f32 %v1436, %v1531
    %v1550 = vadd.f32 %v1437, %v1536
    %v1551 = vadd.f32 %v1438, %v1541
    %v1552 = vadd.f32 %v1439, %v1546
    %1553 = vrot.lane.b32.xlu0 %v895, 8
    %v1554 = vpop.permute.xlu0 %1553
    %1555 = vrot.lane.b32.xlu0 %v896, 8
    %v1556 = vpop.permute.xlu0 %1555
    %1557 = vrot.lane.b32.xlu0 %v897, 8
    %v1558 = vpop.permute.xlu0 %1557
    %1559 = vrot.lane.b32.xlu0 %v898, 8
    %v1560 = vpop.permute.xlu0 %1559
    %v1561 = vld [vmem:[#allocation5 + $0x500] sm:$0xff]
    %v1562 = vld [vmem:[#allocation5 + $0x508] sm:$0xff]
    %v1563 = vld [vmem:[#allocation5 + $0x510] sm:$0xff]
    %v1564 = vld [vmem:[#allocation5 + $0x518] sm:$0xff]
    %v1565 = vld [vmem:[#allocation5 + $0x520] sm:$0xff]
    %v1566 = vld [vmem:[#allocation5 + $0x528] sm:$0xff]
    %v1567 = vld [vmem:[#allocation5 + $0x530] sm:$0xff]
    %v1568 = vld [vmem:[#allocation5 + $0x538] sm:$0xff]
    %v1569 = vld [vmem:[#allocation5 + $0x540] sm:$0xff]
    %v1570 = vld [vmem:[#allocation5 + $0x548] sm:$0xff]
    %v1571 = vld [vmem:[#allocation5 + $0x550] sm:$0xff]
    %v1572 = vld [vmem:[#allocation5 + $0x558] sm:$0xff]
    %v1573 = vld [vmem:[#allocation5 + $0x560] sm:$0xff]
    %v1574 = vld [vmem:[#allocation5 + $0x568] sm:$0xff]
    %v1575 = vld [vmem:[#allocation5 + $0x570] sm:$0xff]
    %v1576 = vld [vmem:[#allocation5 + $0x578] sm:$0xff]
    %1577 = vmatprep.subr.mxu0 0.0
    %1578 = vmatpush1.msra.mxu0 %v1576
    %1579 = vmatprep.subr.mxu0 0.0
    %1580 = vmatpush1.msra.mxu0 %v1575
    %1581 = vmatprep.subr.mxu0 0.0
    %1582 = vmatpush1.msra.mxu0 %v1574
    %1583 = vmatprep.subr.mxu0 0.0
    %1584 = vmatpush1.msra.mxu0 %v1573
    %1585 = vmatprep.subr.mxu0 0.0
    %1586 = vmatpush1.msra.mxu0 %v1572
    %1587 = vmatprep.subr.mxu0 0.0
    %1588 = vmatpush1.msra.mxu0 %v1571
    %1589 = vmatprep.subr.mxu0 0.0
    %1590 = vmatpush1.msra.mxu0 %v1570
    %1591 = vmatprep.subr.mxu0 0.0
    %1592 = vmatpush1.msra.mxu0 %v1569
    %1593 = vmatprep.subr.mxu0 0.0
    %1594 = vmatpush1.msra.mxu0 %v1568
    %1595 = vmatprep.subr.mxu0 0.0
    %1596 = vmatpush1.msra.mxu0 %v1567
    %1597 = vmatprep.subr.mxu0 0.0
    %1598 = vmatpush1.msra.mxu0 %v1566
    %1599 = vmatprep.subr.mxu0 0.0
    %1600 = vmatpush1.msra.mxu0 %v1565
    %1601 = vmatprep.subr.mxu0 0.0
    %1602 = vmatpush1.msra.mxu0 %v1564
    %1603 = vmatprep.subr.mxu0 0.0
    %1604 = vmatpush1.msra.mxu0 %v1563
    %1605 = vmatprep.subr.mxu0 0.0
    %1606 = vmatpush1.msra.mxu0 %v1562
    %1607 = vmatprep.subr.mxu0 0.0
    %1608 = vmatpush1.msra.mxu0 %v1561
    %1609 = vmatprep.subr.mxu0 0.0
    %1610 = vmatpush2.msra.mxu0 0.0
    %1611 = vmatprep.subr.mxu0 0.0
    %1612 = vmatpush2.msra.mxu0 0.0
    %1613 = vmatprep.subr.mxu0 0.0
    %1614 = vmatpush2.msra.mxu0 0.0
    %1615 = vmatprep.subr.mxu0 0.0
    %1616 = vmatpush2.msra.mxu0 0.0
    %1617 = vmatprep.subr.mxu0 0.0
    %1618 = vmatpush2.msra.mxu0 0.0
    %1619 = vmatprep.subr.mxu0 0.0
    %1620 = vmatpush2.msra.mxu0 0.0
    %1621 = vmatprep.subr.mxu0 0.0
    %1622 = vmatpush2.msra.mxu0 0.0
    %1623 = vmatprep.subr.mxu0 0.0
    %1624 = vmatpush2.msra.mxu0 0.0
    %1625 = vmatprep.subr.mxu0 0.0
    %1626 = vmatpush2.msra.mxu0 0.0
    %1627 = vmatprep.subr.mxu0 0.0
    %1628 = vmatpush2.msra.mxu0 0.0
    %1629 = vmatprep.subr.mxu0 0.0
    %1630 = vmatpush2.msra.mxu0 0.0
    %1631 = vmatprep.subr.mxu0 0.0
    %1632 = vmatpush2.msra.mxu0 0.0
    %1633 = vmatprep.subr.mxu0 0.0
    %1634 = vmatpush2.msra.mxu0 0.0
    %1635 = vmatprep.subr.mxu0 0.0
    %1636 = vmatpush2.msra.mxu0 0.0
    %1637 = vmatprep.subr.mxu0 0.0
    %1638 = vmatpush2.msra.mxu0 0.0
    %1639 = vmatprep.subr.mxu0 0.0
    %1640 = vmatpush2.msra.mxu0 0.0
    %1641 = vmatprep.mubr.f32.mxu0 0.0
    %1642 = vmatmul.mubr.f32.gmra.mxu0 %v1554
    %v1643 = vpop.f32.mrf.mxu0
    %v1644 = vadd.f32 0.0, %v1643
    %v1645 = vpop.f32.mrf.mxu0
    %1646 = vmatprep.mubr.f32.mxu0 0.0
    %1647 = vmatmul.mubr.f32.gmra.mxu0 %v1556
    %v1648 = vpop.f32.mrf.mxu0
    %v1649 = vadd.f32 0.0, %v1648
    %v1650 = vpop.f32.mrf.mxu0
    %1651 = vmatprep.mubr.f32.mxu0 0.0
    %1652 = vmatmul.mubr.f32.gmra.mxu0 %v1558
    %v1653 = vpop.f32.mrf.mxu0
    %v1654 = vadd.f32 0.0, %v1653
    %v1655 = vpop.f32.mrf.mxu0
    %1656 = vmatprep.mubr.f32.mxu0 0.0
    %1657 = vmatmul.mubr.f32.gmra.mxu0 %v1560
    %v1658 = vpop.f32.mrf.mxu0
    %v1659 = vadd.f32 0.0, %v1658
    %v1660 = vpop.f32.mrf.mxu0
    %1661 = vdwg.mxu0
    %v1662 = vadd.f32 %v1549, %v1644
    %v1663 = vadd.f32 %v1550, %v1649
    %v1664 = vadd.f32 %v1551, %v1654
    %v1665 = vadd.f32 %v1552, %v1659
    %v1666 = vld [vmem:[#allocation5 + $0x580] sm:$0xff]
    %v1667 = vld [vmem:[#allocation5 + $0x588] sm:$0xff]
    %v1668 = vld [vmem:[#allocation5 + $0x590] sm:$0xff]
    %v1669 = vld [vmem:[#allocation5 + $0x598] sm:$0xff]
    %v1670 = vld [vmem:[#allocation5 + $0x5a0] sm:$0xff]
    %v1671 = vld [vmem:[#allocation5 + $0x5a8] sm:$0xff]
    %v1672 = vld [vmem:[#allocation5 + $0x5b0] sm:$0xff]
    %v1673 = vld [vmem:[#allocation5 + $0x5b8] sm:$0xff]
    %v1674 = vld [vmem:[#allocation5 + $0x5c0] sm:$0xff]
    %v1675 = vld [vmem:[#allocation5 + $0x5c8] sm:$0xff]
    %v1676 = vld [vmem:[#allocation5 + $0x5d0] sm:$0xff]
    %v1677 = vld [vmem:[#allocation5 + $0x5d8] sm:$0xff]
    %v1678 = vld [vmem:[#allocation5 + $0x5e0] sm:$0xff]
    %v1679 = vld [vmem:[#allocation5 + $0x5e8] sm:$0xff]
    %v1680 = vld [vmem:[#allocation5 + $0x5f0] sm:$0xff]
    %v1681 = vld [vmem:[#allocation5 + $0x5f8] sm:$0xff]
    %1682 = vmatprep.subr.mxu0 0.0
    %1683 = vmatpush1.msra.mxu0 %v1681
    %1684 = vmatprep.subr.mxu0 0.0
    %1685 = vmatpush1.msra.mxu0 %v1680
    %1686 = vmatprep.subr.mxu0 0.0
    %1687 = vmatpush1.msra.mxu0 %v1679
    %1688 = vmatprep.subr.mxu0 0.0
    %1689 = vmatpush1.msra.mxu0 %v1678
    %1690 = vmatprep.subr.mxu0 0.0
    %1691 = vmatpush1.msra.mxu0 %v1677
    %1692 = vmatprep.subr.mxu0 0.0
    %1693 = vmatpush1.msra.mxu0 %v1676
    %1694 = vmatprep.subr.mxu0 0.0
    %1695 = vmatpush1.msra.mxu0 %v1675
    %1696 = vmatprep.subr.mxu0 0.0
    %1697 = vmatpush1.msra.mxu0 %v1674
    %1698 = vmatprep.subr.mxu0 0.0
    %1699 = vmatpush1.msra.mxu0 %v1673
    %1700 = vmatprep.subr.mxu0 0.0
    %1701 = vmatpush1.msra.mxu0 %v1672
    %1702 = vmatprep.subr.mxu0 0.0
    %1703 = vmatpush1.msra.mxu0 %v1671
    %1704 = vmatprep.subr.mxu0 0.0
    %1705 = vmatpush1.msra.mxu0 %v1670
    %1706 = vmatprep.subr.mxu0 0.0
    %1707 = vmatpush1.msra.mxu0 %v1669
    %1708 = vmatprep.subr.mxu0 0.0
    %1709 = vmatpush1.msra.mxu0 %v1668
    %1710 = vmatprep.subr.mxu0 0.0
    %1711 = vmatpush1.msra.mxu0 %v1667
    %1712 = vmatprep.subr.mxu0 0.0
    %1713 = vmatpush1.msra.mxu0 %v1666
    %1714 = vmatprep.subr.mxu0 0.0
    %1715 = vmatpush2.msra.mxu0 0.0
    %1716 = vmatprep.subr.mxu0 0.0
    %1717 = vmatpush2.msra.mxu0 0.0
    %1718 = vmatprep.subr.mxu0 0.0
    %1719 = vmatpush2.msra.mxu0 0.0
    %1720 = vmatprep.subr.mxu0 0.0
    %1721 = vmatpush2.msra.mxu0 0.0
    %1722 = vmatprep.subr.mxu0 0.0
    %1723 = vmatpush2.msra.mxu0 0.0
    %1724 = vmatprep.subr.mxu0 0.0
    %1725 = vmatpush2.msra.mxu0 0.0
    %1726 = vmatprep.subr.mxu0 0.0
    %1727 = vmatpush2.msra.mxu0 0.0
    %1728 = vmatprep.subr.mxu0 0.0
    %1729 = vmatpush2.msra.mxu0 0.0
    %1730 = vmatprep.subr.mxu0 0.0
    %1731 = vmatpush2.msra.mxu0 0.0
    %1732 = vmatprep.subr.mxu0 0.0
    %1733 = vmatpush2.msra.mxu0 0.0
    %1734 = vmatprep.subr.mxu0 0.0
    %1735 = vmatpush2.msra.mxu0 0.0
    %1736 = vmatprep.subr.mxu0 0.0
    %1737 = vmatpush2.msra.mxu0 0.0
    %1738 = vmatprep.subr.mxu0 0.0
    %1739 = vmatpush2.msra.mxu0 0.0
    %1740 = vmatprep.subr.mxu0 0.0
    %1741 = vmatpush2.msra.mxu0 0.0
    %1742 = vmatprep.subr.mxu0 0.0
    %1743 = vmatpush2.msra.mxu0 0.0
    %1744 = vmatprep.subr.mxu0 0.0
    %1745 = vmatpush2.msra.mxu0 0.0
    %1746 = vmatprep.mubr.f32.mxu0 0.0
    %1747 = vmatmul.mubr.f32.gmra.mxu0 %v895
    %v1748 = vpop.f32.mrf.mxu0
    %v1749 = vadd.f32 0.0, %v1748
    %v1750 = vpop.f32.mrf.mxu0
    %1751 = vmatprep.mubr.f32.mxu0 0.0
    %1752 = vmatmul.mubr.f32.gmra.mxu0 %v896
    %v1753 = vpop.f32.mrf.mxu0
    %v1754 = vadd.f32 0.0, %v1753
    %v1755 = vpop.f32.mrf.mxu0
    %1756 = vmatprep.mubr.f32.mxu0 0.0
    %1757 = vmatmul.mubr.f32.gmra.mxu0 %v897
    %v1758 = vpop.f32.mrf.mxu0
    %v1759 = vadd.f32 0.0, %v1758
    %v1760 = vpop.f32.mrf.mxu0
    %1761 = vmatprep.mubr.f32.mxu0 0.0
    %1762 = vmatmul.mubr.f32.gmra.mxu0 %v898
    %v1763 = vpop.f32.mrf.mxu0
    %v1764 = vadd.f32 0.0, %v1763
    %v1765 = vpop.f32.mrf.mxu0
    %1766 = vdwg.mxu0
    %v1767 = vadd.f32 %v1662, %v1749
    %v1768 = vadd.f32 %v1663, %v1754
    %v1769 = vadd.f32 %v1664, %v1759
    %v1770 = vadd.f32 %v1665, %v1764
    %1771 = vrot.lane.b32.xlu0 %v895, 120
    %v1772 = vpop.permute.xlu0 %1771
    %1773 = vrot.lane.b32.xlu0 %v896, 120
    %v1774 = vpop.permute.xlu0 %1773
    %1775 = vrot.lane.b32.xlu0 %v897, 120
    %v1776 = vpop.permute.xlu0 %1775
    %1777 = vrot.lane.b32.xlu0 %v898, 120
    %v1778 = vpop.permute.xlu0 %1777
    %v1779 = vld [vmem:[#allocation5 + $0x600] sm:$0xff]
    %v1780 = vld [vmem:[#allocation5 + $0x608] sm:$0xff]
    %v1781 = vld [vmem:[#allocation5 + $0x610] sm:$0xff]
    %v1782 = vld [vmem:[#allocation5 + $0x618] sm:$0xff]
    %v1783 = vld [vmem:[#allocation5 + $0x620] sm:$0xff]
    %v1784 = vld [vmem:[#allocation5 + $0x628] sm:$0xff]
    %v1785 = vld [vmem:[#allocation5 + $0x630] sm:$0xff]
    %v1786 = vld [vmem:[#allocation5 + $0x638] sm:$0xff]
    %v1787 = vld [vmem:[#allocation5 + $0x640] sm:$0xff]
    %v1788 = vld [vmem:[#allocation5 + $0x648] sm:$0xff]
    %v1789 = vld [vmem:[#allocation5 + $0x650] sm:$0xff]
    %v1790 = vld [vmem:[#allocation5 + $0x658] sm:$0xff]
    %v1791 = vld [vmem:[#allocation5 + $0x660] sm:$0xff]
    %v1792 = vld [vmem:[#allocation5 + $0x668] sm:$0xff]
    %v1793 = vld [vmem:[#allocation5 + $0x670] sm:$0xff]
    %v1794 = vld [vmem:[#allocation5 + $0x678] sm:$0xff]
    %1795 = vmatprep.subr.mxu0 0.0
    %1796 = vmatpush1.msra.mxu0 %v1794
    %1797 = vmatprep.subr.mxu0 0.0
    %1798 = vmatpush1.msra.mxu0 %v1793
    %1799 = vmatprep.subr.mxu0 0.0
    %1800 = vmatpush1.msra.mxu0 %v1792
    %1801 = vmatprep.subr.mxu0 0.0
    %1802 = vmatpush1.msra.mxu0 %v1791
    %1803 = vmatprep.subr.mxu0 0.0
    %1804 = vmatpush1.msra.mxu0 %v1790
    %1805 = vmatprep.subr.mxu0 0.0
    %1806 = vmatpush1.msra.mxu0 %v1789
    %1807 = vmatprep.subr.mxu0 0.0
    %1808 = vmatpush1.msra.mxu0 %v1788
    %1809 = vmatprep.subr.mxu0 0.0
    %1810 = vmatpush1.msra.mxu0 %v1787
    %1811 = vmatprep.subr.mxu0 0.0
    %1812 = vmatpush1.msra.mxu0 %v1786
    %1813 = vmatprep.subr.mxu0 0.0
    %1814 = vmatpush1.msra.mxu0 %v1785
    %1815 = vmatprep.subr.mxu0 0.0
    %1816 = vmatpush1.msra.mxu0 %v1784
    %1817 = vmatprep.subr.mxu0 0.0
    %1818 = vmatpush1.msra.mxu0 %v1783
    %1819 = vmatprep.subr.mxu0 0.0
    %1820 = vmatpush1.msra.mxu0 %v1782
    %1821 = vmatprep.subr.mxu0 0.0
    %1822 = vmatpush1.msra.mxu0 %v1781
    %1823 = vmatprep.subr.mxu0 0.0
    %1824 = vmatpush1.msra.mxu0 %v1780
    %1825 = vmatprep.subr.mxu0 0.0
    %1826 = vmatpush1.msra.mxu0 %v1779
    %1827 = vmatprep.subr.mxu0 0.0
    %1828 = vmatpush2.msra.mxu0 0.0
    %1829 = vmatprep.subr.mxu0 0.0
    %1830 = vmatpush2.msra.mxu0 0.0
    %1831 = vmatprep.subr.mxu0 0.0
    %1832 = vmatpush2.msra.mxu0 0.0
    %1833 = vmatprep.subr.mxu0 0.0
    %1834 = vmatpush2.msra.mxu0 0.0
    %1835 = vmatprep.subr.mxu0 0.0
    %1836 = vmatpush2.msra.mxu0 0.0
    %1837 = vmatprep.subr.mxu0 0.0
    %1838 = vmatpush2.msra.mxu0 0.0
    %1839 = vmatprep.subr.mxu0 0.0
    %1840 = vmatpush2.msra.mxu0 0.0
    %1841 = vmatprep.subr.mxu0 0.0
    %1842 = vmatpush2.msra.mxu0 0.0
    %1843 = vmatprep.subr.mxu0 0.0
    %1844 = vmatpush2.msra.mxu0 0.0
    %1845 = vmatprep.subr.mxu0 0.0
    %1846 = vmatpush2.msra.mxu0 0.0
    %1847 = vmatprep.subr.mxu0 0.0
    %1848 = vmatpush2.msra.mxu0 0.0
    %1849 = vmatprep.subr.mxu0 0.0
    %1850 = vmatpush2.msra.mxu0 0.0
    %1851 = vmatprep.subr.mxu0 0.0
    %1852 = vmatpush2.msra.mxu0 0.0
    %1853 = vmatprep.subr.mxu0 0.0
    %1854 = vmatpush2.msra.mxu0 0.0
    %1855 = vmatprep.subr.mxu0 0.0
    %1856 = vmatpush2.msra.mxu0 0.0
    %1857 = vmatprep.subr.mxu0 0.0
    %1858 = vmatpush2.msra.mxu0 0.0
    %1859 = vmatprep.mubr.f32.mxu0 0.0
    %1860 = vmatmul.mubr.f32.gmra.mxu0 %v1772
    %v1861 = vpop.f32.mrf.mxu0
    %v1862 = vadd.f32 0.0, %v1861
    %v1863 = vpop.f32.mrf.mxu0
    %1864 = vmatprep.mubr.f32.mxu0 0.0
    %1865 = vmatmul.mubr.f32.gmra.mxu0 %v1774
    %v1866 = vpop.f32.mrf.mxu0
    %v1867 = vadd.f32 0.0, %v1866
    %v1868 = vpop.f32.mrf.mxu0
    %1869 = vmatprep.mubr.f32.mxu0 0.0
    %1870 = vmatmul.mubr.f32.gmra.mxu0 %v1776
    %v1871 = vpop.f32.mrf.mxu0
    %v1872 = vadd.f32 0.0, %v1871
    %v1873 = vpop.f32.mrf.mxu0
    %1874 = vmatprep.mubr.f32.mxu0 0.0
    %1875 = vmatmul.mubr.f32.gmra.mxu0 %v1778
    %v1876 = vpop.f32.mrf.mxu0
    %v1877 = vadd.f32 0.0, %v1876
    %v1878 = vpop.f32.mrf.mxu0
    %1879 = vdwg.mxu0
    %v1880 = vadd.f32 %v1767, %v1862
    %v1881 = vadd.f32 %v1768, %v1867
    %v1882 = vadd.f32 %v1769, %v1872
    %v1883 = vadd.f32 %v1770, %v1877
    %v1884 = vlaneseq
    %v1885 = vshrl.u32 %v1884, 7
    %v1886 = vsub.s32 3, %v1885
    %v1887 = vrot.slane %v137, %v1886
    %v1888 = vadd.f32 %v1880, %v1887
    %v1889 = vadd.f32 %v1881, %v1887
    %v1890 = vadd.f32 %v1882, %v1887
    %v1891 = vadd.f32 %v1883, %v1887
    %v1892 = vadd.f32 %v1888, %v1889
    %v1893 = vrot.slane %v1892, 4
    %v1894 = vadd.f32 %v1892, %v1893
    %v1895 = vrot.slane %v1894, 2
    %v1896 = vadd.f32 %v1894, %v1895
    %v1897 = vrot.slane %v1896, 1
    %v1898 = vadd.f32 %v1896, %v1897
    %v1899 = vadd.f32 %v1890, %v1891
    %v1900 = vrot.slane %v1899, 4
    %v1901 = vadd.f32 %v1899, %v1900
    %v1902 = vrot.slane %v1901, 2
    %v1903 = vadd.f32 %v1901, %v1902
    %v1904 = vrot.slane %v1903, 1
    %v1905 = vadd.f32 %v1903, %v1904
    %v1906 = vmul.f32 %v1888, %v1888
    %v1907 = vmul.f32 %v1889, %v1889
    %v1908 = vmul.f32 %v1890, %v1890
    %v1909 = vmul.f32 %v1891, %v1891
    %v1910 = vadd.f32 %v1906, %v1907
    %v1911 = vrot.slane %v1910, 4
    %v1912 = vadd.f32 %v1910, %v1911
    %v1913 = vrot.slane %v1912, 2
    %v1914 = vadd.f32 %v1912, %v1913
    %v1915 = vrot.slane %v1914, 1
    %v1916 = vadd.f32 %v1914, %v1915
    %v1917 = vadd.f32 %v1908, %v1909
    %v1918 = vrot.slane %v1917, 4
    %v1919 = vadd.f32 %v1917, %v1918
    %v1920 = vrot.slane %v1919, 2
    %v1921 = vadd.f32 %v1919, %v1920
    %v1922 = vrot.slane %v1921, 1
    %v1923 = vadd.f32 %v1921, %v1922
    %v1926 = vsel %vm418, %v1905, %v1898
    %1928 = vmatprep.subr.mxu0 0.0
    %1929 = vmatpush1.xpose.msra.mxu0 0.0
    %1930 = vmatprep.subr.mxu0 0.0
    %1931 = vmatpush1.xpose.msra.mxu0 0.0
    %1932 = vmatprep.subr.mxu0 0.0
    %1933 = vmatpush1.xpose.msra.mxu0 0.0
    %1934 = vmatprep.subr.mxu0 0.0
    %1935 = vmatpush1.xpose.msra.mxu0 0.0
    %1936 = vmatprep.subr.mxu0 0.0
    %1937 = vmatpush1.xpose.msra.mxu0 0.0
    %1938 = vmatprep.subr.mxu0 0.0
    %1939 = vmatpush1.xpose.msra.mxu0 0.0
    %1940 = vmatprep.subr.mxu0 0.0
    %1941 = vmatpush1.xpose.msra.mxu0 0.0
    %1942 = vmatprep.subr.mxu0 0.0
    %1943 = vmatpush1.xpose.msra.mxu0 0.0
    %1944 = vmatprep.subr.mxu0 0.0
    %1945 = vmatpush1.xpose.msra.mxu0 0.0
    %1946 = vmatprep.subr.mxu0 0.0
    %1947 = vmatpush1.xpose.msra.mxu0 0.0
    %1948 = vmatprep.subr.mxu0 0.0
    %1949 = vmatpush1.xpose.msra.mxu0 0.0
    %1950 = vmatprep.subr.mxu0 0.0
    %1951 = vmatpush1.xpose.msra.mxu0 0.0
    %1952 = vmatprep.subr.mxu0 0.0
    %1953 = vmatpush1.xpose.msra.mxu0 0.0
    %1954 = vmatprep.subr.mxu0 0.0
    %1955 = vmatpush1.xpose.msra.mxu0 0.0
    %1956 = vmatprep.subr.mxu0 0.0
    %1957 = vmatpush1.xpose.msra.mxu0 0.0
    %1958 = vmatprep.subr.mxu0 0.0
    %1959 = vmatpush1.xpose.msra.mxu0 %v136
    %1960 = vmatprep.subr.mxu0 0.0
    %1961 = vmatpush2.xpose.msra.mxu0 0.0
    %1962 = vmatprep.subr.mxu0 0.0
    %1963 = vmatpush2.xpose.msra.mxu0 0.0
    %1964 = vmatprep.subr.mxu0 0.0
    %1965 = vmatpush2.xpose.msra.mxu0 0.0
    %1966 = vmatprep.subr.mxu0 0.0
    %1967 = vmatpush2.xpose.msra.mxu0 0.0
    %1968 = vmatprep.subr.mxu0 0.0
    %1969 = vmatpush2.xpose.msra.mxu0 0.0
    %1970 = vmatprep.subr.mxu0 0.0
    %1971 = vmatpush2.xpose.msra.mxu0 0.0
    %1972 = vmatprep.subr.mxu0 0.0
    %1973 = vmatpush2.xpose.msra.mxu0 0.0
    %1974 = vmatprep.subr.mxu0 0.0
    %1975 = vmatpush2.xpose.msra.mxu0 0.0
    %1976 = vmatprep.subr.mxu0 0.0
    %1977 = vmatpush2.xpose.msra.mxu0 0.0
    %1978 = vmatprep.subr.mxu0 0.0
    %1979 = vmatpush2.xpose.msra.mxu0 0.0
    %1980 = vmatprep.subr.mxu0 0.0
    %1981 = vmatpush2.xpose.msra.mxu0 0.0
    %1982 = vmatprep.subr.mxu0 0.0
    %1983 = vmatpush2.xpose.msra.mxu0 0.0
    %1984 = vmatprep.subr.mxu0 0.0
    %1985 = vmatpush2.xpose.msra.mxu0 0.0
    %1986 = vmatprep.subr.mxu0 0.0
    %1987 = vmatpush2.xpose.msra.mxu0 0.0
    %1988 = vmatprep.subr.mxu0 0.0
    %1989 = vmatpush2.xpose.msra.mxu0 0.0
    %1990 = vmatprep.subr.mxu0 0.0
    %1991 = vmatpush2.xpose.msra.mxu0 0.0
    %1992 = vmatprep.mubr.f32.mxu0 0.0
    %1993 = vmatmul.mubr.f32.gmra.mxu0 %v1926
    %v1994 = vpop.f32.mrf.mxu0
    %v1995 = vadd.f32 0.0, %v1994
    %v1996 = vpop.f32.mrf.mxu0
    %1997 = vdwg.mxu0
    %v2000 = vsel %vm418, %v1923, %v1916
    %2002 = vmatprep.subr.mxu0 0.0
    %2003 = vmatpush1.xpose.msra.mxu0 0.0
    %2004 = vmatprep.subr.mxu0 0.0
    %2005 = vmatpush1.xpose.msra.mxu0 0.0
    %2006 = vmatprep.subr.mxu0 0.0
    %2007 = vmatpush1.xpose.msra.mxu0 0.0
    %2008 = vmatprep.subr.mxu0 0.0
    %2009 = vmatpush1.xpose.msra.mxu0 0.0
    %2010 = vmatprep.subr.mxu0 0.0
    %2011 = vmatpush1.xpose.msra.mxu0 0.0
    %2012 = vmatprep.subr.mxu0 0.0
    %2013 = vmatpush1.xpose.msra.mxu0 0.0
    %2014 = vmatprep.subr.mxu0 0.0
    %2015 = vmatpush1.xpose.msra.mxu0 0.0
    %2016 = vmatprep.subr.mxu0 0.0
    %2017 = vmatpush1.xpose.msra.mxu0 0.0
    %2018 = vmatprep.subr.mxu0 0.0
    %2019 = vmatpush1.xpose.msra.mxu0 0.0
    %2020 = vmatprep.subr.mxu0 0.0
    %2021 = vmatpush1.xpose.msra.mxu0 0.0
    %2022 = vmatprep.subr.mxu0 0.0
    %2023 = vmatpush1.xpose.msra.mxu0 0.0
    %2024 = vmatprep.subr.mxu0 0.0
    %2025 = vmatpush1.xpose.msra.mxu0 0.0
    %2026 = vmatprep.subr.mxu0 0.0
    %2027 = vmatpush1.xpose.msra.mxu0 0.0
    %2028 = vmatprep.subr.mxu0 0.0
    %2029 = vmatpush1.xpose.msra.mxu0 0.0
    %2030 = vmatprep.subr.mxu0 0.0
    %2031 = vmatpush1.xpose.msra.mxu0 0.0
    %2032 = vmatprep.subr.mxu0 0.0
    %2033 = vmatpush1.xpose.msra.mxu0 %v136
    %2034 = vmatprep.subr.mxu0 0.0
    %2035 = vmatpush2.xpose.msra.mxu0 0.0
    %2036 = vmatprep.subr.mxu0 0.0
    %2037 = vmatpush2.xpose.msra.mxu0 0.0
    %2038 = vmatprep.subr.mxu0 0.0
    %2039 = vmatpush2.xpose.msra.mxu0 0.0
    %2040 = vmatprep.subr.mxu0 0.0
    %2041 = vmatpush2.xpose.msra.mxu0 0.0
    %2042 = vmatprep.subr.mxu0 0.0
    %2043 = vmatpush2.xpose.msra.mxu0 0.0
    %2044 = vmatprep.subr.mxu0 0.0
    %2045 = vmatpush2.xpose.msra.mxu0 0.0
    %2046 = vmatprep.subr.mxu0 0.0
    %2047 = vmatpush2.xpose.msra.mxu0 0.0
    %2048 = vmatprep.subr.mxu0 0.0
    %2049 = vmatpush2.xpose.msra.mxu0 0.0
    %2050 = vmatprep.subr.mxu0 0.0
    %2051 = vmatpush2.xpose.msra.mxu0 0.0
    %2052 = vmatprep.subr.mxu0 0.0
    %2053 = vmatpush2.xpose.msra.mxu0 0.0
    %2054 = vmatprep.subr.mxu0 0.0
    %2055 = vmatpush2.xpose.msra.mxu0 0.0
    %2056 = vmatprep.subr.mxu0 0.0
    %2057 = vmatpush2.xpose.msra.mxu0 0.0
    %2058 = vmatprep.subr.mxu0 0.0
    %2059 = vmatpush2.xpose.msra.mxu0 0.0
    %2060 = vmatprep.subr.mxu0 0.0
    %2061 = vmatpush2.xpose.msra.mxu0 0.0
    %2062 = vmatprep.subr.mxu0 0.0
    %2063 = vmatpush2.xpose.msra.mxu0 0.0
    %2064 = vmatprep.subr.mxu0 0.0
    %2065 = vmatpush2.xpose.msra.mxu0 0.0
    %2066 = vmatprep.mubr.f32.mxu0 0.0
    %2067 = vmatmul.mubr.f32.gmra.mxu0 %v2000
    %v2068 = vpop.f32.mrf.mxu0
    %v2069 = vadd.f32 0.0, %v2068
    %v2070 = vpop.f32.mrf.mxu0
    %2071 = vdwg.mxu0
    %v2073 = vsel %vm565, %v1995, 0
    %2075 = vmatprep.subr.mxu0 0.0
    %2076 = vmatpush1.msra.mxu0 0.0
    %2077 = vmatprep.subr.mxu0 0.0
    %2078 = vmatpush1.msra.mxu0 0.0
    %2079 = vmatprep.subr.mxu0 0.0
    %2080 = vmatpush1.msra.mxu0 0.0
    %2081 = vmatprep.subr.mxu0 0.0
    %2082 = vmatpush1.msra.mxu0 0.0
    %2083 = vmatprep.subr.mxu0 0.0
    %2084 = vmatpush1.msra.mxu0 0.0
    %2085 = vmatprep.subr.mxu0 0.0
    %2086 = vmatpush1.msra.mxu0 0.0
    %2087 = vmatprep.subr.mxu0 0.0
    %2088 = vmatpush1.msra.mxu0 0.0
    %2089 = vmatprep.subr.mxu0 0.0
    %2090 = vmatpush1.msra.mxu0 0.0
    %2091 = vmatprep.subr.mxu0 0.0
    %2092 = vmatpush1.msra.mxu0 0.0
    %2093 = vmatprep.subr.mxu0 0.0
    %2094 = vmatpush1.msra.mxu0 0.0
    %2095 = vmatprep.subr.mxu0 0.0
    %2096 = vmatpush1.msra.mxu0 0.0
    %2097 = vmatprep.subr.mxu0 0.0
    %2098 = vmatpush1.msra.mxu0 0.0
    %2099 = vmatprep.subr.mxu0 0.0
    %2100 = vmatpush1.msra.mxu0 0.0
    %2101 = vmatprep.subr.mxu0 0.0
    %2102 = vmatpush1.msra.mxu0 0.0
    %2103 = vmatprep.subr.mxu0 0.0
    %2104 = vmatpush1.msra.mxu0 0.0
    %2105 = vmatprep.subr.mxu0 0.0
    %2106 = vmatpush1.msra.mxu0 %v571
    %2107 = vmatprep.subr.mxu0 0.0
    %2108 = vmatpush2.msra.mxu0 0.0
    %2109 = vmatprep.subr.mxu0 0.0
    %2110 = vmatpush2.msra.mxu0 0.0
    %2111 = vmatprep.subr.mxu0 0.0
    %2112 = vmatpush2.msra.mxu0 0.0
    %2113 = vmatprep.subr.mxu0 0.0
    %2114 = vmatpush2.msra.mxu0 0.0
    %2115 = vmatprep.subr.mxu0 0.0
    %2116 = vmatpush2.msra.mxu0 0.0
    %2117 = vmatprep.subr.mxu0 0.0
    %2118 = vmatpush2.msra.mxu0 0.0
    %2119 = vmatprep.subr.mxu0 0.0
    %2120 = vmatpush2.msra.mxu0 0.0
    %2121 = vmatprep.subr.mxu0 0.0
    %2122 = vmatpush2.msra.mxu0 0.0
    %2123 = vmatprep.subr.mxu0 0.0
    %2124 = vmatpush2.msra.mxu0 0.0
    %2125 = vmatprep.subr.mxu0 0.0
    %2126 = vmatpush2.msra.mxu0 0.0
    %2127 = vmatprep.subr.mxu0 0.0
    %2128 = vmatpush2.msra.mxu0 0.0
    %2129 = vmatprep.subr.mxu0 0.0
    %2130 = vmatpush2.msra.mxu0 0.0
    %2131 = vmatprep.subr.mxu0 0.0
    %2132 = vmatpush2.msra.mxu0 0.0
    %2133 = vmatprep.subr.mxu0 0.0
    %2134 = vmatpush2.msra.mxu0 0.0
    %2135 = vmatprep.subr.mxu0 0.0
    %2136 = vmatpush2.msra.mxu0 0.0
    %2137 = vmatprep.subr.mxu0 0.0
    %2138 = vmatpush2.msra.mxu0 0.0
    %2139 = vmatprep.mubr.f32.mxu0 0.0
    %2140 = vmatmul.mubr.f32.gmra.mxu0 %v2073
    %v2141 = vpop.f32.mrf.mxu0
    %v2142 = vadd.f32 0.0, %v2141
    %v2143 = vpop.f32.mrf.mxu0
    %2144 = vdwg.mxu0
    %v2146 = vsel %vm565, %v2069, 0
    %2148 = vmatprep.subr.mxu0 0.0
    %2149 = vmatpush1.msra.mxu0 0.0
    %2150 = vmatprep.subr.mxu0 0.0
    %2151 = vmatpush1.msra.mxu0 0.0
    %2152 = vmatprep.subr.mxu0 0.0
    %2153 = vmatpush1.msra.mxu0 0.0
    %2154 = vmatprep.subr.mxu0 0.0
    %2155 = vmatpush1.msra.mxu0 0.0
    %2156 = vmatprep.subr.mxu0 0.0
    %2157 = vmatpush1.msra.mxu0 0.0
    %2158 = vmatprep.subr.mxu0 0.0
    %2159 = vmatpush1.msra.mxu0 0.0
    %2160 = vmatprep.subr.mxu0 0.0
    %2161 = vmatpush1.msra.mxu0 0.0
    %2162 = vmatprep.subr.mxu0 0.0
    %2163 = vmatpush1.msra.mxu0 0.0
    %2164 = vmatprep.subr.mxu0 0.0
    %2165 = vmatpush1.msra.mxu0 0.0
    %2166 = vmatprep.subr.mxu0 0.0
    %2167 = vmatpush1.msra.mxu0 0.0
    %2168 = vmatprep.subr.mxu0 0.0
    %2169 = vmatpush1.msra.mxu0 0.0
    %2170 = vmatprep.subr.mxu0 0.0
    %2171 = vmatpush1.msra.mxu0 0.0
    %2172 = vmatprep.subr.mxu0 0.0
    %2173 = vmatpush1.msra.mxu0 0.0
    %2174 = vmatprep.subr.mxu0 0.0
    %2175 = vmatpush1.msra.mxu0 0.0
    %2176 = vmatprep.subr.mxu0 0.0
    %2177 = vmatpush1.msra.mxu0 0.0
    %2178 = vmatprep.subr.mxu0 0.0
    %2179 = vmatpush1.msra.mxu0 %v571
    %2180 = vmatprep.subr.mxu0 0.0
    %2181 = vmatpush2.msra.mxu0 0.0
    %2182 = vmatprep.subr.mxu0 0.0
    %2183 = vmatpush2.msra.mxu0 0.0
    %2184 = vmatprep.subr.mxu0 0.0
    %2185 = vmatpush2.msra.mxu0 0.0
    %2186 = vmatprep.subr.mxu0 0.0
    %2187 = vmatpush2.msra.mxu0 0.0
    %2188 = vmatprep.subr.mxu0 0.0
    %2189 = vmatpush2.msra.mxu0 0.0
    %2190 = vmatprep.subr.mxu0 0.0
    %2191 = vmatpush2.msra.mxu0 0.0
    %2192 = vmatprep.subr.mxu0 0.0
    %2193 = vmatpush2.msra.mxu0 0.0
    %2194 = vmatprep.subr.mxu0 0.0
    %2195 = vmatpush2.msra.mxu0 0.0
    %2196 = vmatprep.subr.mxu0 0.0
    %2197 = vmatpush2.msra.mxu0 0.0
    %2198 = vmatprep.subr.mxu0 0.0
    %2199 = vmatpush2.msra.mxu0 0.0
    %2200 = vmatprep.subr.mxu0 0.0
    %2201 = vmatpush2.msra.mxu0 0.0
    %2202 = vmatprep.subr.mxu0 0.0
    %2203 = vmatpush2.msra.mxu0 0.0
    %2204 = vmatprep.subr.mxu0 0.0
    %2205 = vmatpush2.msra.mxu0 0.0
    %2206 = vmatprep.subr.mxu0 0.0
    %2207 = vmatpush2.msra.mxu0 0.0
    %2208 = vmatprep.subr.mxu0 0.0
    %2209 = vmatpush2.msra.mxu0 0.0
    %2210 = vmatprep.subr.mxu0 0.0
    %2211 = vmatpush2.msra.mxu0 0.0
    %2212 = vmatprep.mubr.f32.mxu0 0.0
    %2213 = vmatmul.mubr.f32.gmra.mxu0 %v2146
    %v2214 = vpop.f32.mrf.mxu0
    %v2215 = vadd.f32 0.0, %v2214
    %v2216 = vpop.f32.mrf.mxu0
    %2217 = vdwg.mxu0
    %v2218 = vmul.f32 %v2142, 0.001953125
    %v2219 = vmul.f32 %v2215, 0.001953125
    %v2220 = vmul.f32 %v2218, %v2218
    %v2221 = vsub.f32 %v2219, %v2220
    %v2222 = vmax.f32 %v2221, 0.0
    %v2223 = vadd.f32 %v2222, 1e-05
    %v2224 = vrsqrt.pop %v2223
    %v2225 = vlaneseq
    %v2226 = vshrl.u32 %v2225, 7
    %v2227 = vsub.s32 4, %v2226
    %v2228 = vrot.slane %v137, %v2227
    %v2229 = vmul.f32 %v2224, %v2228
    %v2230 = vmul.f32 %v2218, %v2229
    %v2231 = vlaneseq
    %v2232 = vshrl.u32 %v2231, 7
    %v2233 = vsub.s32 5, %v2232
    %v2234 = vrot.slane %v137, %v2233
    %v2235 = vsub.f32 %v2234, %v2230
    %v2238 = vunpack.c.l.s4 1966171168
    %v2239 = vunpack.c.0.s8 %v2238
    %v2240 = vlaneseq
    %v2241 = vshrl.u32 %v2240, 7
    %v2242 = vsub.s32 %v2239, %v2241
    %v2243 = vrot.slane %v2229, %v2242
    %v2244 = vcombine.high %v2243, %v2243
    %v2246 = vunpack.c.l.s4 1966171168
    %v2247 = vunpack.c.0.s8 %v2246
    %v2248 = vlaneseq
    %v2249 = vshrl.u32 %v2248, 7
    %v2250 = vsub.s32 %v2247, %v2249
    %v2251 = vrot.slane %v2243, %v2250
    %v2253 = vunpack.c.l.s4 1966171168
    %v2254 = vunpack.c.0.s8 %v2253
    %v2255 = vlaneseq
    %v2256 = vshrl.u32 %v2255, 7
    %v2257 = vsub.s32 %v2254, %v2256
    %v2258 = vrot.slane %v2244, %v2257
    %v2259 = vlaneseq
    %v2260 = vshrl.u32 %v2259, 7
    %v2261 = vsub.s32 0, %v2260
    %v2262 = vrot.slane %v2251, %v2261
    %v2263 = vlaneseq
    %v2264 = vshrl.u32 %v2263, 7
    %v2265 = vsub.s32 0, %v2264
    %v2266 = vrot.slane %v2258, %v2265
    %v2269 = vmul.f32 %v1888, %v2262
    %v2270 = vmul.f32 %v1889, %v2262
    %v2271 = vmul.f32 %v1890, %v2266
    %v2272 = vmul.f32 %v1891, %v2266
    %v2275 = vunpack.c.l.s4 1966171168
    %v2276 = vunpack.c.0.s8 %v2275
    %v2277 = vlaneseq
    %v2278 = vshrl.u32 %v2277, 7
    %v2279 = vsub.s32 %v2276, %v2278
    %v2280 = vrot.slane %v2235, %v2279
    %v2281 = vcombine.high %v2280, %v2280
    %v2283 = vunpack.c.l.s4 1966171168
    %v2284 = vunpack.c.0.s8 %v2283
    %v2285 = vlaneseq
    %v2286 = vshrl.u32 %v2285, 7
    %v2287 = vsub.s32 %v2284, %v2286
    %v2288 = vrot.slane %v2280, %v2287
    %v2290 = vunpack.c.l.s4 1966171168
    %v2291 = vunpack.c.0.s8 %v2290
    %v2292 = vlaneseq
    %v2293 = vshrl.u32 %v2292, 7
    %v2294 = vsub.s32 %v2291, %v2293
    %v2295 = vrot.slane %v2281, %v2294
    %v2296 = vlaneseq
    %v2297 = vshrl.u32 %v2296, 7
    %v2298 = vsub.s32 0, %v2297
    %v2299 = vrot.slane %v2288, %v2298
    %v2300 = vlaneseq
    %v2301 = vshrl.u32 %v2300, 7
    %v2302 = vsub.s32 0, %v2301
    %v2303 = vrot.slane %v2295, %v2302
    %v2306 = vadd.f32 %v2269, %v2299
    %v2307 = vadd.f32 %v2270, %v2299
    %v2308 = vadd.f32 %v2271, %v2303
    %v2309 = vadd.f32 %v2272, %v2303
    %v2310 = vmax.f32 %v2306, 0.0
    %v2311 = vmax.f32 %v2307, 0.0
    %v2312 = vmax.f32 %v2308, 0.0
    %v2313 = vmax.f32 %v2309, 0.0
    %v2314 = vlaneseq
    %v2315 = vshrl.u32 %v2314, 7
    %v2316 = vsub.s32 0, %v2315
    %v2317 = vrot.slane %v206, %v2316
    %v2318 = vlaneseq
    %v2319 = vshrl.u32 %v2318, 7
    %v2320 = vsub.s32 0, %v2319
    %v2321 = vrot.slane %v207, %v2320
    %v2322 = vlaneseq
    %v2323 = vshrl.u32 %v2322, 7
    %v2324 = vsub.s32 0, %v2323
    %v2325 = vrot.slane %v208, %v2324
    %v2326 = vlaneseq
    %v2327 = vshrl.u32 %v2326, 7
    %v2328 = vsub.s32 0, %v2327
    %v2329 = vrot.slane %v209, %v2328
    %2330 = vmatprep.subr.mxu0 %v199
    %2331 = vmatpush1.msra.mxu0 %v198
    %2332 = vmatprep.subr.mxu0 %v195
    %2333 = vmatpush1.msra.mxu0 %v194
    %2334 = vmatprep.subr.mxu0 %v191
    %2335 = vmatpush1.msra.mxu0 %v190
    %2336 = vmatprep.subr.mxu0 %v187
    %2337 = vmatpush1.msra.mxu0 %v186
    %2338 = vmatprep.subr.mxu0 %v183
    %2339 = vmatpush1.msra.mxu0 %v182
    %2340 = vmatprep.subr.mxu0 %v179
    %2341 = vmatpush1.msra.mxu0 %v178
    %2342 = vmatprep.subr.mxu0 %v175
    %2343 = vmatpush1.msra.mxu0 %v174
    %2344 = vmatprep.subr.mxu0 %v171
    %2345 = vmatpush1.msra.mxu0 %v170
    %2346 = vmatprep.subr.mxu0 %v167
    %2347 = vmatpush1.msra.mxu0 %v166
    %2348 = vmatprep.subr.mxu0 %v163
    %2349 = vmatpush1.msra.mxu0 %v162
    %2350 = vmatprep.subr.mxu0 %v159
    %2351 = vmatpush1.msra.mxu0 %v158
    %2352 = vmatprep.subr.mxu0 %v155
    %2353 = vmatpush1.msra.mxu0 %v154
    %2354 = vmatprep.subr.mxu0 %v151
    %2355 = vmatpush1.msra.mxu0 %v150
    %2356 = vmatprep.subr.mxu0 %v147
    %2357 = vmatpush1.msra.mxu0 %v146
    %2358 = vmatprep.subr.mxu0 %v143
    %2359 = vmatpush1.msra.mxu0 %v142
    %2360 = vmatprep.subr.mxu0 %v139
    %2361 = vmatpush1.msra.mxu0 %v138
    %2362 = vmatprep.subr.mxu0 0.0
    %2363 = vmatpush2.msra.mxu0 0.0
    %2364 = vmatprep.subr.mxu0 0.0
    %2365 = vmatpush2.msra.mxu0 0.0
    %2366 = vmatprep.subr.mxu0 0.0
    %2367 = vmatpush2.msra.mxu0 0.0
    %2368 = vmatprep.subr.mxu0 0.0
    %2369 = vmatpush2.msra.mxu0 0.0
    %2370 = vmatprep.subr.mxu0 0.0
    %2371 = vmatpush2.msra.mxu0 0.0
    %2372 = vmatprep.subr.mxu0 0.0
    %2373 = vmatpush2.msra.mxu0 0.0
    %2374 = vmatprep.subr.mxu0 0.0
    %2375 = vmatpush2.msra.mxu0 0.0
    %2376 = vmatprep.subr.mxu0 0.0
    %2377 = vmatpush2.msra.mxu0 0.0
    %2378 = vmatprep.subr.mxu0 0.0
    %2379 = vmatpush2.msra.mxu0 0.0
    %2380 = vmatprep.subr.mxu0 0.0
    %2381 = vmatpush2.msra.mxu0 0.0
    %2382 = vmatprep.subr.mxu0 0.0
    %2383 = vmatpush2.msra.mxu0 0.0
    %2384 = vmatprep.subr.mxu0 0.0
    %2385 = vmatpush2.msra.mxu0 0.0
    %2386 = vmatprep.subr.mxu0 0.0
    %2387 = vmatpush2.msra.mxu0 0.0
    %2388 = vmatprep.subr.mxu0 0.0
    %2389 = vmatpush2.msra.mxu0 0.0
    %2390 = vmatprep.subr.mxu0 0.0
    %2391 = vmatpush2.msra.mxu0 0.0
    %2392 = vmatprep.subr.mxu0 0.0
    %2393 = vmatpush2.msra.mxu0 0.0
    %2394 = vmatprep.mubr.f32.mxu0 0.0
    %2395 = vmatmul.mubr.f32.gmra.mxu0 %v2310
    %v2396 = vpop.f32.mrf.mxu0
    %v2397 = vadd.f32 %v2317, %v2396
    %v2398 = vpop.f32.mrf.mxu0
    %v2399 = vadd.f32 %v2321, %v2398
    %2400 = vmatprep.mubr.f32.mxu0 0.0
    %2401 = vmatmul.mubr.f32.gmra.mxu0 %v2311
    %v2402 = vpop.f32.mrf.mxu0
    %v2403 = vadd.f32 %v2317, %v2402
    %v2404 = vpop.f32.mrf.mxu0
    %v2405 = vadd.f32 %v2321, %v2404
    %2406 = vmatprep.mubr.f32.mxu0 0.0
    %2407 = vmatmul.mubr.f32.gmra.mxu0 %v2312
    %v2408 = vpop.f32.mrf.mxu0
    %v2409 = vadd.f32 %v2317, %v2408
    %v2410 = vpop.f32.mrf.mxu0
    %v2411 = vadd.f32 %v2321, %v2410
    %2412 = vmatprep.mubr.f32.mxu0 0.0
    %2413 = vmatmul.mubr.f32.gmra.mxu0 %v2313
    %v2414 = vpop.f32.mrf.mxu0
    %v2415 = vadd.f32 %v2317, %v2414
    %v2416 = vpop.f32.mrf.mxu0
    %v2417 = vadd.f32 %v2321, %v2416
    %2418 = vdwg.mxu0
    %2419 = vmatprep.subr.mxu0 %v201
    %2420 = vmatpush1.msra.mxu0 %v200
    %2421 = vmatprep.subr.mxu0 %v197
    %2422 = vmatpush1.msra.mxu0 %v196
    %2423 = vmatprep.subr.mxu0 %v193
    %2424 = vmatpush1.msra.mxu0 %v192
    %2425 = vmatprep.subr.mxu0 %v189
    %2426 = vmatpush1.msra.mxu0 %v188
    %2427 = vmatprep.subr.mxu0 %v185
    %2428 = vmatpush1.msra.mxu0 %v184
    %2429 = vmatprep.subr.mxu0 %v181
    %2430 = vmatpush1.msra.mxu0 %v180
    %2431 = vmatprep.subr.mxu0 %v177
    %2432 = vmatpush1.msra.mxu0 %v176
    %2433 = vmatprep.subr.mxu0 %v173
    %2434 = vmatpush1.msra.mxu0 %v172
    %2435 = vmatprep.subr.mxu0 %v169
    %2436 = vmatpush1.msra.mxu0 %v168
    %2437 = vmatprep.subr.mxu0 %v165
    %2438 = vmatpush1.msra.mxu0 %v164
    %2439 = vmatprep.subr.mxu0 %v161
    %2440 = vmatpush1.msra.mxu0 %v160
    %2441 = vmatprep.subr.mxu0 %v157
    %2442 = vmatpush1.msra.mxu0 %v156
    %2443 = vmatprep.subr.mxu0 %v153
    %2444 = vmatpush1.msra.mxu0 %v152
    %2445 = vmatprep.subr.mxu0 %v149
    %2446 = vmatpush1.msra.mxu0 %v148
    %2447 = vmatprep.subr.mxu0 %v145
    %2448 = vmatpush1.msra.mxu0 %v144
    %2449 = vmatprep.subr.mxu0 %v141
    %2450 = vmatpush1.msra.mxu0 %v140
    %2451 = vmatprep.subr.mxu0 0.0
    %2452 = vmatpush2.msra.mxu0 0.0
    %2453 = vmatprep.subr.mxu0 0.0
    %2454 = vmatpush2.msra.mxu0 0.0
    %2455 = vmatprep.subr.mxu0 0.0
    %2456 = vmatpush2.msra.mxu0 0.0
    %2457 = vmatprep.subr.mxu0 0.0
    %2458 = vmatpush2.msra.mxu0 0.0
    %2459 = vmatprep.subr.mxu0 0.0
    %2460 = vmatpush2.msra.mxu0 0.0
    %2461 = vmatprep.subr.mxu0 0.0
    %2462 = vmatpush2.msra.mxu0 0.0
    %2463 = vmatprep.subr.mxu0 0.0
    %2464 = vmatpush2.msra.mxu0 0.0
    %2465 = vmatprep.subr.mxu0 0.0
    %2466 = vmatpush2.msra.mxu0 0.0
    %2467 = vmatprep.subr.mxu0 0.0
    %2468 = vmatpush2.msra.mxu0 0.0
    %2469 = vmatprep.subr.mxu0 0.0
    %2470 = vmatpush2.msra.mxu0 0.0
    %2471 = vmatprep.subr.mxu0 0.0
    %2472 = vmatpush2.msra.mxu0 0.0
    %2473 = vmatprep.subr.mxu0 0.0
    %2474 = vmatpush2.msra.mxu0 0.0
    %2475 = vmatprep.subr.mxu0 0.0
    %2476 = vmatpush2.msra.mxu0 0.0
    %2477 = vmatprep.subr.mxu0 0.0
    %2478 = vmatpush2.msra.mxu0 0.0
    %2479 = vmatprep.subr.mxu0 0.0
    %2480 = vmatpush2.msra.mxu0 0.0
    %2481 = vmatprep.subr.mxu0 0.0
    %2482 = vmatpush2.msra.mxu0 0.0
    %2483 = vmatprep.mubr.f32.mxu0 0.0
    %2484 = vmatmul.mubr.f32.gmra.mxu0 %v2310
    %v2485 = vpop.f32.mrf.mxu0
    %v2486 = vadd.f32 %v2325, %v2485
    %v2487 = vpop.f32.mrf.mxu0
    %v2488 = vadd.f32 %v2329, %v2487
    %2489 = vmatprep.mubr.f32.mxu0 0.0
    %2490 = vmatmul.mubr.f32.gmra.mxu0 %v2311
    %v2491 = vpop.f32.mrf.mxu0
    %v2492 = vadd.f32 %v2325, %v2491
    %v2493 = vpop.f32.mrf.mxu0
    %v2494 = vadd.f32 %v2329, %v2493
    %2495 = vmatprep.mubr.f32.mxu0 0.0
    %2496 = vmatmul.mubr.f32.gmra.mxu0 %v2312
    %v2497 = vpop.f32.mrf.mxu0
    %v2498 = vadd.f32 %v2325, %v2497
    %v2499 = vpop.f32.mrf.mxu0
    %v2500 = vadd.f32 %v2329, %v2499
    %2501 = vmatprep.mubr.f32.mxu0 0.0
    %2502 = vmatmul.mubr.f32.gmra.mxu0 %v2313
    %v2503 = vpop.f32.mrf.mxu0
    %v2504 = vadd.f32 %v2325, %v2503
    %v2505 = vpop.f32.mrf.mxu0
    %v2506 = vadd.f32 %v2329, %v2505
    %2507 = vdwg.mxu0
    %v2508 = vadd.f32 %v2397, %v2403
    %v2509 = vrot.slane %v2508, 4
    %v2510 = vadd.f32 %v2508, %v2509
    %v2511 = vrot.slane %v2510, 2
    %v2512 = vadd.f32 %v2510, %v2511
    %v2513 = vrot.slane %v2512, 1
    %v2514 = vadd.f32 %v2512, %v2513
    %v2515 = vadd.f32 %v2399, %v2405
    %v2516 = vrot.slane %v2515, 4
    %v2517 = vadd.f32 %v2515, %v2516
    %v2518 = vrot.slane %v2517, 2
    %v2519 = vadd.f32 %v2517, %v2518
    %v2520 = vrot.slane %v2519, 1
    %v2521 = vadd.f32 %v2519, %v2520
    %v2522 = vadd.f32 %v2486, %v2492
    %v2523 = vrot.slane %v2522, 4
    %v2524 = vadd.f32 %v2522, %v2523
    %v2525 = vrot.slane %v2524, 2
    %v2526 = vadd.f32 %v2524, %v2525
    %v2527 = vrot.slane %v2526, 1
    %v2528 = vadd.f32 %v2526, %v2527
    %v2529 = vadd.f32 %v2488, %v2494
    %v2530 = vrot.slane %v2529, 4
    %v2531 = vadd.f32 %v2529, %v2530
    %v2532 = vrot.slane %v2531, 2
    %v2533 = vadd.f32 %v2531, %v2532
    %v2534 = vrot.slane %v2533, 1
    %v2535 = vadd.f32 %v2533, %v2534
    %v2536 = vadd.f32 %v2409, %v2415
    %v2537 = vrot.slane %v2536, 4
    %v2538 = vadd.f32 %v2536, %v2537
    %v2539 = vrot.slane %v2538, 2
    %v2540 = vadd.f32 %v2538, %v2539
    %v2541 = vrot.slane %v2540, 1
    %v2542 = vadd.f32 %v2540, %v2541
    %v2543 = vadd.f32 %v2411, %v2417
    %v2544 = vrot.slane %v2543, 4
    %v2545 = vadd.f32 %v2543, %v2544
    %v2546 = vrot.slane %v2545, 2
    %v2547 = vadd.f32 %v2545, %v2546
    %v2548 = vrot.slane %v2547, 1
    %v2549 = vadd.f32 %v2547, %v2548
    %v2550 = vadd.f32 %v2498, %v2504
    %v2551 = vrot.slane %v2550, 4
    %v2552 = vadd.f32 %v2550, %v2551
    %v2553 = vrot.slane %v2552, 2
    %v2554 = vadd.f32 %v2552, %v2553
    %v2555 = vrot.slane %v2554, 1
    %v2556 = vadd.f32 %v2554, %v2555
    %v2557 = vadd.f32 %v2500, %v2506
    %v2558 = vrot.slane %v2557, 4
    %v2559 = vadd.f32 %v2557, %v2558
    %v2560 = vrot.slane %v2559, 2
    %v2561 = vadd.f32 %v2559, %v2560
    %v2562 = vrot.slane %v2561, 1
    %v2563 = vadd.f32 %v2561, %v2562
    %v2564 = vmul.f32 %v2397, %v2397
    %v2565 = vmul.f32 %v2399, %v2399
    %v2566 = vmul.f32 %v2486, %v2486
    %v2567 = vmul.f32 %v2488, %v2488
    %v2568 = vmul.f32 %v2403, %v2403
    %v2569 = vmul.f32 %v2405, %v2405
    %v2570 = vmul.f32 %v2492, %v2492
    %v2571 = vmul.f32 %v2494, %v2494
    %v2572 = vmul.f32 %v2409, %v2409
    %v2573 = vmul.f32 %v2411, %v2411
    %v2574 = vmul.f32 %v2498, %v2498
    %v2575 = vmul.f32 %v2500, %v2500
    %v2576 = vmul.f32 %v2415, %v2415
    %v2577 = vmul.f32 %v2417, %v2417
    %v2578 = vmul.f32 %v2504, %v2504
    %v2579 = vmul.f32 %v2506, %v2506
    %v2580 = vadd.f32 %v2564, %v2568
    %v2581 = vrot.slane %v2580, 4
    %v2582 = vadd.f32 %v2580, %v2581
    %v2583 = vrot.slane %v2582, 2
    %v2584 = vadd.f32 %v2582, %v2583
    %v2585 = vrot.slane %v2584, 1
    %v2586 = vadd.f32 %v2584, %v2585
    %v2587 = vadd.f32 %v2565, %v2569
    %v2588 = vrot.slane %v2587, 4
    %v2589 = vadd.f32 %v2587, %v2588
    %v2590 = vrot.slane %v2589, 2
    %v2591 = vadd.f32 %v2589, %v2590
    %v2592 = vrot.slane %v2591, 1
    %v2593 = vadd.f32 %v2591, %v2592
    %v2594 = vadd.f32 %v2566, %v2570
    %v2595 = vrot.slane %v2594, 4
    %v2596 = vadd.f32 %v2594, %v2595
    %v2597 = vrot.slane %v2596, 2
    %v2598 = vadd.f32 %v2596, %v2597
    %v2599 = vrot.slane %v2598, 1
    %v2600 = vadd.f32 %v2598, %v2599
    %v2601 = vadd.f32 %v2567, %v2571
    %v2602 = vrot.slane %v2601, 4
    %v2603 = vadd.f32 %v2601, %v2602
    %v2604 = vrot.slane %v2603, 2
    %v2605 = vadd.f32 %v2603, %v2604
    %v2606 = vrot.slane %v2605, 1
    %v2607 = vadd.f32 %v2605, %v2606
    %v2608 = vadd.f32 %v2572, %v2576
    %v2609 = vrot.slane %v2608, 4
    %v2610 = vadd.f32 %v2608, %v2609
    %v2611 = vrot.slane %v2610, 2
    %v2612 = vadd.f32 %v2610, %v2611
    %v2613 = vrot.slane %v2612, 1
    %v2614 = vadd.f32 %v2612, %v2613
    %v2615 = vadd.f32 %v2573, %v2577
    %v2616 = vrot.slane %v2615, 4
    %v2617 = vadd.f32 %v2615, %v2616
    %v2618 = vrot.slane %v2617, 2
    %v2619 = vadd.f32 %v2617, %v2618
    %v2620 = vrot.slane %v2619, 1
    %v2621 = vadd.f32 %v2619, %v2620
    %v2622 = vadd.f32 %v2574, %v2578
    %v2623 = vrot.slane %v2622, 4
    %v2624 = vadd.f32 %v2622, %v2623
    %v2625 = vrot.slane %v2624, 2
    %v2626 = vadd.f32 %v2624, %v2625
    %v2627 = vrot.slane %v2626, 1
    %v2628 = vadd.f32 %v2626, %v2627
    %v2629 = vadd.f32 %v2575, %v2579
    %v2630 = vrot.slane %v2629, 4
    %v2631 = vadd.f32 %v2629, %v2630
    %v2632 = vrot.slane %v2631, 2
    %v2633 = vadd.f32 %v2631, %v2632
    %v2634 = vrot.slane %v2633, 1
    %v2635 = vadd.f32 %v2633, %v2634
    %v2644 = vsel %vm418, %v2542, %v2514
    %v2645 = vsel %vm418, %v2549, %v2521
    %v2646 = vsel %vm418, %v2556, %v2528
    %v2647 = vsel %vm418, %v2563, %v2535
    %2652 = vmatprep.subr.mxu0 0.0
    %2653 = vmatpush1.xpose.msra.mxu0 0.0
    %2654 = vmatprep.subr.mxu0 0.0
    %2655 = vmatpush1.xpose.msra.mxu0 0.0
    %2656 = vmatprep.subr.mxu0 0.0
    %2657 = vmatpush1.xpose.msra.mxu0 0.0
    %2658 = vmatprep.subr.mxu0 0.0
    %2659 = vmatpush1.xpose.msra.mxu0 0.0
    %2660 = vmatprep.subr.mxu0 0.0
    %2661 = vmatpush1.xpose.msra.mxu0 0.0
    %2662 = vmatprep.subr.mxu0 0.0
    %2663 = vmatpush1.xpose.msra.mxu0 0.0
    %2664 = vmatprep.subr.mxu0 0.0
    %2665 = vmatpush1.xpose.msra.mxu0 0.0
    %2666 = vmatprep.subr.mxu0 0.0
    %2667 = vmatpush1.xpose.msra.mxu0 0.0
    %2668 = vmatprep.subr.mxu0 0.0
    %2669 = vmatpush1.xpose.msra.mxu0 0.0
    %2670 = vmatprep.subr.mxu0 0.0
    %2671 = vmatpush1.xpose.msra.mxu0 0.0
    %2672 = vmatprep.subr.mxu0 0.0
    %2673 = vmatpush1.xpose.msra.mxu0 0.0
    %2674 = vmatprep.subr.mxu0 0.0
    %2675 = vmatpush1.xpose.msra.mxu0 0.0
    %2676 = vmatprep.subr.mxu0 0.0
    %2677 = vmatpush1.xpose.msra.mxu0 0.0
    %2678 = vmatprep.subr.mxu0 0.0
    %2679 = vmatpush1.xpose.msra.mxu0 0.0
    %2680 = vmatprep.subr.mxu0 0.0
    %2681 = vmatpush1.xpose.msra.mxu0 0.0
    %2682 = vmatprep.subr.mxu0 %v203
    %2683 = vmatpush1.xpose.msra.mxu0 %v202
    %2684 = vmatprep.subr.mxu0 0.0
    %2685 = vmatpush2.xpose.msra.mxu0 0.0
    %2686 = vmatprep.subr.mxu0 0.0
    %2687 = vmatpush2.xpose.msra.mxu0 0.0
    %2688 = vmatprep.subr.mxu0 0.0
    %2689 = vmatpush2.xpose.msra.mxu0 0.0
    %2690 = vmatprep.subr.mxu0 0.0
    %2691 = vmatpush2.xpose.msra.mxu0 0.0
    %2692 = vmatprep.subr.mxu0 0.0
    %2693 = vmatpush2.xpose.msra.mxu0 0.0
    %2694 = vmatprep.subr.mxu0 0.0
    %2695 = vmatpush2.xpose.msra.mxu0 0.0
    %2696 = vmatprep.subr.mxu0 0.0
    %2697 = vmatpush2.xpose.msra.mxu0 0.0
    %2698 = vmatprep.subr.mxu0 0.0
    %2699 = vmatpush2.xpose.msra.mxu0 0.0
    %2700 = vmatprep.subr.mxu0 0.0
    %2701 = vmatpush2.xpose.msra.mxu0 0.0
    %2702 = vmatprep.subr.mxu0 0.0
    %2703 = vmatpush2.xpose.msra.mxu0 0.0
    %2704 = vmatprep.subr.mxu0 0.0
    %2705 = vmatpush2.xpose.msra.mxu0 0.0
    %2706 = vmatprep.subr.mxu0 0.0
    %2707 = vmatpush2.xpose.msra.mxu0 0.0
    %2708 = vmatprep.subr.mxu0 0.0
    %2709 = vmatpush2.xpose.msra.mxu0 0.0
    %2710 = vmatprep.subr.mxu0 0.0
    %2711 = vmatpush2.xpose.msra.mxu0 0.0
    %2712 = vmatprep.subr.mxu0 0.0
    %2713 = vmatpush2.xpose.msra.mxu0 0.0
    %2714 = vmatprep.subr.mxu0 0.0
    %2715 = vmatpush2.xpose.msra.mxu0 0.0
    %2716 = vmatprep.mubr.f32.mxu0 %v2645
    %2717 = vmatmul.mubr.f32.gmra.mxu0 %v2644
    %v2718 = vpop.f32.mrf.mxu0
    %v2719 = vadd.f32 0.0, %v2718
    %v2720 = vpop.f32.mrf.mxu0
    %2721 = vdwg.mxu0
    %2722 = vmatprep.subr.mxu0 0.0
    %2723 = vmatpush1.xpose.msra.mxu0 0.0
    %2724 = vmatprep.subr.mxu0 0.0
    %2725 = vmatpush1.xpose.msra.mxu0 0.0
    %2726 = vmatprep.subr.mxu0 0.0
    %2727 = vmatpush1.xpose.msra.mxu0 0.0
    %2728 = vmatprep.subr.mxu0 0.0
    %2729 = vmatpush1.xpose.msra.mxu0 0.0
    %2730 = vmatprep.subr.mxu0 0.0
    %2731 = vmatpush1.xpose.msra.mxu0 0.0
    %2732 = vmatprep.subr.mxu0 0.0
    %2733 = vmatpush1.xpose.msra.mxu0 0.0
    %2734 = vmatprep.subr.mxu0 0.0
    %2735 = vmatpush1.xpose.msra.mxu0 0.0
    %2736 = vmatprep.subr.mxu0 0.0
    %2737 = vmatpush1.xpose.msra.mxu0 0.0
    %2738 = vmatprep.subr.mxu0 0.0
    %2739 = vmatpush1.xpose.msra.mxu0 0.0
    %2740 = vmatprep.subr.mxu0 0.0
    %2741 = vmatpush1.xpose.msra.mxu0 0.0
    %2742 = vmatprep.subr.mxu0 0.0
    %2743 = vmatpush1.xpose.msra.mxu0 0.0
    %2744 = vmatprep.subr.mxu0 0.0
    %2745 = vmatpush1.xpose.msra.mxu0 0.0
    %2746 = vmatprep.subr.mxu0 0.0
    %2747 = vmatpush1.xpose.msra.mxu0 0.0
    %2748 = vmatprep.subr.mxu0 0.0
    %2749 = vmatpush1.xpose.msra.mxu0 0.0
    %2750 = vmatprep.subr.mxu0 0.0
    %2751 = vmatpush1.xpose.msra.mxu0 0.0
    %2752 = vmatprep.subr.mxu0 %v205
    %2753 = vmatpush1.xpose.msra.mxu0 %v204
    %2754 = vmatprep.subr.mxu0 0.0
    %2755 = vmatpush2.xpose.msra.mxu0 0.0
    %2756 = vmatprep.subr.mxu0 0.0
    %2757 = vmatpush2.xpose.msra.mxu0 0.0
    %2758 = vmatprep.subr.mxu0 0.0
    %2759 = vmatpush2.xpose.msra.mxu0 0.0
    %2760 = vmatprep.subr.mxu0 0.0
    %2761 = vmatpush2.xpose.msra.mxu0 0.0
    %2762 = vmatprep.subr.mxu0 0.0
    %2763 = vmatpush2.xpose.msra.mxu0 0.0
    %2764 = vmatprep.subr.mxu0 0.0
    %2765 = vmatpush2.xpose.msra.mxu0 0.0
    %2766 = vmatprep.subr.mxu0 0.0
    %2767 = vmatpush2.xpose.msra.mxu0 0.0
    %2768 = vmatprep.subr.mxu0 0.0
    %2769 = vmatpush2.xpose.msra.mxu0 0.0
    %2770 = vmatprep.subr.mxu0 0.0
    %2771 = vmatpush2.xpose.msra.mxu0 0.0
    %2772 = vmatprep.subr.mxu0 0.0
    %2773 = vmatpush2.xpose.msra.mxu0 0.0
    %2774 = vmatprep.subr.mxu0 0.0
    %2775 = vmatpush2.xpose.msra.mxu0 0.0
    %2776 = vmatprep.subr.mxu0 0.0
    %2777 = vmatpush2.xpose.msra.mxu0 0.0
    %2778 = vmatprep.subr.mxu0 0.0
    %2779 = vmatpush2.xpose.msra.mxu0 0.0
    %2780 = vmatprep.subr.mxu0 0.0
    %2781 = vmatpush2.xpose.msra.mxu0 0.0
    %2782 = vmatprep.subr.mxu0 0.0
    %2783 = vmatpush2.xpose.msra.mxu0 0.0
    %2784 = vmatprep.subr.mxu0 0.0
    %2785 = vmatpush2.xpose.msra.mxu0 0.0
    %2786 = vmatprep.mubr.f32.mxu0 %v2647
    %2787 = vmatmul.mubr.f32.gmra.mxu0 %v2646
    %v2788 = vpop.f32.mrf.mxu0
    %v2789 = vadd.f32 %v2719, %v2788
    %v2790 = vpop.f32.mrf.mxu0
    %2791 = vdwg.mxu0
    %v2800 = vsel %vm418, %v2614, %v2586
    %v2801 = vsel %vm418, %v2621, %v2593
    %v2802 = vsel %vm418, %v2628, %v2600
    %v2803 = vsel %vm418, %v2635, %v2607
    %2808 = vmatprep.subr.mxu0 0.0
    %2809 = vmatpush1.xpose.msra.mxu0 0.0
    %2810 = vmatprep.subr.mxu0 0.0
    %2811 = vmatpush1.xpose.msra.mxu0 0.0
    %2812 = vmatprep.subr.mxu0 0.0
    %2813 = vmatpush1.xpose.msra.mxu0 0.0
    %2814 = vmatprep.subr.mxu0 0.0
    %2815 = vmatpush1.xpose.msra.mxu0 0.0
    %2816 = vmatprep.subr.mxu0 0.0
    %2817 = vmatpush1.xpose.msra.mxu0 0.0
    %2818 = vmatprep.subr.mxu0 0.0
    %2819 = vmatpush1.xpose.msra.mxu0 0.0
    %2820 = vmatprep.subr.mxu0 0.0
    %2821 = vmatpush1.xpose.msra.mxu0 0.0
    %2822 = vmatprep.subr.mxu0 0.0
    %2823 = vmatpush1.xpose.msra.mxu0 0.0
    %2824 = vmatprep.subr.mxu0 0.0
    %2825 = vmatpush1.xpose.msra.mxu0 0.0
    %2826 = vmatprep.subr.mxu0 0.0
    %2827 = vmatpush1.xpose.msra.mxu0 0.0
    %2828 = vmatprep.subr.mxu0 0.0
    %2829 = vmatpush1.xpose.msra.mxu0 0.0
    %2830 = vmatprep.subr.mxu0 0.0
    %2831 = vmatpush1.xpose.msra.mxu0 0.0
    %2832 = vmatprep.subr.mxu0 0.0
    %2833 = vmatpush1.xpose.msra.mxu0 0.0
    %2834 = vmatprep.subr.mxu0 0.0
    %2835 = vmatpush1.xpose.msra.mxu0 0.0
    %2836 = vmatprep.subr.mxu0 0.0
    %2837 = vmatpush1.xpose.msra.mxu0 0.0
    %2838 = vmatprep.subr.mxu0 %v203
    %2839 = vmatpush1.xpose.msra.mxu0 %v202
    %2840 = vmatprep.subr.mxu0 0.0
    %2841 = vmatpush2.xpose.msra.mxu0 0.0
    %2842 = vmatprep.subr.mxu0 0.0
    %2843 = vmatpush2.xpose.msra.mxu0 0.0
    %2844 = vmatprep.subr.mxu0 0.0
    %2845 = vmatpush2.xpose.msra.mxu0 0.0
    %2846 = vmatprep.subr.mxu0 0.0
    %2847 = vmatpush2.xpose.msra.mxu0 0.0
    %2848 = vmatprep.subr.mxu0 0.0
    %2849 = vmatpush2.xpose.msra.mxu0 0.0
    %2850 = vmatprep.subr.mxu0 0.0
    %2851 = vmatpush2.xpose.msra.mxu0 0.0
    %2852 = vmatprep.subr.mxu0 0.0
    %2853 = vmatpush2.xpose.msra.mxu0 0.0
    %2854 = vmatprep.subr.mxu0 0.0
    %2855 = vmatpush2.xpose.msra.mxu0 0.0
    %2856 = vmatprep.subr.mxu0 0.0
    %2857 = vmatpush2.xpose.msra.mxu0 0.0
    %2858 = vmatprep.subr.mxu0 0.0
    %2859 = vmatpush2.xpose.msra.mxu0 0.0
    %2860 = vmatprep.subr.mxu0 0.0
    %2861 = vmatpush2.xpose.msra.mxu0 0.0
    %2862 = vmatprep.subr.mxu0 0.0
    %2863 = vmatpush2.xpose.msra.mxu0 0.0
    %2864 = vmatprep.subr.mxu0 0.0
    %2865 = vmatpush2.xpose.msra.mxu0 0.0
    %2866 = vmatprep.subr.mxu0 0.0
    %2867 = vmatpush2.xpose.msra.mxu0 0.0
    %2868 = vmatprep.subr.mxu0 0.0
    %2869 = vmatpush2.xpose.msra.mxu0 0.0
    %2870 = vmatprep.subr.mxu0 0.0
    %2871 = vmatpush2.xpose.msra.mxu0 0.0
    %2872 = vmatprep.mubr.f32.mxu0 %v2801
    %2873 = vmatmul.mubr.f32.gmra.mxu0 %v2800
    %v2874 = vpop.f32.mrf.mxu0
    %v2875 = vadd.f32 0.0, %v2874
    %v2876 = vpop.f32.mrf.mxu0
    %2877 = vdwg.mxu0
    %2878 = vmatprep.subr.mxu0 0.0
    %2879 = vmatpush1.xpose.msra.mxu0 0.0
    %2880 = vmatprep.subr.mxu0 0.0
    %2881 = vmatpush1.xpose.msra.mxu0 0.0
    %2882 = vmatprep.subr.mxu0 0.0
    %2883 = vmatpush1.xpose.msra.mxu0 0.0
    %2884 = vmatprep.subr.mxu0 0.0
    %2885 = vmatpush1.xpose.msra.mxu0 0.0
    %2886 = vmatprep.subr.mxu0 0.0
    %2887 = vmatpush1.xpose.msra.mxu0 0.0
    %2888 = vmatprep.subr.mxu0 0.0
    %2889 = vmatpush1.xpose.msra.mxu0 0.0
    %2890 = vmatprep.subr.mxu0 0.0
    %2891 = vmatpush1.xpose.msra.mxu0 0.0
    %2892 = vmatprep.subr.mxu0 0.0
    %2893 = vmatpush1.xpose.msra.mxu0 0.0
    %2894 = vmatprep.subr.mxu0 0.0
    %2895 = vmatpush1.xpose.msra.mxu0 0.0
    %2896 = vmatprep.subr.mxu0 0.0
    %2897 = vmatpush1.xpose.msra.mxu0 0.0
    %2898 = vmatprep.subr.mxu0 0.0
    %2899 = vmatpush1.xpose.msra.mxu0 0.0
    %2900 = vmatprep.subr.mxu0 0.0
    %2901 = vmatpush1.xpose.msra.mxu0 0.0
    %2902 = vmatprep.subr.mxu0 0.0
    %2903 = vmatpush1.xpose.msra.mxu0 0.0
    %2904 = vmatprep.subr.mxu0 0.0
    %2905 = vmatpush1.xpose.msra.mxu0 0.0
    %2906 = vmatprep.subr.mxu0 0.0
    %2907 = vmatpush1.xpose.msra.mxu0 0.0
    %2908 = vmatprep.subr.mxu0 %v205
    %2909 = vmatpush1.xpose.msra.mxu0 %v204
    %2910 = vmatprep.subr.mxu0 0.0
    %2911 = vmatpush2.xpose.msra.mxu0 0.0
    %2912 = vmatprep.subr.mxu0 0.0
    %2913 = vmatpush2.xpose.msra.mxu0 0.0
    %2914 = vmatprep.subr.mxu0 0.0
    %2915 = vmatpush2.xpose.msra.mxu0 0.0
    %2916 = vmatprep.subr.mxu0 0.0
    %2917 = vmatpush2.xpose.msra.mxu0 0.0
    %2918 = vmatprep.subr.mxu0 0.0
    %2919 = vmatpush2.xpose.msra.mxu0 0.0
    %2920 = vmatprep.subr.mxu0 0.0
    %2921 = vmatpush2.xpose.msra.mxu0 0.0
    %2922 = vmatprep.subr.mxu0 0.0
    %2923 = vmatpush2.xpose.msra.mxu0 0.0
    %2924 = vmatprep.subr.mxu0 0.0
    %2925 = vmatpush2.xpose.msra.mxu0 0.0
    %2926 = vmatprep.subr.mxu0 0.0
    %2927 = vmatpush2.xpose.msra.mxu0 0.0
    %2928 = vmatprep.subr.mxu0 0.0
    %2929 = vmatpush2.xpose.msra.mxu0 0.0
    %2930 = vmatprep.subr.mxu0 0.0
    %2931 = vmatpush2.xpose.msra.mxu0 0.0
    %2932 = vmatprep.subr.mxu0 0.0
    %2933 = vmatpush2.xpose.msra.mxu0 0.0
    %2934 = vmatprep.subr.mxu0 0.0
    %2935 = vmatpush2.xpose.msra.mxu0 0.0
    %2936 = vmatprep.subr.mxu0 0.0
    %2937 = vmatpush2.xpose.msra.mxu0 0.0
    %2938 = vmatprep.subr.mxu0 0.0
    %2939 = vmatpush2.xpose.msra.mxu0 0.0
    %2940 = vmatprep.subr.mxu0 0.0
    %2941 = vmatpush2.xpose.msra.mxu0 0.0
    %2942 = vmatprep.mubr.f32.mxu0 %v2803
    %2943 = vmatmul.mubr.f32.gmra.mxu0 %v2802
    %v2944 = vpop.f32.mrf.mxu0
    %v2945 = vadd.f32 %v2875, %v2944
    %v2946 = vpop.f32.mrf.mxu0
    %2947 = vdwg.mxu0
    %v2949 = vsel %vm565, %v2789, 0
    %v2952 = vsel %vm569, %v202, 0
    %v2955 = vsel %vm569, %v203, 0
    %v2958 = vsel %vm569, %v204, 0
    %v2961 = vsel %vm569, %v205, 0
    %2963 = vmatprep.subr.mxu0 0.0
    %2964 = vmatpush1.msra.mxu0 0.0
    %2965 = vmatprep.subr.mxu0 0.0
    %2966 = vmatpush1.msra.mxu0 0.0
    %2967 = vmatprep.subr.mxu0 0.0
    %2968 = vmatpush1.msra.mxu0 0.0
    %2969 = vmatprep.subr.mxu0 0.0
    %2970 = vmatpush1.msra.mxu0 0.0
    %2971 = vmatprep.subr.mxu0 0.0
    %2972 = vmatpush1.msra.mxu0 0.0
    %2973 = vmatprep.subr.mxu0 0.0
    %2974 = vmatpush1.msra.mxu0 0.0
    %2975 = vmatprep.subr.mxu0 0.0
    %2976 = vmatpush1.msra.mxu0 0.0
    %2977 = vmatprep.subr.mxu0 0.0
    %2978 = vmatpush1.msra.mxu0 0.0
    %2979 = vmatprep.subr.mxu0 0.0
    %2980 = vmatpush1.msra.mxu0 0.0
    %2981 = vmatprep.subr.mxu0 0.0
    %2982 = vmatpush1.msra.mxu0 0.0
    %2983 = vmatprep.subr.mxu0 0.0
    %2984 = vmatpush1.msra.mxu0 0.0
    %2985 = vmatprep.subr.mxu0 0.0
    %2986 = vmatpush1.msra.mxu0 0.0
    %2987 = vmatprep.subr.mxu0 0.0
    %2988 = vmatpush1.msra.mxu0 0.0
    %2989 = vmatprep.subr.mxu0 0.0
    %2990 = vmatpush1.msra.mxu0 0.0
    %2991 = vmatprep.subr.mxu0 0.0
    %2992 = vmatpush1.msra.mxu0 0.0
    %2993 = vmatprep.subr.mxu0 %v2955
    %2994 = vmatpush1.msra.mxu0 %v2952
    %2995 = vmatprep.subr.mxu0 0.0
    %2996 = vmatpush2.msra.mxu0 0.0
    %2997 = vmatprep.subr.mxu0 0.0
    %2998 = vmatpush2.msra.mxu0 0.0
    %2999 = vmatprep.subr.mxu0 0.0
    %3000 = vmatpush2.msra.mxu0 0.0
    %3001 = vmatprep.subr.mxu0 0.0
    %3002 = vmatpush2.msra.mxu0 0.0
    %3003 = vmatprep.subr.mxu0 0.0
    %3004 = vmatpush2.msra.mxu0 0.0
    %3005 = vmatprep.subr.mxu0 0.0
    %3006 = vmatpush2.msra.mxu0 0.0
    %3007 = vmatprep.subr.mxu0 0.0
    %3008 = vmatpush2.msra.mxu0 0.0
    %3009 = vmatprep.subr.mxu0 0.0
    %3010 = vmatpush2.msra.mxu0 0.0
    %3011 = vmatprep.subr.mxu0 0.0
    %3012 = vmatpush2.msra.mxu0 0.0
    %3013 = vmatprep.subr.mxu0 0.0
    %3014 = vmatpush2.msra.mxu0 0.0
    %3015 = vmatprep.subr.mxu0 0.0
    %3016 = vmatpush2.msra.mxu0 0.0
    %3017 = vmatprep.subr.mxu0 0.0
    %3018 = vmatpush2.msra.mxu0 0.0
    %3019 = vmatprep.subr.mxu0 0.0
    %3020 = vmatpush2.msra.mxu0 0.0
    %3021 = vmatprep.subr.mxu0 0.0
    %3022 = vmatpush2.msra.mxu0 0.0
    %3023 = vmatprep.subr.mxu0 0.0
    %3024 = vmatpush2.msra.mxu0 0.0
    %3025 = vmatprep.subr.mxu0 0.0
    %3026 = vmatpush2.msra.mxu0 0.0
    %3027 = vmatprep.mubr.f32.mxu0 0.0
    %3028 = vmatmul.mubr.f32.gmra.mxu0 %v2949
    %v3029 = vpop.f32.mrf.mxu0
    %v3030 = vadd.f32 0.0, %v3029
    %v3031 = vpop.f32.mrf.mxu0
    %v3032 = vadd.f32 0.0, %v3031
    %3033 = vdwg.mxu0
    %3034 = vmatprep.subr.mxu0 0.0
    %3035 = vmatpush1.msra.mxu0 0.0
    %3036 = vmatprep.subr.mxu0 0.0
    %3037 = vmatpush1.msra.mxu0 0.0
    %3038 = vmatprep.subr.mxu0 0.0
    %3039 = vmatpush1.msra.mxu0 0.0
    %3040 = vmatprep.subr.mxu0 0.0
    %3041 = vmatpush1.msra.mxu0 0.0
    %3042 = vmatprep.subr.mxu0 0.0
    %3043 = vmatpush1.msra.mxu0 0.0
    %3044 = vmatprep.subr.mxu0 0.0
    %3045 = vmatpush1.msra.mxu0 0.0
    %3046 = vmatprep.subr.mxu0 0.0
    %3047 = vmatpush1.msra.mxu0 0.0
    %3048 = vmatprep.subr.mxu0 0.0
    %3049 = vmatpush1.msra.mxu0 0.0
    %3050 = vmatprep.subr.mxu0 0.0
    %3051 = vmatpush1.msra.mxu0 0.0
    %3052 = vmatprep.subr.mxu0 0.0
    %3053 = vmatpush1.msra.mxu0 0.0
    %3054 = vmatprep.subr.mxu0 0.0
    %3055 = vmatpush1.msra.mxu0 0.0
    %3056 = vmatprep.subr.mxu0 0.0
    %3057 = vmatpush1.msra.mxu0 0.0
    %3058 = vmatprep.subr.mxu0 0.0
    %3059 = vmatpush1.msra.mxu0 0.0
    %3060 = vmatprep.subr.mxu0 0.0
    %3061 = vmatpush1.msra.mxu0 0.0
    %3062 = vmatprep.subr.mxu0 0.0
    %3063 = vmatpush1.msra.mxu0 0.0
    %3064 = vmatprep.subr.mxu0 %v2961
    %3065 = vmatpush1.msra.mxu0 %v2958
    %3066 = vmatprep.subr.mxu0 0.0
    %3067 = vmatpush2.msra.mxu0 0.0
    %3068 = vmatprep.subr.mxu0 0.0
    %3069 = vmatpush2.msra.mxu0 0.0
    %3070 = vmatprep.subr.mxu0 0.0
    %3071 = vmatpush2.msra.mxu0 0.0
    %3072 = vmatprep.subr.mxu0 0.0
    %3073 = vmatpush2.msra.mxu0 0.0
    %3074 = vmatprep.subr.mxu0 0.0
    %3075 = vmatpush2.msra.mxu0 0.0
    %3076 = vmatprep.subr.mxu0 0.0
    %3077 = vmatpush2.msra.mxu0 0.0
    %3078 = vmatprep.subr.mxu0 0.0
    %3079 = vmatpush2.msra.mxu0 0.0
    %3080 = vmatprep.subr.mxu0 0.0
    %3081 = vmatpush2.msra.mxu0 0.0
    %3082 = vmatprep.subr.mxu0 0.0
    %3083 = vmatpush2.msra.mxu0 0.0
    %3084 = vmatprep.subr.mxu0 0.0
    %3085 = vmatpush2.msra.mxu0 0.0
    %3086 = vmatprep.subr.mxu0 0.0
    %3087 = vmatpush2.msra.mxu0 0.0
    %3088 = vmatprep.subr.mxu0 0.0
    %3089 = vmatpush2.msra.mxu0 0.0
    %3090 = vmatprep.subr.mxu0 0.0
    %3091 = vmatpush2.msra.mxu0 0.0
    %3092 = vmatprep.subr.mxu0 0.0
    %3093 = vmatpush2.msra.mxu0 0.0
    %3094 = vmatprep.subr.mxu0 0.0
    %3095 = vmatpush2.msra.mxu0 0.0
    %3096 = vmatprep.subr.mxu0 0.0
    %3097 = vmatpush2.msra.mxu0 0.0
    %3098 = vmatprep.mubr.f32.mxu0 0.0
    %3099 = vmatmul.mubr.f32.gmra.mxu0 %v2949
    %v3100 = vpop.f32.mrf.mxu0
    %v3101 = vadd.f32 0.0, %v3100
    %v3102 = vpop.f32.mrf.mxu0
    %v3103 = vadd.f32 0.0, %v3102
    %3104 = vdwg.mxu0
    %v3106 = vsel %vm565, %v2945, 0
    %3108 = vmatprep.subr.mxu0 0.0
    %3109 = vmatpush1.msra.mxu0 0.0
    %3110 = vmatprep.subr.mxu0 0.0
    %3111 = vmatpush1.msra.mxu0 0.0
    %3112 = vmatprep.subr.mxu0 0.0
    %3113 = vmatpush1.msra.mxu0 0.0
    %3114 = vmatprep.subr.mxu0 0.0
    %3115 = vmatpush1.msra.mxu0 0.0
    %3116 = vmatprep.subr.mxu0 0.0
    %3117 = vmatpush1.msra.mxu0 0.0
    %3118 = vmatprep.subr.mxu0 0.0
    %3119 = vmatpush1.msra.mxu0 0.0
    %3120 = vmatprep.subr.mxu0 0.0
    %3121 = vmatpush1.msra.mxu0 0.0
    %3122 = vmatprep.subr.mxu0 0.0
    %3123 = vmatpush1.msra.mxu0 0.0
    %3124 = vmatprep.subr.mxu0 0.0
    %3125 = vmatpush1.msra.mxu0 0.0
    %3126 = vmatprep.subr.mxu0 0.0
    %3127 = vmatpush1.msra.mxu0 0.0
    %3128 = vmatprep.subr.mxu0 0.0
    %3129 = vmatpush1.msra.mxu0 0.0
    %3130 = vmatprep.subr.mxu0 0.0
    %3131 = vmatpush1.msra.mxu0 0.0
    %3132 = vmatprep.subr.mxu0 0.0
    %3133 = vmatpush1.msra.mxu0 0.0
    %3134 = vmatprep.subr.mxu0 0.0
    %3135 = vmatpush1.msra.mxu0 0.0
    %3136 = vmatprep.subr.mxu0 0.0
    %3137 = vmatpush1.msra.mxu0 0.0
    %3138 = vmatprep.subr.mxu0 %v2955
    %3139 = vmatpush1.msra.mxu0 %v2952
    %3140 = vmatprep.subr.mxu0 0.0
    %3141 = vmatpush2.msra.mxu0 0.0
    %3142 = vmatprep.subr.mxu0 0.0
    %3143 = vmatpush2.msra.mxu0 0.0
    %3144 = vmatprep.subr.mxu0 0.0
    %3145 = vmatpush2.msra.mxu0 0.0
    %3146 = vmatprep.subr.mxu0 0.0
    %3147 = vmatpush2.msra.mxu0 0.0
    %3148 = vmatprep.subr.mxu0 0.0
    %3149 = vmatpush2.msra.mxu0 0.0
    %3150 = vmatprep.subr.mxu0 0.0
    %3151 = vmatpush2.msra.mxu0 0.0
    %3152 = vmatprep.subr.mxu0 0.0
    %3153 = vmatpush2.msra.mxu0 0.0
    %3154 = vmatprep.subr.mxu0 0.0
    %3155 = vmatpush2.msra.mxu0 0.0
    %3156 = vmatprep.subr.mxu0 0.0
    %3157 = vmatpush2.msra.mxu0 0.0
    %3158 = vmatprep.subr.mxu0 0.0
    %3159 = vmatpush2.msra.mxu0 0.0
    %3160 = vmatprep.subr.mxu0 0.0
    %3161 = vmatpush2.msra.mxu0 0.0
    %3162 = vmatprep.subr.mxu0 0.0
    %3163 = vmatpush2.msra.mxu0 0.0
    %3164 = vmatprep.subr.mxu0 0.0
    %3165 = vmatpush2.msra.mxu0 0.0
    %3166 = vmatprep.subr.mxu0 0.0
    %3167 = vmatpush2.msra.mxu0 0.0
    %3168 = vmatprep.subr.mxu0 0.0
    %3169 = vmatpush2.msra.mxu0 0.0
    %3170 = vmatprep.subr.mxu0 0.0
    %3171 = vmatpush2.msra.mxu0 0.0
    %3172 = vmatprep.mubr.f32.mxu0 0.0
    %3173 = vmatmul.mubr.f32.gmra.mxu0 %v3106
    %v3174 = vpop.f32.mrf.mxu0
    %v3175 = vadd.f32 0.0, %v3174
    %v3176 = vpop.f32.mrf.mxu0
    %v3177 = vadd.f32 0.0, %v3176
    %3178 = vdwg.mxu0
    %3179 = vmatprep.subr.mxu0 0.0
    %3180 = vmatpush1.msra.mxu0 0.0
    %3181 = vmatprep.subr.mxu0 0.0
    %3182 = vmatpush1.msra.mxu0 0.0
    %3183 = vmatprep.subr.mxu0 0.0
    %3184 = vmatpush1.msra.mxu0 0.0
    %3185 = vmatprep.subr.mxu0 0.0
    %3186 = vmatpush1.msra.mxu0 0.0
    %3187 = vmatprep.subr.mxu0 0.0
    %3188 = vmatpush1.msra.mxu0 0.0
    %3189 = vmatprep.subr.mxu0 0.0
    %3190 = vmatpush1.msra.mxu0 0.0
    %3191 = vmatprep.subr.mxu0 0.0
    %3192 = vmatpush1.msra.mxu0 0.0
    %3193 = vmatprep.subr.mxu0 0.0
    %3194 = vmatpush1.msra.mxu0 0.0
    %3195 = vmatprep.subr.mxu0 0.0
    %3196 = vmatpush1.msra.mxu0 0.0
    %3197 = vmatprep.subr.mxu0 0.0
    %3198 = vmatpush1.msra.mxu0 0.0
    %3199 = vmatprep.subr.mxu0 0.0
    %3200 = vmatpush1.msra.mxu0 0.0
    %3201 = vmatprep.subr.mxu0 0.0
    %3202 = vmatpush1.msra.mxu0 0.0
    %3203 = vmatprep.subr.mxu0 0.0
    %3204 = vmatpush1.msra.mxu0 0.0
    %3205 = vmatprep.subr.mxu0 0.0
    %3206 = vmatpush1.msra.mxu0 0.0
    %3207 = vmatprep.subr.mxu0 0.0
    %3208 = vmatpush1.msra.mxu0 0.0
    %3209 = vmatprep.subr.mxu0 %v2961
    %3210 = vmatpush1.msra.mxu0 %v2958
    %3211 = vmatprep.subr.mxu0 0.0
    %3212 = vmatpush2.msra.mxu0 0.0
    %3213 = vmatprep.subr.mxu0 0.0
    %3214 = vmatpush2.msra.mxu0 0.0
    %3215 = vmatprep.subr.mxu0 0.0
    %3216 = vmatpush2.msra.mxu0 0.0
    %3217 = vmatprep.subr.mxu0 0.0
    %3218 = vmatpush2.msra.mxu0 0.0
    %3219 = vmatprep.subr.mxu0 0.0
    %3220 = vmatpush2.msra.mxu0 0.0
    %3221 = vmatprep.subr.mxu0 0.0
    %3222 = vmatpush2.msra.mxu0 0.0
    %3223 = vmatprep.subr.mxu0 0.0
    %3224 = vmatpush2.msra.mxu0 0.0
    %3225 = vmatprep.subr.mxu0 0.0
    %3226 = vmatpush2.msra.mxu0 0.0
    %3227 = vmatprep.subr.mxu0 0.0
    %3228 = vmatpush2.msra.mxu0 0.0
    %3229 = vmatprep.subr.mxu0 0.0
    %3230 = vmatpush2.msra.mxu0 0.0
    %3231 = vmatprep.subr.mxu0 0.0
    %3232 = vmatpush2.msra.mxu0 0.0
    %3233 = vmatprep.subr.mxu0 0.0
    %3234 = vmatpush2.msra.mxu0 0.0
    %3235 = vmatprep.subr.mxu0 0.0
    %3236 = vmatpush2.msra.mxu0 0.0
    %3237 = vmatprep.subr.mxu0 0.0
    %3238 = vmatpush2.msra.mxu0 0.0
    %3239 = vmatprep.subr.mxu0 0.0
    %3240 = vmatpush2.msra.mxu0 0.0
    %3241 = vmatprep.subr.mxu0 0.0
    %3242 = vmatpush2.msra.mxu0 0.0
    %3243 = vmatprep.mubr.f32.mxu0 0.0
    %3244 = vmatmul.mubr.f32.gmra.mxu0 %v3106
    %v3245 = vpop.f32.mrf.mxu0
    %v3246 = vadd.f32 0.0, %v3245
    %v3247 = vpop.f32.mrf.mxu0
    %v3248 = vadd.f32 0.0, %v3247
    %3249 = vdwg.mxu0
    %v3250 = vmul.f32 %v3030, 0.00048828125
    %v3251 = vmul.f32 %v3032, 0.00048828125
    %v3252 = vmul.f32 %v3101, 0.00048828125
    %v3253 = vmul.f32 %v3103, 0.00048828125
    %v3254 = vmul.f32 %v3175, 0.00048828125
    %v3255 = vmul.f32 %v3177, 0.00048828125
    %v3256 = vmul.f32 %v3246, 0.00048828125
    %v3257 = vmul.f32 %v3248, 0.00048828125
    %v3258 = vmul.f32 %v3250, %v3250
    %v3259 = vmul.f32 %v3251, %v3251
    %v3260 = vmul.f32 %v3252, %v3252
    %v3261 = vmul.f32 %v3253, %v3253
    %v3262 = vsub.f32 %v3254, %v3258
    %v3263 = vsub.f32 %v3255, %v3259
    %v3264 = vsub.f32 %v3256, %v3260
    %v3265 = vsub.f32 %v3257, %v3261
    %v3266 = vmax.f32 %v3262, 0.0
    %v3267 = vmax.f32 %v3263, 0.0
    %v3268 = vmax.f32 %v3264, 0.0
    %v3269 = vmax.f32 %v3265, 0.0
    %v3270 = vadd.f32 %v3266, 1e-05
    %v3271 = vadd.f32 %v3267, 1e-05
    %v3272 = vadd.f32 %v3268, 1e-05
    %v3273 = vadd.f32 %v3269, 1e-05
    %v3274 = vrsqrt.pop %v3270
    %v3275 = vrsqrt.pop %v3271
    %v3276 = vrsqrt.pop %v3272
    %v3277 = vrsqrt.pop %v3273
    %v3278 = vlaneseq
    %v3279 = vshrl.u32 %v3278, 7
    %v3280 = vsub.s32 1, %v3279
    %v3281 = vrot.slane %v206, %v3280
    %v3282 = vlaneseq
    %v3283 = vshrl.u32 %v3282, 7
    %v3284 = vsub.s32 1, %v3283
    %v3285 = vrot.slane %v207, %v3284
    %v3286 = vlaneseq
    %v3287 = vshrl.u32 %v3286, 7
    %v3288 = vsub.s32 1, %v3287
    %v3289 = vrot.slane %v208, %v3288
    %v3290 = vlaneseq
    %v3291 = vshrl.u32 %v3290, 7
    %v3292 = vsub.s32 1, %v3291
    %v3293 = vrot.slane %v209, %v3292
    %v3294 = vmul.f32 %v3274, %v3281
    %v3295 = vmul.f32 %v3275, %v3285
    %v3296 = vmul.f32 %v3276, %v3289
    %v3297 = vmul.f32 %v3277, %v3293
    %v3298 = vmul.f32 %v3250, %v3294
    %v3299 = vmul.f32 %v3251, %v3295
    %v3300 = vmul.f32 %v3252, %v3296
    %v3301 = vmul.f32 %v3253, %v3297
    %v3302 = vlaneseq
    %v3303 = vshrl.u32 %v3302, 7
    %v3304 = vsub.s32 2, %v3303
    %v3305 = vrot.slane %v206, %v3304
    %v3306 = vlaneseq
    %v3307 = vshrl.u32 %v3306, 7
    %v3308 = vsub.s32 2, %v3307
    %v3309 = vrot.slane %v207, %v3308
    %v3310 = vlaneseq
    %v3311 = vshrl.u32 %v3310, 7
    %v3312 = vsub.s32 2, %v3311
    %v3313 = vrot.slane %v208, %v3312
    %v3314 = vlaneseq
    %v3315 = vshrl.u32 %v3314, 7
    %v3316 = vsub.s32 2, %v3315
    %v3317 = vrot.slane %v209, %v3316
    %v3318 = vsub.f32 %v3305, %v3298
    %v3319 = vsub.f32 %v3309, %v3299
    %v3320 = vsub.f32 %v3313, %v3300
    %v3321 = vsub.f32 %v3317, %v3301
    %v3326 = vcombine.low %v3294, %v3295
    %v3327 = vcombine.low %v3296, %v3297
    %v3329 = vunpack.c.l.s4 1966171168
    %v3330 = vunpack.c.0.s8 %v3329
    %v3331 = vlaneseq
    %v3332 = vshrl.u32 %v3331, 7
    %v3333 = vsub.s32 %v3330, %v3332
    %v3334 = vrot.slane %v3326, %v3333
    %v3336 = vunpack.c.l.s4 1966171168
    %v3337 = vunpack.c.0.s8 %v3336
    %v3338 = vlaneseq
    %v3339 = vshrl.u32 %v3338, 7
    %v3340 = vsub.s32 %v3337, %v3339
    %v3341 = vrot.slane %v3327, %v3340
    %v3342 = vcombine.low %v3334, %v3341
    %v3343 = vcombine.high %v3334, %v3341
    %v3345 = vunpack.c.l.s4 1966171168
    %v3346 = vunpack.c.0.s8 %v3345
    %v3347 = vlaneseq
    %v3348 = vshrl.u32 %v3347, 7
    %v3349 = vsub.s32 %v3346, %v3348
    %v3350 = vrot.slane %v3342, %v3349
    %v3352 = vunpack.c.l.s4 1966171168
    %v3353 = vunpack.c.0.s8 %v3352
    %v3354 = vlaneseq
    %v3355 = vshrl.u32 %v3354, 7
    %v3356 = vsub.s32 %v3353, %v3355
    %v3357 = vrot.slane %v3343, %v3356
    %v3358 = vlaneseq
    %v3359 = vshrl.u32 %v3358, 7
    %v3360 = vsub.s32 0, %v3359
    %v3361 = vrot.slane %v3350, %v3360
    %v3362 = vlaneseq
    %v3363 = vshrl.u32 %v3362, 7
    %v3364 = vsub.s32 1, %v3363
    %v3365 = vrot.slane %v3350, %v3364
    %v3366 = vlaneseq
    %v3367 = vshrl.u32 %v3366, 7
    %v3368 = vsub.s32 2, %v3367
    %v3369 = vrot.slane %v3350, %v3368
    %v3370 = vlaneseq
    %v3371 = vshrl.u32 %v3370, 7
    %v3372 = vsub.s32 3, %v3371
    %v3373 = vrot.slane %v3350, %v3372
    %v3374 = vlaneseq
    %v3375 = vshrl.u32 %v3374, 7
    %v3376 = vsub.s32 0, %v3375
    %v3377 = vrot.slane %v3357, %v3376
    %v3378 = vlaneseq
    %v3379 = vshrl.u32 %v3378, 7
    %v3380 = vsub.s32 1, %v3379
    %v3381 = vrot.slane %v3357, %v3380
    %v3382 = vlaneseq
    %v3383 = vshrl.u32 %v3382, 7
    %v3384 = vsub.s32 2, %v3383
    %v3385 = vrot.slane %v3357, %v3384
    %v3386 = vlaneseq
    %v3387 = vshrl.u32 %v3386, 7
    %v3388 = vsub.s32 3, %v3387
    %v3389 = vrot.slane %v3357, %v3388
    %v3398 = vmul.f32 %v2397, %v3361
    %v3399 = vmul.f32 %v2399, %v3365
    %v3400 = vmul.f32 %v2486, %v3369
    %v3401 = vmul.f32 %v2488, %v3373
    %v3402 = vmul.f32 %v2403, %v3361
    %v3403 = vmul.f32 %v2405, %v3365
    %v3404 = vmul.f32 %v2492, %v3369
    %v3405 = vmul.f32 %v2494, %v3373
    %v3406 = vmul.f32 %v2409, %v3377
    %v3407 = vmul.f32 %v2411, %v3381
    %v3408 = vmul.f32 %v2498, %v3385
    %v3409 = vmul.f32 %v2500, %v3389
    %v3410 = vmul.f32 %v2415, %v3377
    %v3411 = vmul.f32 %v2417, %v3381
    %v3412 = vmul.f32 %v2504, %v3385
    %v3413 = vmul.f32 %v2506, %v3389
    %v3418 = vcombine.low %v3318, %v3319
    %v3419 = vcombine.low %v3320, %v3321
    %v3421 = vunpack.c.l.s4 1966171168
    %v3422 = vunpack.c.0.s8 %v3421
    %v3423 = vlaneseq
    %v3424 = vshrl.u32 %v3423, 7
    %v3425 = vsub.s32 %v3422, %v3424
    %v3426 = vrot.slane %v3418, %v3425
    %v3428 = vunpack.c.l.s4 1966171168
    %v3429 = vunpack.c.0.s8 %v3428
    %v3430 = vlaneseq
    %v3431 = vshrl.u32 %v3430, 7
    %v3432 = vsub.s32 %v3429, %v3431
    %v3433 = vrot.slane %v3419, %v3432
    %v3434 = vcombine.low %v3426, %v3433
    %v3435 = vcombine.high %v3426, %v3433
    %v3437 = vunpack.c.l.s4 1966171168
    %v3438 = vunpack.c.0.s8 %v3437
    %v3439 = vlaneseq
    %v3440 = vshrl.u32 %v3439, 7
    %v3441 = vsub.s32 %v3438, %v3440
    %v3442 = vrot.slane %v3434, %v3441
    %v3444 = vunpack.c.l.s4 1966171168
    %v3445 = vunpack.c.0.s8 %v3444
    %v3446 = vlaneseq
    %v3447 = vshrl.u32 %v3446, 7
    %v3448 = vsub.s32 %v3445, %v3447
    %v3449 = vrot.slane %v3435, %v3448
    %v3450 = vlaneseq
    %v3451 = vshrl.u32 %v3450, 7
    %v3452 = vsub.s32 0, %v3451
    %v3453 = vrot.slane %v3442, %v3452
    %v3454 = vlaneseq
    %v3455 = vshrl.u32 %v3454, 7
    %v3456 = vsub.s32 1, %v3455
    %v3457 = vrot.slane %v3442, %v3456
    %v3458 = vlaneseq
    %v3459 = vshrl.u32 %v3458, 7
    %v3460 = vsub.s32 2, %v3459
    %v3461 = vrot.slane %v3442, %v3460
    %v3462 = vlaneseq
    %v3463 = vshrl.u32 %v3462, 7
    %v3464 = vsub.s32 3, %v3463
    %v3465 = vrot.slane %v3442, %v3464
    %v3466 = vlaneseq
    %v3467 = vshrl.u32 %v3466, 7
    %v3468 = vsub.s32 0, %v3467
    %v3469 = vrot.slane %v3449, %v3468
    %v3470 = vlaneseq
    %v3471 = vshrl.u32 %v3470, 7
    %v3472 = vsub.s32 1, %v3471
    %v3473 = vrot.slane %v3449, %v3472
    %v3474 = vlaneseq
    %v3475 = vshrl.u32 %v3474, 7
    %v3476 = vsub.s32 2, %v3475
    %v3477 = vrot.slane %v3449, %v3476
    %v3478 = vlaneseq
    %v3479 = vshrl.u32 %v3478, 7
    %v3480 = vsub.s32 3, %v3479
    %v3481 = vrot.slane %v3449, %v3480
    %v3490 = vadd.f32 %v3398, %v3453
    %v3491 = vadd.f32 %v3399, %v3457
    %v3492 = vadd.f32 %v3400, %v3461
    %v3493 = vadd.f32 %v3401, %v3465
    %v3494 = vadd.f32 %v3402, %v3453
    %v3495 = vadd.f32 %v3403, %v3457
    %v3496 = vadd.f32 %v3404, %v3461
    %v3497 = vadd.f32 %v3405, %v3465
    %v3498 = vadd.f32 %v3406, %v3469
    %v3499 = vadd.f32 %v3407, %v3473
    %v3500 = vadd.f32 %v3408, %v3477
    %v3501 = vadd.f32 %v3409, %v3481
    %v3502 = vadd.f32 %v3410, %v3469
    %v3503 = vadd.f32 %v3411, %v3473
    %v3504 = vadd.f32 %v3412, %v3477
    %v3505 = vadd.f32 %v3413, %v3481
    %v3506 = vmax.f32 %v3490, 0.0
    %v3507 = vmax.f32 %v3491, 0.0
    %v3508 = vmax.f32 %v3492, 0.0
    %v3509 = vmax.f32 %v3493, 0.0
    %v3510 = vmax.f32 %v3494, 0.0
    %v3511 = vmax.f32 %v3495, 0.0
    %v3512 = vmax.f32 %v3496, 0.0
    %v3513 = vmax.f32 %v3497, 0.0
    %v3514 = vmax.f32 %v3498, 0.0
    %v3515 = vmax.f32 %v3499, 0.0
    %v3516 = vmax.f32 %v3500, 0.0
    %v3517 = vmax.f32 %v3501, 0.0
    %v3518 = vmax.f32 %v3502, 0.0
    %v3519 = vmax.f32 %v3503, 0.0
    %v3520 = vmax.f32 %v3504, 0.0
    %v3521 = vmax.f32 %v3505, 0.0
    %v3522 = vadd.f32 %v56, %v3506
    %v3523 = vadd.f32 %v57, %v3507
    %v3524 = vadd.f32 %v58, %v3508
    %v3525 = vadd.f32 %v59, %v3509
    %v3526 = vadd.f32 %v60, %v3510
    %v3527 = vadd.f32 %v61, %v3511
    %v3528 = vadd.f32 %v62, %v3512
    %v3529 = vadd.f32 %v63, %v3513
    %v3530 = vadd.f32 %v64, %v3514
    %v3531 = vadd.f32 %v65, %v3515
    %v3532 = vadd.f32 %v66, %v3516
    %v3533 = vadd.f32 %v67, %v3517
    %v3534 = vadd.f32 %v68, %v3518
    %v3535 = vadd.f32 %v69, %v3519
    %v3536 = vadd.f32 %v70, %v3520
    %v3537 = vadd.f32 %v71, %v3521
    %v3538 = vmax.f32 %v3522, 0.0
    %v3539 = vmax.f32 %v3523, 0.0
    %v3540 = vmax.f32 %v3524, 0.0
    %v3541 = vmax.f32 %v3525, 0.0
    %v3542 = vmax.f32 %v3526, 0.0
    %v3543 = vmax.f32 %v3527, 0.0
    %v3544 = vmax.f32 %v3528, 0.0
    %v3545 = vmax.f32 %v3529, 0.0
    %v3546 = vmax.f32 %v3530, 0.0
    %v3547 = vmax.f32 %v3531, 0.0
    %v3548 = vmax.f32 %v3532, 0.0
    %v3549 = vmax.f32 %v3533, 0.0
    %v3550 = vmax.f32 %v3534, 0.0
    %v3551 = vmax.f32 %v3535, 0.0
    %v3552 = vmax.f32 %v3536, 0.0
    %v3553 = vmax.f32 %v3537, 0.0
    %3554 = vst [vmem:[#allocation8] sm:$0xff] %v3538
    %3555 = vst [vmem:[#allocation8 + $0x8] sm:$0xff] %v3539
    %3556 = vst [vmem:[#allocation8 + $0x10] sm:$0xff] %v3540
    %3557 = vst [vmem:[#allocation8 + $0x18] sm:$0xff] %v3541
    %3558 = vst [vmem:[#allocation8 + $0x20] sm:$0xff] %v3542
    %3559 = vst [vmem:[#allocation8 + $0x28] sm:$0xff] %v3543
    %3560 = vst [vmem:[#allocation8 + $0x30] sm:$0xff] %v3544
    %3561 = vst [vmem:[#allocation8 + $0x38] sm:$0xff] %v3545
    %3562 = vst [vmem:[#allocation8 + $0x40] sm:$0xff] %v3546
    %3563 = vst [vmem:[#allocation8 + $0x48] sm:$0xff] %v3547
    %3564 = vst [vmem:[#allocation8 + $0x50] sm:$0xff] %v3548
    %3565 = vst [vmem:[#allocation8 + $0x58] sm:$0xff] %v3549
    %3566 = vst [vmem:[#allocation8 + $0x60] sm:$0xff] %v3550
    %3567 = vst [vmem:[#allocation8 + $0x68] sm:$0xff] %v3551
    %3568 = vst [vmem:[#allocation8 + $0x70] sm:$0xff] %v3552
    %3569 = vst [vmem:[#allocation8 + $0x78] sm:$0xff] %v3553
    // Predicated region
    $region26: #{tpu_custom_call.1} parent=1 // pred_check
      _
    $region27: #{tpu_custom_call.1} parent=1 // pred_check_branch
      %3571 = sbr.rel (0) target = $region29
    $region28: #{tpu_custom_call.1} parent=1 // pred_region
      %s3573 = ssub.s32 2048, 2048
      %3574 = vsyncadd [#allocation4], %s3573
      %s3575 = sshll.u32 [#allocation8], 4
      %s3576 = int_to_ptr.vmem [resolvable:$true] %s3575
      %3581 = dma.vmem_to_hbm [thread:$0]  %s3576, 2048, %s3, [#allocation4], 512, 512, 32
    $region29: #{tpu_custom_call.1} parent=1 // pred_fallthru
      _
    // Predicated region
    $region30: #{tpu_custom_call.1} parent=1 // pred_check
      _
    $region31: #{tpu_custom_call.1} parent=1 // pred_check_branch
      %3583 = sbr.rel (0) target = $region33
    $region32: #{tpu_custom_call.1} parent=1 // pred_region
      %3584 = dma.done [#allocation4], 2048
    $region33: #{tpu_custom_call.1} parent=1 // pred_fallthru
      _
    %3585 = vsyncpa [#allocation3], 1
    %3586 = vsyncpa [#allocation6], 1
    %3587 = vsyncpa [#allocation4], 1

</llo_original>
